<compile_context>
chip_gen: v6e
topology: v6e:2x2x1
jax: 0.10.0
libtpu: 0.0.40
codegen_flags: <defaults>
</compile_context>

<pallas_src>
import jax
import jax.numpy as jnp
from jax.experimental import pallas as pl
from jax.experimental.pallas import tpu as pltpu

HIDDEN_DIM = 64
TIME_LEN = 16


# ----------------------------------------------------------------------------
# Pallas kernel: one batch-block (Bt elements) per grid point, full time loop
# (and the single block-diagonal aggregation matmul) inside.
# ----------------------------------------------------------------------------
def _a3tgcn_kernel(
    xw_ref,     # (1, T*Bt*N, 3H) bf16  X @ Wg, rows ordered (t, b, n)
    abig_ref,   # (T*Bt*N, T*Bt*N) bf16 block-diag I (x) A_hat
    bg_ref,     # (1, 3H)          f32  folded gate biases [z | r | h]
    wh2_ref,    # (H, 2H)          bf16 hidden-state weights [Wz_h | Wr_h]
    whh_ref,    # (H, H)           bf16 hidden-state weight of candidate gate
    probs_ref,  # (T,)             f32  softmax(attention), SMEM
    wo_ref,     # (H, P)           bf16 output head weight
    bo_ref,     # (1, P)           f32  output head bias
    out_ref,    # (1, Bt*N, P)     f32
    g_scr,      # (T*Bt*N, 3H)     f32  VMEM scratch for pre-activations
):
    T = probs_ref.shape[0]
    TBN = abig_ref.shape[0]
    BN = TBN // T                     # Bt * N rows per time step
    H = whh_ref.shape[0]

    # One MXU-wide aggregation for ALL time steps / batch rows, bias added once:
    #   g_all = (I_{T*Bt} (x) A_hat) @ (X @ Wg) + bg
    g_scr[...] = jnp.dot(abig_ref[...], xw_ref[0],
                         preferred_element_type=jnp.float32) + bg_ref[...]

    wh2 = wh2_ref[...]                # (H, 2H) bf16
    whh = whh_ref[...]                # (H, H)  bf16

    h = jnp.zeros((BN, H), jnp.float32)
    acc = jnp.zeros((BN, H), jnp.float32)

    # T = 16 static, fully unrolled: h/acc carried as values, g re-read per
    # step from the VMEM scratch (bounded live ranges, no reliance on spills).
    # TODO(synk): if Bt is raised enough to spill vregs, switch to
    # lax.fori_loop(unroll=4) indexing g_scr via pl.ds(pl.multiple_of(t*BN, BN), BN).
    for t in range(T):
        g = g_scr[t * BN:(t + 1) * BN, :]                         # (BN, 3H) f32

        hz = jnp.dot(h.astype(jnp.bfloat16), wh2,
                     preferred_element_type=jnp.float32)          # (BN, 2H)

        # Fused z|r sigmoid over the lane-aligned 2H = 128 column slab.
        zr = jax.nn.sigmoid(g[:, :2 * H] + hz)
        z = zr[:, :H]
        r = zr[:, H:]

        h_tilde = jnp.tanh(
            g[:, 2 * H:]
            + jnp.dot((h * r).astype(jnp.bfloat16), whh,
                      preferred_element_type=jnp.float32))

        h = z * h + (1.0 - z) * h_tilde
        acc = acc + probs_ref[t] * h

    out = jnp.dot(acc.astype(jnp.bfloat16), wo_ref[...],
                  preferred_element_type=jnp.float32) + bo_ref[...]
    out_ref[0] = out.astype(out_ref.dtype)


# ----------------------------------------------------------------------------
# Wrapper: weight folding, projection + block-diag adjacency, pallas_call
# ----------------------------------------------------------------------------
def temporal_gnn_forward(x, a_hat, params, batch_block=None):
    """x: (B, T, N, F) float32; a_hat: (N, N) float32; returns (B, N, periods)."""
    B, T, N, F = x.shape
    H = params["wz"].shape[1]
    P = params["wo"].shape[1]

    # Batch-block size: keep grid >= 2 (and even) so v7x's two TensorCores each
    # get work; on v5e/v6e a couple of large steps is also near-optimal.
    if batch_block is None:
        batch_block = 1 if B <= 2 else max(1, min(8, B // 2))
    assert B % batch_block == 0, "batch must be divisible by batch_block"
    Bt = batch_block
    G = B // Bt
    TBN = T * Bt * N

    probs = jax.nn.softmax(params["attention"])                       # (T,)

    # Exact algebraic fold of the GCN projection into the GRU gate linears:
    #   ((A@X)@Wg + bg) @ Wc + b == A @ (X @ (Wg@Wc)) + (bg@Wc + b)
    wg = jnp.concatenate([params["wz"] @ params["wlz_c"],
                          params["wr"] @ params["wlr_c"],
                          params["wh"] @ params["wlh_c"]], axis=1)     # (F, 3H)
    bg = jnp.concatenate([params["bz"] @ params["wlz_c"] + params["blz"],
                          params["br"] @ params["wlr_c"] + params["blr"],
                          params["bh"] @ params["wlh_c"] + params["blh"]],
                         axis=1)                                       # (1, 3H)
    wh2 = jnp.concatenate([params["wlz_h"], params["wlr_h"]], axis=1)  # (H, 2H)
    whh = params["wlh_h"]                                              # (H, H)

    # Thin-K (F=4) projection hoisted to the wrapper; lane-dense bf16 result.
    xw = x.reshape(B * T * N, F) @ wg                                  # (B*T*N, 3H) f32
    xw = xw.reshape(G, Bt, T, N, 3 * H)
    xw = jnp.transpose(xw, (0, 2, 1, 3, 4))                            # (G, T, Bt, N, 3H)
    xw = xw.reshape(G, TBN, 3 * H).astype(jnp.bfloat16)

    # Block-diagonal adjacency: one big MXU matmul aggregates every (t, b) block.
    a_big = jnp.kron(jnp.eye(T * Bt, dtype=jnp.float32),
                     a_hat).astype(jnp.bfloat16)                       # (TBN, TBN)

    wh2_b = wh2.astype(jnp.bfloat16)
    whh_b = whh.astype(jnp.bfloat16)
    wo_b = params["wo"].astype(jnp.bfloat16)

    const2 = lambda shape: pl.BlockSpec(shape, lambda g: (0, 0))

    grid_spec = pltpu.PrefetchScalarGridSpec(
        num_scalar_prefetch=0,
        grid=(G,),
        in_specs=[
            pl.BlockSpec((1, TBN, 3 * H), lambda g: (g, 0, 0)),        # xw
            const2((TBN, TBN)),                                        # A_big
            const2((1, 3 * H)),                                        # bg
            const2((H, 2 * H)),                                        # wh2
            const2((H, H)),                                            # whh
            pl.BlockSpec(memory_space=pltpu.MemorySpace.SMEM),         # probs
            const2((H, P)),                                            # wo
            const2((1, P)),                                            # bo
        ],
        out_specs=pl.BlockSpec((1, Bt * N, P), lambda g: (g, 0, 0)),
        scratch_shapes=[pltpu.VMEM((TBN, 3 * H), jnp.float32)],
    )

    out = pl.pallas_call(
        _a3tgcn_kernel,
        out_shape=jax.ShapeDtypeStruct((G, Bt * N, P), jnp.float32),
        grid_spec=grid_spec,
        compiler_params=pltpu.CompilerParams(
            dimension_semantics=("parallel",)),   # v7x: split batch over 2 TCs
    )(xw, a_big, bg, wh2_b, whh_b, probs, wo_b, params["bo"])

    return out.reshape(B, N, P)


# ----------------------------------------------------------------------------
# Glue: dense GCN normalization (add_self_loops=True, improved=False)
# ----------------------------------------------------------------------------
def gcn_norm_dense(edge_index, edge_attr, num_nodes):
    src, dst = edge_index[0], edge_index[1]
    adj = jnp.zeros((num_nodes, num_nodes), jnp.float32).at[dst, src].add(edge_attr)
    adj = adj + jnp.eye(num_nodes, dtype=jnp.float32)
    deg = adj.sum(axis=1)
    d_inv_sqrt = jnp.where(deg > 0, 1.0 / jnp.sqrt(deg), 0.0)
    return d_inv_sqrt[:, None] * adj * d_inv_sqrt[None, :]


# ----------------------------------------------------------------------------
# Deterministic parameter init (shapes follow the PyTorch module's __init__)
# ----------------------------------------------------------------------------
def init_params(key, node_features, hidden, time_len, periods):
    F, H, T, P = node_features, hidden, time_len, periods
    ks = jax.random.split(key, 20)
    u = lambda k, shape, s: jax.random.uniform(k, shape, jnp.float32, -s, s)
    sF, sH2, sH = 1.0 / jnp.sqrt(F), 1.0 / jnp.sqrt(2.0 * H), 1.0 / jnp.sqrt(H)
    return dict(
        # GCNConv (weights stored transposed vs torch: (F, H))
        wz=u(ks[0], (F, H), sF), bz=u(ks[1], (1, H), sF),
        wr=u(ks[2], (F, H), sF), br=u(ks[3], (1, H), sF),
        wh=u(ks[4], (F, H), sF), bh=u(ks[5], (1, H), sF),
        # torch Linear(2H, H) split into conv-part / hidden-part (each (H, H))
        wlz_c=u(ks[6], (H, H), sH2), wlz_h=u(ks[7], (H, H), sH2), blz=u(ks[8], (1, H), sH2),
        wlr_c=u(ks[9], (H, H), sH2), wlr_h=u(ks[10], (H, H), sH2), blr=u(ks[11], (1, H), sH2),
        wlh_c=u(ks[12], (H, H), sH2), wlh_h=u(ks[13], (H, H), sH2), blh=u(ks[14], (1, H), sH2),
        # attention over time steps
        attention=jax.random.uniform(ks[15], (T,), jnp.float32, 0.0, 1.0),
        # final Linear(H, periods)
        wo=u(ks[16], (H, P), sH), bo=u(ks[17], (1, P), sH),
    )


# ----------------------------------------------------------------------------
# Pure-JAX reference (unfused, f32) for numerical sanity check
# ----------------------------------------------------------------------------
def reference_forward(x, a_hat, p):
    B, T, N, F = x.shape
    H = p["wz"].shape[1]
    probs = jax.nn.softmax(p["attention"])
    h = jnp.zeros((B, N, H), jnp.float32)
    acc = jnp.zeros((B, N, H), jnp.float32)
    for t in range(T):
        xt = x[:, t]                                        # (B, N, F)
        ax = jnp.einsum("nm,bmf->bnf", a_hat, xt)
        cz = ax @ p["wz"] + p["bz"]
        cr = ax @ p["wr"] + p["br"]
        ch = ax @ p["wh"] + p["bh"]
        z = jax.nn.sigmoid(cz @ p["wlz_c"] + h @ p["wlz_h"] + p["blz"])
        r = jax.nn.sigmoid(cr @ p["wlr_c"] + h @ p["wlr_h"] + p["blr"])
        h_t = jnp.tanh(ch @ p["wlh_c"] + (h * r) @ p["wlh_h"] + p["blh"])
        h = z * h + (1.0 - z) * h_t
        acc = acc + probs[t] * h
    return acc @ p["wo"] + p["bo"]


if __name__ == "__main__":
    B = 2            # batch
    N = 16           # graph nodes
    F = 4            # node features
    T = TIME_LEN     # 16 time steps
    P = 8            # prediction periods
    H = HIDDEN_DIM   # 64

    key = jax.random.PRNGKey(0)
    k_x, k_e, k_p = jax.random.split(key, 3)

    # Node features, kernel layout (B, T, N, F)  (torch layout would be (B, N, F, T))
    x = jax.random.normal(k_x, (B, T, N, F), jnp.float32)

    # Small deterministic graph: bidirectional ring of N nodes, random positive weights
    src = jnp.arange(N)
    dst = (src + 1) % N
    edge_index = jnp.stack(
        [jnp.concatenate([src, dst]), jnp.concatenate([dst, src])], axis=0)  # (2, 2N)
    edge_attr = jax.random.uniform(k_e, (edge_index.shape[1],), jnp.float32, 0.5, 1.5)

    a_hat = gcn_norm_dense(edge_index, edge_attr, N)
    params = init_params(k_p, F, H, T, P)

    out = temporal_gnn_forward(x, a_hat, params)
    out = jax.block_until_ready(out)

    ref = reference_forward(x, a_hat, params)
    if not jnp.allclose(out, ref, atol=5e-2, rtol=5e-2):
        raise AssertionError(
            f"kernel mismatch: max abs err = {jnp.max(jnp.abs(out - ref)):.3e}")

    print("KERNEL_OK")
</pallas_src>

<mosaic_0001>
module attributes {stable_mosaic.version = 11 : i64} {
  func.func @_a3tgcn_kernel(%arg0: i32, %arg1: memref<1x256x192xbf16, #tpu.memory_space<vmem>>, %arg2: memref<256x256xbf16, #tpu.memory_space<vmem>>, %arg3: memref<1x192xf32, #tpu.memory_space<vmem>>, %arg4: memref<64x128xbf16, #tpu.memory_space<vmem>>, %arg5: memref<64x64xbf16, #tpu.memory_space<vmem>>, %arg6: memref<16xf32, #tpu.memory_space<smem>>, %arg7: memref<64x8xbf16, #tpu.memory_space<vmem>>, %arg8: memref<1x8xf32, #tpu.memory_space<vmem>>, %arg9: memref<1x16x8xf32, #tpu.memory_space<vmem>>, %arg10: memref<256x192xf32, #tpu.memory_space<vmem>>) attributes {dimension_semantics = [#tpu.dimension_semantics<parallel>], iteration_bounds = array<i64: 2>, scalar_prefetch = 0 : i64, scratch_operands = 1 : i64, tpu.core_type = #tpu.core_type<tc>, window_params = [{transform_indices = @transform_0, window_bounds = array<i64: 1, 256, 192>}, {pipeline_mode = #tpu.pipeline_mode<synchronous>, transform_indices = @transform_1, window_bounds = array<i64: 256, 256>}, {pipeline_mode = #tpu.pipeline_mode<synchronous>, transform_indices = @transform_2, window_bounds = array<i64: 1, 192>}, {pipeline_mode = #tpu.pipeline_mode<synchronous>, transform_indices = @transform_3, window_bounds = array<i64: 64, 128>}, {pipeline_mode = #tpu.pipeline_mode<synchronous>, transform_indices = @transform_4, window_bounds = array<i64: 64, 64>}, {transform_indices = @transform_5, window_bounds = array<i64: 16>}, {pipeline_mode = #tpu.pipeline_mode<synchronous>, transform_indices = @transform_6, window_bounds = array<i64: 64, 8>}, {pipeline_mode = #tpu.pipeline_mode<synchronous>, transform_indices = @transform_7, window_bounds = array<i64: 1, 8>}, {transform_indices = @transform_8, window_bounds = array<i64: 1, 16, 8>}]} {
    %c0 = arith.constant 0 : index
    %c0_0 = arith.constant 0 : index
    %0 = vector.load %arg2[%c0, %c0_0] : memref<256x256xbf16, #tpu.memory_space<vmem>>, vector<256x256xbf16>
    %c0_1 = arith.constant 0 : index
    %c0_2 = arith.constant 0 : index
    %c0_3 = arith.constant 0 : index
    %1 = vector.load %arg1[%c0_1, %c0_2, %c0_3] : memref<1x256x192xbf16, #tpu.memory_space<vmem>>, vector<1x256x192xbf16>
    %2 = vector.shape_cast %1 : vector<1x256x192xbf16> to vector<256x192xbf16>
    %cst = arith.constant dense<0.000000e+00> : vector<256x192xf32>
    %3 = tpu.matmul %0, %2, %cst {dimension_numbers = #tpu.dot_dimension_numbers<[1], [0], [0], [1], [0, 0, 1, 1], [], []>} : vector<256x256xbf16>, vector<256x192xbf16>, vector<256x192xf32> -> vector<256x192xf32>
    %c0_4 = arith.constant 0 : index
    %c0_5 = arith.constant 0 : index
    %4 = vector.load %arg3[%c0_4, %c0_5] : memref<1x192xf32, #tpu.memory_space<vmem>>, vector<1x192xf32>
    %5 = vector.broadcast %4 : vector<1x192xf32> to vector<256x192xf32>
    %6 = arith.addf %3, %5 : vector<256x192xf32>
    %c0_6 = arith.constant 0 : index
    %c0_7 = arith.constant 0 : index
    %7 = vector.load %arg10[%c0_6, %c0_7] : memref<256x192xf32, #tpu.memory_space<vmem>>, vector<256x192xf32>
    tpu.vector_store %arg10[%c0_6, %c0_7], %6 {strides = array<i32>} : memref<256x192xf32, #tpu.memory_space<vmem>>, vector<256x192xf32>,
    %c0_8 = arith.constant 0 : index
    %c0_9 = arith.constant 0 : index
    %8 = vector.load %arg4[%c0_8, %c0_9] : memref<64x128xbf16, #tpu.memory_space<vmem>>, vector<64x128xbf16>
    %c0_10 = arith.constant 0 : index
    %c0_11 = arith.constant 0 : index
    %9 = vector.load %arg5[%c0_10, %c0_11] : memref<64x64xbf16, #tpu.memory_space<vmem>>, vector<64x64xbf16>
    %cst_12 = arith.constant 0.000000e+00 : f32
    %10 = vector.broadcast %cst_12 : f32 to vector<16x64xf32>
    %cst_13 = arith.constant 0.000000e+00 : f32
    %11 = vector.broadcast %cst_13 : f32 to vector<16x64xf32>
    %c0_14 = arith.constant 0 : index
    %c0_15 = arith.constant 0 : index
    %12 = vector.load %arg10[%c0_14, %c0_15] : memref<256x192xf32, #tpu.memory_space<vmem>>, vector<16x192xf32>
    %13 = arith.truncf %10 : vector<16x64xf32> to vector<16x64xbf16>
    %cst_16 = arith.constant dense<0.000000e+00> : vector<16x128xf32>
    %14 = tpu.matmul %13, %8, %cst_16 {dimension_numbers = #tpu.dot_dimension_numbers<[1], [0], [0], [1], [0, 0, 1, 1], [], []>} : vector<16x64xbf16>, vector<64x128xbf16>, vector<16x128xf32> -> vector<16x128xf32>
    %15 = vector.extract_strided_slice %12 {offsets = [0, 0], sizes = [16, 128], strides = [1, 1]} : vector<16x192xf32> to vector<16x128xf32>
    %16 = arith.addf %15, %14 : vector<16x128xf32>
    %17 = arith.negf %16 : vector<16x128xf32>
    %18 = math.exp %17 : vector<16x128xf32>
    %cst_17 = arith.constant 1.000000e+00 : f32
    %19 = vector.broadcast %cst_17 : f32 to vector<16x128xf32>
    %20 = arith.addf %19, %18 : vector<16x128xf32>
    %21 = arith.divf %19, %20 : vector<16x128xf32>
    %22 = vector.extract_strided_slice %21 {offsets = [0, 0], sizes = [16, 64], strides = [1, 1]} : vector<16x128xf32> to vector<16x64xf32>
    %23 = vector.extract_strided_slice %21 {offsets = [0, 64], sizes = [16, 64], strides = [1, 1]} : vector<16x128xf32> to vector<16x64xf32>
    %24 = vector.extract_strided_slice %12 {offsets = [0, 128], sizes = [16, 64], strides = [1, 1]} : vector<16x192xf32> to vector<16x64xf32>
    %25 = arith.mulf %10, %23 : vector<16x64xf32>
    %26 = arith.truncf %25 : vector<16x64xf32> to vector<16x64xbf16>
    %cst_18 = arith.constant dense<0.000000e+00> : vector<16x64xf32>
    %27 = tpu.matmul %26, %9, %cst_18 {dimension_numbers = #tpu.dot_dimension_numbers<[1], [0], [0], [1], [0, 0, 1, 1], [], []>} : vector<16x64xbf16>, vector<64x64xbf16>, vector<16x64xf32> -> vector<16x64xf32>
    %28 = arith.addf %24, %27 : vector<16x64xf32>
    %29 = math.tanh %28 : vector<16x64xf32>
    %30 = arith.mulf %22, %10 : vector<16x64xf32>
    %cst_19 = arith.constant 1.000000e+00 : f32
    %31 = vector.broadcast %cst_19 : f32 to vector<16x64xf32>
    %32 = arith.subf %31, %22 : vector<16x64xf32>
    %33 = arith.mulf %32, %29 : vector<16x64xf32>
    %34 = arith.addf %30, %33 : vector<16x64xf32>
    %c0_20 = arith.constant 0 : index
    %35 = memref.load %arg6[%c0_20] : memref<16xf32, #tpu.memory_space<smem>>
    %36 = vector.broadcast %35 : f32 to vector<16x64xf32>
    %37 = arith.mulf %36, %34 : vector<16x64xf32>
    %38 = arith.addf %11, %37 : vector<16x64xf32>
    %c16 = arith.constant 16 : index
    %c0_21 = arith.constant 0 : index
    %39 = vector.load %arg10[%c16, %c0_21] : memref<256x192xf32, #tpu.memory_space<vmem>>, vector<16x192xf32>
    %40 = arith.truncf %34 : vector<16x64xf32> to vector<16x64xbf16>
    %cst_22 = arith.constant dense<0.000000e+00> : vector<16x128xf32>
    %41 = tpu.matmul %40, %8, %cst_22 {dimension_numbers = #tpu.dot_dimension_numbers<[1], [0], [0], [1], [0, 0, 1, 1], [], []>} : vector<16x64xbf16>, vector<64x128xbf16>, vector<16x128xf32> -> vector<16x128xf32>
    %42 = vector.extract_strided_slice %39 {offsets = [0, 0], sizes = [16, 128], strides = [1, 1]} : vector<16x192xf32> to vector<16x128xf32>
    %43 = arith.addf %42, %41 : vector<16x128xf32>
    %44 = arith.negf %43 : vector<16x128xf32>
    %45 = math.exp %44 : vector<16x128xf32>
    %cst_23 = arith.constant 1.000000e+00 : f32
    %46 = vector.broadcast %cst_23 : f32 to vector<16x128xf32>
    %47 = arith.addf %46, %45 : vector<16x128xf32>
    %48 = arith.divf %46, %47 : vector<16x128xf32>
    %49 = vector.extract_strided_slice %48 {offsets = [0, 0], sizes = [16, 64], strides = [1, 1]} : vector<16x128xf32> to vector<16x64xf32>
    %50 = vector.extract_strided_slice %48 {offsets = [0, 64], sizes = [16, 64], strides = [1, 1]} : vector<16x128xf32> to vector<16x64xf32>
    %51 = vector.extract_strided_slice %39 {offsets = [0, 128], sizes = [16, 64], strides = [1, 1]} : vector<16x192xf32> to vector<16x64xf32>
    %52 = arith.mulf %34, %50 : vector<16x64xf32>
    %53 = arith.truncf %52 : vector<16x64xf32> to vector<16x64xbf16>
    %cst_24 = arith.constant dense<0.000000e+00> : vector<16x64xf32>
    %54 = tpu.matmul %53, %9, %cst_24 {dimension_numbers = #tpu.dot_dimension_numbers<[1], [0], [0], [1], [0, 0, 1, 1], [], []>} : vector<16x64xbf16>, vector<64x64xbf16>, vector<16x64xf32> -> vector<16x64xf32>
    %55 = arith.addf %51, %54 : vector<16x64xf32>
    %56 = math.tanh %55 : vector<16x64xf32>
    %57 = arith.mulf %49, %34 : vector<16x64xf32>
    %cst_25 = arith.constant 1.000000e+00 : f32
    %58 = vector.broadcast %cst_25 : f32 to vector<16x64xf32>
    %59 = arith.subf %58, %49 : vector<16x64xf32>
    %60 = arith.mulf %59, %56 : vector<16x64xf32>
    %61 = arith.addf %57, %60 : vector<16x64xf32>
    %c1 = arith.constant 1 : index
    %62 = memref.load %arg6[%c1] : memref<16xf32, #tpu.memory_space<smem>>
    %63 = vector.broadcast %62 : f32 to vector<16x64xf32>
    %64 = arith.mulf %63, %61 : vector<16x64xf32>
    %65 = arith.addf %38, %64 : vector<16x64xf32>
    %c32 = arith.constant 32 : index
    %c0_26 = arith.constant 0 : index
    %66 = vector.load %arg10[%c32, %c0_26] : memref<256x192xf32, #tpu.memory_space<vmem>>, vector<16x192xf32>
    %67 = arith.truncf %61 : vector<16x64xf32> to vector<16x64xbf16>
    %cst_27 = arith.constant dense<0.000000e+00> : vector<16x128xf32>
    %68 = tpu.matmul %67, %8, %cst_27 {dimension_numbers = #tpu.dot_dimension_numbers<[1], [0], [0], [1], [0, 0, 1, 1], [], []>} : vector<16x64xbf16>, vector<64x128xbf16>, vector<16x128xf32> -> vector<16x128xf32>
    %69 = vector.extract_strided_slice %66 {offsets = [0, 0], sizes = [16, 128], strides = [1, 1]} : vector<16x192xf32> to vector<16x128xf32>
    %70 = arith.addf %69, %68 : vector<16x128xf32>
    %71 = arith.negf %70 : vector<16x128xf32>
    %72 = math.exp %71 : vector<16x128xf32>
    %cst_28 = arith.constant 1.000000e+00 : f32
    %73 = vector.broadcast %cst_28 : f32 to vector<16x128xf32>
    %74 = arith.addf %73, %72 : vector<16x128xf32>
    %75 = arith.divf %73, %74 : vector<16x128xf32>
    %76 = vector.extract_strided_slice %75 {offsets = [0, 0], sizes = [16, 64], strides = [1, 1]} : vector<16x128xf32> to vector<16x64xf32>
    %77 = vector.extract_strided_slice %75 {offsets = [0, 64], sizes = [16, 64], strides = [1, 1]} : vector<16x128xf32> to vector<16x64xf32>
    %78 = vector.extract_strided_slice %66 {offsets = [0, 128], sizes = [16, 64], strides = [1, 1]} : vector<16x192xf32> to vector<16x64xf32>
    %79 = arith.mulf %61, %77 : vector<16x64xf32>
    %80 = arith.truncf %79 : vector<16x64xf32> to vector<16x64xbf16>
    %cst_29 = arith.constant dense<0.000000e+00> : vector<16x64xf32>
    %81 = tpu.matmul %80, %9, %cst_29 {dimension_numbers = #tpu.dot_dimension_numbers<[1], [0], [0], [1], [0, 0, 1, 1], [], []>} : vector<16x64xbf16>, vector<64x64xbf16>, vector<16x64xf32> -> vector<16x64xf32>
    %82 = arith.addf %78, %81 : vector<16x64xf32>
    %83 = math.tanh %82 : vector<16x64xf32>
    %84 = arith.mulf %76, %61 : vector<16x64xf32>
    %cst_30 = arith.constant 1.000000e+00 : f32
    %85 = vector.broadcast %cst_30 : f32 to vector<16x64xf32>
    %86 = arith.subf %85, %76 : vector<16x64xf32>
    %87 = arith.mulf %86, %83 : vector<16x64xf32>
    %88 = arith.addf %84, %87 : vector<16x64xf32>
    %c2 = arith.constant 2 : index
    %89 = memref.load %arg6[%c2] : memref<16xf32, #tpu.memory_space<smem>>
    %90 = vector.broadcast %89 : f32 to vector<16x64xf32>
    %91 = arith.mulf %90, %88 : vector<16x64xf32>
    %92 = arith.addf %65, %91 : vector<16x64xf32>
    %c48 = arith.constant 48 : index
    %c0_31 = arith.constant 0 : index
    %93 = vector.load %arg10[%c48, %c0_31] : memref<256x192xf32, #tpu.memory_space<vmem>>, vector<16x192xf32>
    %94 = arith.truncf %88 : vector<16x64xf32> to vector<16x64xbf16>
    %cst_32 = arith.constant dense<0.000000e+00> : vector<16x128xf32>
    %95 = tpu.matmul %94, %8, %cst_32 {dimension_numbers = #tpu.dot_dimension_numbers<[1], [0], [0], [1], [0, 0, 1, 1], [], []>} : vector<16x64xbf16>, vector<64x128xbf16>, vector<16x128xf32> -> vector<16x128xf32>
    %96 = vector.extract_strided_slice %93 {offsets = [0, 0], sizes = [16, 128], strides = [1, 1]} : vector<16x192xf32> to vector<16x128xf32>
    %97 = arith.addf %96, %95 : vector<16x128xf32>
    %98 = arith.negf %97 : vector<16x128xf32>
    %99 = math.exp %98 : vector<16x128xf32>
    %cst_33 = arith.constant 1.000000e+00 : f32
    %100 = vector.broadcast %cst_33 : f32 to vector<16x128xf32>
    %101 = arith.addf %100, %99 : vector<16x128xf32>
    %102 = arith.divf %100, %101 : vector<16x128xf32>
    %103 = vector.extract_strided_slice %102 {offsets = [0, 0], sizes = [16, 64], strides = [1, 1]} : vector<16x128xf32> to vector<16x64xf32>
    %104 = vector.extract_strided_slice %102 {offsets = [0, 64], sizes = [16, 64], strides = [1, 1]} : vector<16x128xf32> to vector<16x64xf32>
    %105 = vector.extract_strided_slice %93 {offsets = [0, 128], sizes = [16, 64], strides = [1, 1]} : vector<16x192xf32> to vector<16x64xf32>
    %106 = arith.mulf %88, %104 : vector<16x64xf32>
    %107 = arith.truncf %106 : vector<16x64xf32> to vector<16x64xbf16>
    %cst_34 = arith.constant dense<0.000000e+00> : vector<16x64xf32>
    %108 = tpu.matmul %107, %9, %cst_34 {dimension_numbers = #tpu.dot_dimension_numbers<[1], [0], [0], [1], [0, 0, 1, 1], [], []>} : vector<16x64xbf16>, vector<64x64xbf16>, vector<16x64xf32> -> vector<16x64xf32>
    %109 = arith.addf %105, %108 : vector<16x64xf32>
    %110 = math.tanh %109 : vector<16x64xf32>
    %111 = arith.mulf %103, %88 : vector<16x64xf32>
    %cst_35 = arith.constant 1.000000e+00 : f32
    %112 = vector.broadcast %cst_35 : f32 to vector<16x64xf32>
    %113 = arith.subf %112, %103 : vector<16x64xf32>
    %114 = arith.mulf %113, %110 : vector<16x64xf32>
    %115 = arith.addf %111, %114 : vector<16x64xf32>
    %c3 = arith.constant 3 : index
    %116 = memref.load %arg6[%c3] : memref<16xf32, #tpu.memory_space<smem>>
    %117 = vector.broadcast %116 : f32 to vector<16x64xf32>
    %118 = arith.mulf %117, %115 : vector<16x64xf32>
    %119 = arith.addf %92, %118 : vector<16x64xf32>
    %c64 = arith.constant 64 : index
    %c0_36 = arith.constant 0 : index
    %120 = vector.load %arg10[%c64, %c0_36] : memref<256x192xf32, #tpu.memory_space<vmem>>, vector<16x192xf32>
    %121 = arith.truncf %115 : vector<16x64xf32> to vector<16x64xbf16>
    %cst_37 = arith.constant dense<0.000000e+00> : vector<16x128xf32>
    %122 = tpu.matmul %121, %8, %cst_37 {dimension_numbers = #tpu.dot_dimension_numbers<[1], [0], [0], [1], [0, 0, 1, 1], [], []>} : vector<16x64xbf16>, vector<64x128xbf16>, vector<16x128xf32> -> vector<16x128xf32>
    %123 = vector.extract_strided_slice %120 {offsets = [0, 0], sizes = [16, 128], strides = [1, 1]} : vector<16x192xf32> to vector<16x128xf32>
    %124 = arith.addf %123, %122 : vector<16x128xf32>
    %125 = arith.negf %124 : vector<16x128xf32>
    %126 = math.exp %125 : vector<16x128xf32>
    %cst_38 = arith.constant 1.000000e+00 : f32
    %127 = vector.broadcast %cst_38 : f32 to vector<16x128xf32>
    %128 = arith.addf %127, %126 : vector<16x128xf32>
    %129 = arith.divf %127, %128 : vector<16x128xf32>
    %130 = vector.extract_strided_slice %129 {offsets = [0, 0], sizes = [16, 64], strides = [1, 1]} : vector<16x128xf32> to vector<16x64xf32>
    %131 = vector.extract_strided_slice %129 {offsets = [0, 64], sizes = [16, 64], strides = [1, 1]} : vector<16x128xf32> to vector<16x64xf32>
    %132 = vector.extract_strided_slice %120 {offsets = [0, 128], sizes = [16, 64], strides = [1, 1]} : vector<16x192xf32> to vector<16x64xf32>
    %133 = arith.mulf %115, %131 : vector<16x64xf32>
    %134 = arith.truncf %133 : vector<16x64xf32> to vector<16x64xbf16>
    %cst_39 = arith.constant dense<0.000000e+00> : vector<16x64xf32>
    %135 = tpu.matmul %134, %9, %cst_39 {dimension_numbers = #tpu.dot_dimension_numbers<[1], [0], [0], [1], [0, 0, 1, 1], [], []>} : vector<16x64xbf16>, vector<64x64xbf16>, vector<16x64xf32> -> vector<16x64xf32>
    %136 = arith.addf %132, %135 : vector<16x64xf32>
    %137 = math.tanh %136 : vector<16x64xf32>
    %138 = arith.mulf %130, %115 : vector<16x64xf32>
    %cst_40 = arith.constant 1.000000e+00 : f32
    %139 = vector.broadcast %cst_40 : f32 to vector<16x64xf32>
    %140 = arith.subf %139, %130 : vector<16x64xf32>
    %141 = arith.mulf %140, %137 : vector<16x64xf32>
    %142 = arith.addf %138, %141 : vector<16x64xf32>
    %c4 = arith.constant 4 : index
    %143 = memref.load %arg6[%c4] : memref<16xf32, #tpu.memory_space<smem>>
    %144 = vector.broadcast %143 : f32 to vector<16x64xf32>
    %145 = arith.mulf %144, %142 : vector<16x64xf32>
    %146 = arith.addf %119, %145 : vector<16x64xf32>
    %c80 = arith.constant 80 : index
    %c0_41 = arith.constant 0 : index
    %147 = vector.load %arg10[%c80, %c0_41] : memref<256x192xf32, #tpu.memory_space<vmem>>, vector<16x192xf32>
    %148 = arith.truncf %142 : vector<16x64xf32> to vector<16x64xbf16>
    %cst_42 = arith.constant dense<0.000000e+00> : vector<16x128xf32>
    %149 = tpu.matmul %148, %8, %cst_42 {dimension_numbers = #tpu.dot_dimension_numbers<[1], [0], [0], [1], [0, 0, 1, 1], [], []>} : vector<16x64xbf16>, vector<64x128xbf16>, vector<16x128xf32> -> vector<16x128xf32>
    %150 = vector.extract_strided_slice %147 {offsets = [0, 0], sizes = [16, 128], strides = [1, 1]} : vector<16x192xf32> to vector<16x128xf32>
    %151 = arith.addf %150, %149 : vector<16x128xf32>
    %152 = arith.negf %151 : vector<16x128xf32>
    %153 = math.exp %152 : vector<16x128xf32>
    %cst_43 = arith.constant 1.000000e+00 : f32
    %154 = vector.broadcast %cst_43 : f32 to vector<16x128xf32>
    %155 = arith.addf %154, %153 : vector<16x128xf32>
    %156 = arith.divf %154, %155 : vector<16x128xf32>
    %157 = vector.extract_strided_slice %156 {offsets = [0, 0], sizes = [16, 64], strides = [1, 1]} : vector<16x128xf32> to vector<16x64xf32>
    %158 = vector.extract_strided_slice %156 {offsets = [0, 64], sizes = [16, 64], strides = [1, 1]} : vector<16x128xf32> to vector<16x64xf32>
    %159 = vector.extract_strided_slice %147 {offsets = [0, 128], sizes = [16, 64], strides = [1, 1]} : vector<16x192xf32> to vector<16x64xf32>
    %160 = arith.mulf %142, %158 : vector<16x64xf32>
    %161 = arith.truncf %160 : vector<16x64xf32> to vector<16x64xbf16>
    %cst_44 = arith.constant dense<0.000000e+00> : vector<16x64xf32>
    %162 = tpu.matmul %161, %9, %cst_44 {dimension_numbers = #tpu.dot_dimension_numbers<[1], [0], [0], [1], [0, 0, 1, 1], [], []>} : vector<16x64xbf16>, vector<64x64xbf16>, vector<16x64xf32> -> vector<16x64xf32>
    %163 = arith.addf %159, %162 : vector<16x64xf32>
    %164 = math.tanh %163 : vector<16x64xf32>
    %165 = arith.mulf %157, %142 : vector<16x64xf32>
    %cst_45 = arith.constant 1.000000e+00 : f32
    %166 = vector.broadcast %cst_45 : f32 to vector<16x64xf32>
    %167 = arith.subf %166, %157 : vector<16x64xf32>
    %168 = arith.mulf %167, %164 : vector<16x64xf32>
    %169 = arith.addf %165, %168 : vector<16x64xf32>
    %c5 = arith.constant 5 : index
    %170 = memref.load %arg6[%c5] : memref<16xf32, #tpu.memory_space<smem>>
    %171 = vector.broadcast %170 : f32 to vector<16x64xf32>
    %172 = arith.mulf %171, %169 : vector<16x64xf32>
    %173 = arith.addf %146, %172 : vector<16x64xf32>
    %c96 = arith.constant 96 : index
    %c0_46 = arith.constant 0 : index
    %174 = vector.load %arg10[%c96, %c0_46] : memref<256x192xf32, #tpu.memory_space<vmem>>, vector<16x192xf32>
    %175 = arith.truncf %169 : vector<16x64xf32> to vector<16x64xbf16>
    %cst_47 = arith.constant dense<0.000000e+00> : vector<16x128xf32>
    %176 = tpu.matmul %175, %8, %cst_47 {dimension_numbers = #tpu.dot_dimension_numbers<[1], [0], [0], [1], [0, 0, 1, 1], [], []>} : vector<16x64xbf16>, vector<64x128xbf16>, vector<16x128xf32> -> vector<16x128xf32>
    %177 = vector.extract_strided_slice %174 {offsets = [0, 0], sizes = [16, 128], strides = [1, 1]} : vector<16x192xf32> to vector<16x128xf32>
    %178 = arith.addf %177, %176 : vector<16x128xf32>
    %179 = arith.negf %178 : vector<16x128xf32>
    %180 = math.exp %179 : vector<16x128xf32>
    %cst_48 = arith.constant 1.000000e+00 : f32
    %181 = vector.broadcast %cst_48 : f32 to vector<16x128xf32>
    %182 = arith.addf %181, %180 : vector<16x128xf32>
    %183 = arith.divf %181, %182 : vector<16x128xf32>
    %184 = vector.extract_strided_slice %183 {offsets = [0, 0], sizes = [16, 64], strides = [1, 1]} : vector<16x128xf32> to vector<16x64xf32>
    %185 = vector.extract_strided_slice %183 {offsets = [0, 64], sizes = [16, 64], strides = [1, 1]} : vector<16x128xf32> to vector<16x64xf32>
    %186 = vector.extract_strided_slice %174 {offsets = [0, 128], sizes = [16, 64], strides = [1, 1]} : vector<16x192xf32> to vector<16x64xf32>
    %187 = arith.mulf %169, %185 : vector<16x64xf32>
    %188 = arith.truncf %187 : vector<16x64xf32> to vector<16x64xbf16>
    %cst_49 = arith.constant dense<0.000000e+00> : vector<16x64xf32>
    %189 = tpu.matmul %188, %9, %cst_49 {dimension_numbers = #tpu.dot_dimension_numbers<[1], [0], [0], [1], [0, 0, 1, 1], [], []>} : vector<16x64xbf16>, vector<64x64xbf16>, vector<16x64xf32> -> vector<16x64xf32>
    %190 = arith.addf %186, %189 : vector<16x64xf32>
    %191 = math.tanh %190 : vector<16x64xf32>
    %192 = arith.mulf %184, %169 : vector<16x64xf32>
    %cst_50 = arith.constant 1.000000e+00 : f32
    %193 = vector.broadcast %cst_50 : f32 to vector<16x64xf32>
    %194 = arith.subf %193, %184 : vector<16x64xf32>
    %195 = arith.mulf %194, %191 : vector<16x64xf32>
    %196 = arith.addf %192, %195 : vector<16x64xf32>
    %c6 = arith.constant 6 : index
    %197 = memref.load %arg6[%c6] : memref<16xf32, #tpu.memory_space<smem>>
    %198 = vector.broadcast %197 : f32 to vector<16x64xf32>
    %199 = arith.mulf %198, %196 : vector<16x64xf32>
    %200 = arith.addf %173, %199 : vector<16x64xf32>
    %c112 = arith.constant 112 : index
    %c0_51 = arith.constant 0 : index
    %201 = vector.load %arg10[%c112, %c0_51] : memref<256x192xf32, #tpu.memory_space<vmem>>, vector<16x192xf32>
    %202 = arith.truncf %196 : vector<16x64xf32> to vector<16x64xbf16>
    %cst_52 = arith.constant dense<0.000000e+00> : vector<16x128xf32>
    %203 = tpu.matmul %202, %8, %cst_52 {dimension_numbers = #tpu.dot_dimension_numbers<[1], [0], [0], [1], [0, 0, 1, 1], [], []>} : vector<16x64xbf16>, vector<64x128xbf16>, vector<16x128xf32> -> vector<16x128xf32>
    %204 = vector.extract_strided_slice %201 {offsets = [0, 0], sizes = [16, 128], strides = [1, 1]} : vector<16x192xf32> to vector<16x128xf32>
    %205 = arith.addf %204, %203 : vector<16x128xf32>
    %206 = arith.negf %205 : vector<16x128xf32>
    %207 = math.exp %206 : vector<16x128xf32>
    %cst_53 = arith.constant 1.000000e+00 : f32
    %208 = vector.broadcast %cst_53 : f32 to vector<16x128xf32>
    %209 = arith.addf %208, %207 : vector<16x128xf32>
    %210 = arith.divf %208, %209 : vector<16x128xf32>
    %211 = vector.extract_strided_slice %210 {offsets = [0, 0], sizes = [16, 64], strides = [1, 1]} : vector<16x128xf32> to vector<16x64xf32>
    %212 = vector.extract_strided_slice %210 {offsets = [0, 64], sizes = [16, 64], strides = [1, 1]} : vector<16x128xf32> to vector<16x64xf32>
    %213 = vector.extract_strided_slice %201 {offsets = [0, 128], sizes = [16, 64], strides = [1, 1]} : vector<16x192xf32> to vector<16x64xf32>
    %214 = arith.mulf %196, %212 : vector<16x64xf32>
    %215 = arith.truncf %214 : vector<16x64xf32> to vector<16x64xbf16>
    %cst_54 = arith.constant dense<0.000000e+00> : vector<16x64xf32>
    %216 = tpu.matmul %215, %9, %cst_54 {dimension_numbers = #tpu.dot_dimension_numbers<[1], [0], [0], [1], [0, 0, 1, 1], [], []>} : vector<16x64xbf16>, vector<64x64xbf16>, vector<16x64xf32> -> vector<16x64xf32>
    %217 = arith.addf %213, %216 : vector<16x64xf32>
    %218 = math.tanh %217 : vector<16x64xf32>
    %219 = arith.mulf %211, %196 : vector<16x64xf32>
    %cst_55 = arith.constant 1.000000e+00 : f32
    %220 = vector.broadcast %cst_55 : f32 to vector<16x64xf32>
    %221 = arith.subf %220, %211 : vector<16x64xf32>
    %222 = arith.mulf %221, %218 : vector<16x64xf32>
    %223 = arith.addf %219, %222 : vector<16x64xf32>
    %c7 = arith.constant 7 : index
    %224 = memref.load %arg6[%c7] : memref<16xf32, #tpu.memory_space<smem>>
    %225 = vector.broadcast %224 : f32 to vector<16x64xf32>
    %226 = arith.mulf %225, %223 : vector<16x64xf32>
    %227 = arith.addf %200, %226 : vector<16x64xf32>
    %c128 = arith.constant 128 : index
    %c0_56 = arith.constant 0 : index
    %228 = vector.load %arg10[%c128, %c0_56] : memref<256x192xf32, #tpu.memory_space<vmem>>, vector<16x192xf32>
    %229 = arith.truncf %223 : vector<16x64xf32> to vector<16x64xbf16>
    %cst_57 = arith.constant dense<0.000000e+00> : vector<16x128xf32>
    %230 = tpu.matmul %229, %8, %cst_57 {dimension_numbers = #tpu.dot_dimension_numbers<[1], [0], [0], [1], [0, 0, 1, 1], [], []>} : vector<16x64xbf16>, vector<64x128xbf16>, vector<16x128xf32> -> vector<16x128xf32>
    %231 = vector.extract_strided_slice %228 {offsets = [0, 0], sizes = [16, 128], strides = [1, 1]} : vector<16x192xf32> to vector<16x128xf32>
    %232 = arith.addf %231, %230 : vector<16x128xf32>
    %233 = arith.negf %232 : vector<16x128xf32>
    %234 = math.exp %233 : vector<16x128xf32>
    %cst_58 = arith.constant 1.000000e+00 : f32
    %235 = vector.broadcast %cst_58 : f32 to vector<16x128xf32>
    %236 = arith.addf %235, %234 : vector<16x128xf32>
    %237 = arith.divf %235, %236 : vector<16x128xf32>
    %238 = vector.extract_strided_slice %237 {offsets = [0, 0], sizes = [16, 64], strides = [1, 1]} : vector<16x128xf32> to vector<16x64xf32>
    %239 = vector.extract_strided_slice %237 {offsets = [0, 64], sizes = [16, 64], strides = [1, 1]} : vector<16x128xf32> to vector<16x64xf32>
    %240 = vector.extract_strided_slice %228 {offsets = [0, 128], sizes = [16, 64], strides = [1, 1]} : vector<16x192xf32> to vector<16x64xf32>
    %241 = arith.mulf %223, %239 : vector<16x64xf32>
    %242 = arith.truncf %241 : vector<16x64xf32> to vector<16x64xbf16>
    %cst_59 = arith.constant dense<0.000000e+00> : vector<16x64xf32>
    %243 = tpu.matmul %242, %9, %cst_59 {dimension_numbers = #tpu.dot_dimension_numbers<[1], [0], [0], [1], [0, 0, 1, 1], [], []>} : vector<16x64xbf16>, vector<64x64xbf16>, vector<16x64xf32> -> vector<16x64xf32>
    %244 = arith.addf %240, %243 : vector<16x64xf32>
    %245 = math.tanh %244 : vector<16x64xf32>
    %246 = arith.mulf %238, %223 : vector<16x64xf32>
    %cst_60 = arith.constant 1.000000e+00 : f32
    %247 = vector.broadcast %cst_60 : f32 to vector<16x64xf32>
    %248 = arith.subf %247, %238 : vector<16x64xf32>
    %249 = arith.mulf %248, %245 : vector<16x64xf32>
    %250 = arith.addf %246, %249 : vector<16x64xf32>
    %c8 = arith.constant 8 : index
    %251 = memref.load %arg6[%c8] : memref<16xf32, #tpu.memory_space<smem>>
    %252 = vector.broadcast %251 : f32 to vector<16x64xf32>
    %253 = arith.mulf %252, %250 : vector<16x64xf32>
    %254 = arith.addf %227, %253 : vector<16x64xf32>
    %c144 = arith.constant 144 : index
    %c0_61 = arith.constant 0 : index
    %255 = vector.load %arg10[%c144, %c0_61] : memref<256x192xf32, #tpu.memory_space<vmem>>, vector<16x192xf32>
    %256 = arith.truncf %250 : vector<16x64xf32> to vector<16x64xbf16>
    %cst_62 = arith.constant dense<0.000000e+00> : vector<16x128xf32>
    %257 = tpu.matmul %256, %8, %cst_62 {dimension_numbers = #tpu.dot_dimension_numbers<[1], [0], [0], [1], [0, 0, 1, 1], [], []>} : vector<16x64xbf16>, vector<64x128xbf16>, vector<16x128xf32> -> vector<16x128xf32>
    %258 = vector.extract_strided_slice %255 {offsets = [0, 0], sizes = [16, 128], strides = [1, 1]} : vector<16x192xf32> to vector<16x128xf32>
    %259 = arith.addf %258, %257 : vector<16x128xf32>
    %260 = arith.negf %259 : vector<16x128xf32>
    %261 = math.exp %260 : vector<16x128xf32>
    %cst_63 = arith.constant 1.000000e+00 : f32
    %262 = vector.broadcast %cst_63 : f32 to vector<16x128xf32>
    %263 = arith.addf %262, %261 : vector<16x128xf32>
    %264 = arith.divf %262, %263 : vector<16x128xf32>
    %265 = vector.extract_strided_slice %264 {offsets = [0, 0], sizes = [16, 64], strides = [1, 1]} : vector<16x128xf32> to vector<16x64xf32>
    %266 = vector.extract_strided_slice %264 {offsets = [0, 64], sizes = [16, 64], strides = [1, 1]} : vector<16x128xf32> to vector<16x64xf32>
    %267 = vector.extract_strided_slice %255 {offsets = [0, 128], sizes = [16, 64], strides = [1, 1]} : vector<16x192xf32> to vector<16x64xf32>
    %268 = arith.mulf %250, %266 : vector<16x64xf32>
    %269 = arith.truncf %268 : vector<16x64xf32> to vector<16x64xbf16>
    %cst_64 = arith.constant dense<0.000000e+00> : vector<16x64xf32>
    %270 = tpu.matmul %269, %9, %cst_64 {dimension_numbers = #tpu.dot_dimension_numbers<[1], [0], [0], [1], [0, 0, 1, 1], [], []>} : vector<16x64xbf16>, vector<64x64xbf16>, vector<16x64xf32> -> vector<16x64xf32>
    %271 = arith.addf %267, %270 : vector<16x64xf32>
    %272 = math.tanh %271 : vector<16x64xf32>
    %273 = arith.mulf %265, %250 : vector<16x64xf32>
    %cst_65 = arith.constant 1.000000e+00 : f32
    %274 = vector.broadcast %cst_65 : f32 to vector<16x64xf32>
    %275 = arith.subf %274, %265 : vector<16x64xf32>
    %276 = arith.mulf %275, %272 : vector<16x64xf32>
    %277 = arith.addf %273, %276 : vector<16x64xf32>
    %c9 = arith.constant 9 : index
    %278 = memref.load %arg6[%c9] : memref<16xf32, #tpu.memory_space<smem>>
    %279 = vector.broadcast %278 : f32 to vector<16x64xf32>
    %280 = arith.mulf %279, %277 : vector<16x64xf32>
    %281 = arith.addf %254, %280 : vector<16x64xf32>
    %c160 = arith.constant 160 : index
    %c0_66 = arith.constant 0 : index
    %282 = vector.load %arg10[%c160, %c0_66] : memref<256x192xf32, #tpu.memory_space<vmem>>, vector<16x192xf32>
    %283 = arith.truncf %277 : vector<16x64xf32> to vector<16x64xbf16>
    %cst_67 = arith.constant dense<0.000000e+00> : vector<16x128xf32>
    %284 = tpu.matmul %283, %8, %cst_67 {dimension_numbers = #tpu.dot_dimension_numbers<[1], [0], [0], [1], [0, 0, 1, 1], [], []>} : vector<16x64xbf16>, vector<64x128xbf16>, vector<16x128xf32> -> vector<16x128xf32>
    %285 = vector.extract_strided_slice %282 {offsets = [0, 0], sizes = [16, 128], strides = [1, 1]} : vector<16x192xf32> to vector<16x128xf32>
    %286 = arith.addf %285, %284 : vector<16x128xf32>
    %287 = arith.negf %286 : vector<16x128xf32>
    %288 = math.exp %287 : vector<16x128xf32>
    %cst_68 = arith.constant 1.000000e+00 : f32
    %289 = vector.broadcast %cst_68 : f32 to vector<16x128xf32>
    %290 = arith.addf %289, %288 : vector<16x128xf32>
    %291 = arith.divf %289, %290 : vector<16x128xf32>
    %292 = vector.extract_strided_slice %291 {offsets = [0, 0], sizes = [16, 64], strides = [1, 1]} : vector<16x128xf32> to vector<16x64xf32>
    %293 = vector.extract_strided_slice %291 {offsets = [0, 64], sizes = [16, 64], strides = [1, 1]} : vector<16x128xf32> to vector<16x64xf32>
    %294 = vector.extract_strided_slice %282 {offsets = [0, 128], sizes = [16, 64], strides = [1, 1]} : vector<16x192xf32> to vector<16x64xf32>
    %295 = arith.mulf %277, %293 : vector<16x64xf32>
    %296 = arith.truncf %295 : vector<16x64xf32> to vector<16x64xbf16>
    %cst_69 = arith.constant dense<0.000000e+00> : vector<16x64xf32>
    %297 = tpu.matmul %296, %9, %cst_69 {dimension_numbers = #tpu.dot_dimension_numbers<[1], [0], [0], [1], [0, 0, 1, 1], [], []>} : vector<16x64xbf16>, vector<64x64xbf16>, vector<16x64xf32> -> vector<16x64xf32>
    %298 = arith.addf %294, %297 : vector<16x64xf32>
    %299 = math.tanh %298 : vector<16x64xf32>
    %300 = arith.mulf %292, %277 : vector<16x64xf32>
    %cst_70 = arith.constant 1.000000e+00 : f32
    %301 = vector.broadcast %cst_70 : f32 to vector<16x64xf32>
    %302 = arith.subf %301, %292 : vector<16x64xf32>
    %303 = arith.mulf %302, %299 : vector<16x64xf32>
    %304 = arith.addf %300, %303 : vector<16x64xf32>
    %c10 = arith.constant 10 : index
    %305 = memref.load %arg6[%c10] : memref<16xf32, #tpu.memory_space<smem>>
    %306 = vector.broadcast %305 : f32 to vector<16x64xf32>
    %307 = arith.mulf %306, %304 : vector<16x64xf32>
    %308 = arith.addf %281, %307 : vector<16x64xf32>
    %c176 = arith.constant 176 : index
    %c0_71 = arith.constant 0 : index
    %309 = vector.load %arg10[%c176, %c0_71] : memref<256x192xf32, #tpu.memory_space<vmem>>, vector<16x192xf32>
    %310 = arith.truncf %304 : vector<16x64xf32> to vector<16x64xbf16>
    %cst_72 = arith.constant dense<0.000000e+00> : vector<16x128xf32>
    %311 = tpu.matmul %310, %8, %cst_72 {dimension_numbers = #tpu.dot_dimension_numbers<[1], [0], [0], [1], [0, 0, 1, 1], [], []>} : vector<16x64xbf16>, vector<64x128xbf16>, vector<16x128xf32> -> vector<16x128xf32>
    %312 = vector.extract_strided_slice %309 {offsets = [0, 0], sizes = [16, 128], strides = [1, 1]} : vector<16x192xf32> to vector<16x128xf32>
    %313 = arith.addf %312, %311 : vector<16x128xf32>
    %314 = arith.negf %313 : vector<16x128xf32>
    %315 = math.exp %314 : vector<16x128xf32>
    %cst_73 = arith.constant 1.000000e+00 : f32
    %316 = vector.broadcast %cst_73 : f32 to vector<16x128xf32>
    %317 = arith.addf %316, %315 : vector<16x128xf32>
    %318 = arith.divf %316, %317 : vector<16x128xf32>
    %319 = vector.extract_strided_slice %318 {offsets = [0, 0], sizes = [16, 64], strides = [1, 1]} : vector<16x128xf32> to vector<16x64xf32>
    %320 = vector.extract_strided_slice %318 {offsets = [0, 64], sizes = [16, 64], strides = [1, 1]} : vector<16x128xf32> to vector<16x64xf32>
    %321 = vector.extract_strided_slice %309 {offsets = [0, 128], sizes = [16, 64], strides = [1, 1]} : vector<16x192xf32> to vector<16x64xf32>
    %322 = arith.mulf %304, %320 : vector<16x64xf32>
    %323 = arith.truncf %322 : vector<16x64xf32> to vector<16x64xbf16>
    %cst_74 = arith.constant dense<0.000000e+00> : vector<16x64xf32>
    %324 = tpu.matmul %323, %9, %cst_74 {dimension_numbers = #tpu.dot_dimension_numbers<[1], [0], [0], [1], [0, 0, 1, 1], [], []>} : vector<16x64xbf16>, vector<64x64xbf16>, vector<16x64xf32> -> vector<16x64xf32>
    %325 = arith.addf %321, %324 : vector<16x64xf32>
    %326 = math.tanh %325 : vector<16x64xf32>
    %327 = arith.mulf %319, %304 : vector<16x64xf32>
    %cst_75 = arith.constant 1.000000e+00 : f32
    %328 = vector.broadcast %cst_75 : f32 to vector<16x64xf32>
    %329 = arith.subf %328, %319 : vector<16x64xf32>
    %330 = arith.mulf %329, %326 : vector<16x64xf32>
    %331 = arith.addf %327, %330 : vector<16x64xf32>
    %c11 = arith.constant 11 : index
    %332 = memref.load %arg6[%c11] : memref<16xf32, #tpu.memory_space<smem>>
    %333 = vector.broadcast %332 : f32 to vector<16x64xf32>
    %334 = arith.mulf %333, %331 : vector<16x64xf32>
    %335 = arith.addf %308, %334 : vector<16x64xf32>
    %c192 = arith.constant 192 : index
    %c0_76 = arith.constant 0 : index
    %336 = vector.load %arg10[%c192, %c0_76] : memref<256x192xf32, #tpu.memory_space<vmem>>, vector<16x192xf32>
    %337 = arith.truncf %331 : vector<16x64xf32> to vector<16x64xbf16>
    %cst_77 = arith.constant dense<0.000000e+00> : vector<16x128xf32>
    %338 = tpu.matmul %337, %8, %cst_77 {dimension_numbers = #tpu.dot_dimension_numbers<[1], [0], [0], [1], [0, 0, 1, 1], [], []>} : vector<16x64xbf16>, vector<64x128xbf16>, vector<16x128xf32> -> vector<16x128xf32>
    %339 = vector.extract_strided_slice %336 {offsets = [0, 0], sizes = [16, 128], strides = [1, 1]} : vector<16x192xf32> to vector<16x128xf32>
    %340 = arith.addf %339, %338 : vector<16x128xf32>
    %341 = arith.negf %340 : vector<16x128xf32>
    %342 = math.exp %341 : vector<16x128xf32>
    %cst_78 = arith.constant 1.000000e+00 : f32
    %343 = vector.broadcast %cst_78 : f32 to vector<16x128xf32>
    %344 = arith.addf %343, %342 : vector<16x128xf32>
    %345 = arith.divf %343, %344 : vector<16x128xf32>
    %346 = vector.extract_strided_slice %345 {offsets = [0, 0], sizes = [16, 64], strides = [1, 1]} : vector<16x128xf32> to vector<16x64xf32>
    %347 = vector.extract_strided_slice %345 {offsets = [0, 64], sizes = [16, 64], strides = [1, 1]} : vector<16x128xf32> to vector<16x64xf32>
    %348 = vector.extract_strided_slice %336 {offsets = [0, 128], sizes = [16, 64], strides = [1, 1]} : vector<16x192xf32> to vector<16x64xf32>
    %349 = arith.mulf %331, %347 : vector<16x64xf32>
    %350 = arith.truncf %349 : vector<16x64xf32> to vector<16x64xbf16>
    %cst_79 = arith.constant dense<0.000000e+00> : vector<16x64xf32>
    %351 = tpu.matmul %350, %9, %cst_79 {dimension_numbers = #tpu.dot_dimension_numbers<[1], [0], [0], [1], [0, 0, 1, 1], [], []>} : vector<16x64xbf16>, vector<64x64xbf16>, vector<16x64xf32> -> vector<16x64xf32>
    %352 = arith.addf %348, %351 : vector<16x64xf32>
    %353 = math.tanh %352 : vector<16x64xf32>
    %354 = arith.mulf %346, %331 : vector<16x64xf32>
    %cst_80 = arith.constant 1.000000e+00 : f32
    %355 = vector.broadcast %cst_80 : f32 to vector<16x64xf32>
    %356 = arith.subf %355, %346 : vector<16x64xf32>
    %357 = arith.mulf %356, %353 : vector<16x64xf32>
    %358 = arith.addf %354, %357 : vector<16x64xf32>
    %c12 = arith.constant 12 : index
    %359 = memref.load %arg6[%c12] : memref<16xf32, #tpu.memory_space<smem>>
    %360 = vector.broadcast %359 : f32 to vector<16x64xf32>
    %361 = arith.mulf %360, %358 : vector<16x64xf32>
    %362 = arith.addf %335, %361 : vector<16x64xf32>
    %c208 = arith.constant 208 : index
    %c0_81 = arith.constant 0 : index
    %363 = vector.load %arg10[%c208, %c0_81] : memref<256x192xf32, #tpu.memory_space<vmem>>, vector<16x192xf32>
    %364 = arith.truncf %358 : vector<16x64xf32> to vector<16x64xbf16>
    %cst_82 = arith.constant dense<0.000000e+00> : vector<16x128xf32>
    %365 = tpu.matmul %364, %8, %cst_82 {dimension_numbers = #tpu.dot_dimension_numbers<[1], [0], [0], [1], [0, 0, 1, 1], [], []>} : vector<16x64xbf16>, vector<64x128xbf16>, vector<16x128xf32> -> vector<16x128xf32>
    %366 = vector.extract_strided_slice %363 {offsets = [0, 0], sizes = [16, 128], strides = [1, 1]} : vector<16x192xf32> to vector<16x128xf32>
    %367 = arith.addf %366, %365 : vector<16x128xf32>
    %368 = arith.negf %367 : vector<16x128xf32>
    %369 = math.exp %368 : vector<16x128xf32>
    %cst_83 = arith.constant 1.000000e+00 : f32
    %370 = vector.broadcast %cst_83 : f32 to vector<16x128xf32>
    %371 = arith.addf %370, %369 : vector<16x128xf32>
    %372 = arith.divf %370, %371 : vector<16x128xf32>
    %373 = vector.extract_strided_slice %372 {offsets = [0, 0], sizes = [16, 64], strides = [1, 1]} : vector<16x128xf32> to vector<16x64xf32>
    %374 = vector.extract_strided_slice %372 {offsets = [0, 64], sizes = [16, 64], strides = [1, 1]} : vector<16x128xf32> to vector<16x64xf32>
    %375 = vector.extract_strided_slice %363 {offsets = [0, 128], sizes = [16, 64], strides = [1, 1]} : vector<16x192xf32> to vector<16x64xf32>
    %376 = arith.mulf %358, %374 : vector<16x64xf32>
    %377 = arith.truncf %376 : vector<16x64xf32> to vector<16x64xbf16>
    %cst_84 = arith.constant dense<0.000000e+00> : vector<16x64xf32>
    %378 = tpu.matmul %377, %9, %cst_84 {dimension_numbers = #tpu.dot_dimension_numbers<[1], [0], [0], [1], [0, 0, 1, 1], [], []>} : vector<16x64xbf16>, vector<64x64xbf16>, vector<16x64xf32> -> vector<16x64xf32>
    %379 = arith.addf %375, %378 : vector<16x64xf32>
    %380 = math.tanh %379 : vector<16x64xf32>
    %381 = arith.mulf %373, %358 : vector<16x64xf32>
    %cst_85 = arith.constant 1.000000e+00 : f32
    %382 = vector.broadcast %cst_85 : f32 to vector<16x64xf32>
    %383 = arith.subf %382, %373 : vector<16x64xf32>
    %384 = arith.mulf %383, %380 : vector<16x64xf32>
    %385 = arith.addf %381, %384 : vector<16x64xf32>
    %c13 = arith.constant 13 : index
    %386 = memref.load %arg6[%c13] : memref<16xf32, #tpu.memory_space<smem>>
    %387 = vector.broadcast %386 : f32 to vector<16x64xf32>
    %388 = arith.mulf %387, %385 : vector<16x64xf32>
    %389 = arith.addf %362, %388 : vector<16x64xf32>
    %c224 = arith.constant 224 : index
    %c0_86 = arith.constant 0 : index
    %390 = vector.load %arg10[%c224, %c0_86] : memref<256x192xf32, #tpu.memory_space<vmem>>, vector<16x192xf32>
    %391 = arith.truncf %385 : vector<16x64xf32> to vector<16x64xbf16>
    %cst_87 = arith.constant dense<0.000000e+00> : vector<16x128xf32>
    %392 = tpu.matmul %391, %8, %cst_87 {dimension_numbers = #tpu.dot_dimension_numbers<[1], [0], [0], [1], [0, 0, 1, 1], [], []>} : vector<16x64xbf16>, vector<64x128xbf16>, vector<16x128xf32> -> vector<16x128xf32>
    %393 = vector.extract_strided_slice %390 {offsets = [0, 0], sizes = [16, 128], strides = [1, 1]} : vector<16x192xf32> to vector<16x128xf32>
    %394 = arith.addf %393, %392 : vector<16x128xf32>
    %395 = arith.negf %394 : vector<16x128xf32>
    %396 = math.exp %395 : vector<16x128xf32>
    %cst_88 = arith.constant 1.000000e+00 : f32
    %397 = vector.broadcast %cst_88 : f32 to vector<16x128xf32>
    %398 = arith.addf %397, %396 : vector<16x128xf32>
    %399 = arith.divf %397, %398 : vector<16x128xf32>
    %400 = vector.extract_strided_slice %399 {offsets = [0, 0], sizes = [16, 64], strides = [1, 1]} : vector<16x128xf32> to vector<16x64xf32>
    %401 = vector.extract_strided_slice %399 {offsets = [0, 64], sizes = [16, 64], strides = [1, 1]} : vector<16x128xf32> to vector<16x64xf32>
    %402 = vector.extract_strided_slice %390 {offsets = [0, 128], sizes = [16, 64], strides = [1, 1]} : vector<16x192xf32> to vector<16x64xf32>
    %403 = arith.mulf %385, %401 : vector<16x64xf32>
    %404 = arith.truncf %403 : vector<16x64xf32> to vector<16x64xbf16>
    %cst_89 = arith.constant dense<0.000000e+00> : vector<16x64xf32>
    %405 = tpu.matmul %404, %9, %cst_89 {dimension_numbers = #tpu.dot_dimension_numbers<[1], [0], [0], [1], [0, 0, 1, 1], [], []>} : vector<16x64xbf16>, vector<64x64xbf16>, vector<16x64xf32> -> vector<16x64xf32>
    %406 = arith.addf %402, %405 : vector<16x64xf32>
    %407 = math.tanh %406 : vector<16x64xf32>
    %408 = arith.mulf %400, %385 : vector<16x64xf32>
    %cst_90 = arith.constant 1.000000e+00 : f32
    %409 = vector.broadcast %cst_90 : f32 to vector<16x64xf32>
    %410 = arith.subf %409, %400 : vector<16x64xf32>
    %411 = arith.mulf %410, %407 : vector<16x64xf32>
    %412 = arith.addf %408, %411 : vector<16x64xf32>
    %c14 = arith.constant 14 : index
    %413 = memref.load %arg6[%c14] : memref<16xf32, #tpu.memory_space<smem>>
    %414 = vector.broadcast %413 : f32 to vector<16x64xf32>
    %415 = arith.mulf %414, %412 : vector<16x64xf32>
    %416 = arith.addf %389, %415 : vector<16x64xf32>
    %c240 = arith.constant 240 : index
    %c0_91 = arith.constant 0 : index
    %417 = vector.load %arg10[%c240, %c0_91] : memref<256x192xf32, #tpu.memory_space<vmem>>, vector<16x192xf32>
    %418 = arith.truncf %412 : vector<16x64xf32> to vector<16x64xbf16>
    %cst_92 = arith.constant dense<0.000000e+00> : vector<16x128xf32>
    %419 = tpu.matmul %418, %8, %cst_92 {dimension_numbers = #tpu.dot_dimension_numbers<[1], [0], [0], [1], [0, 0, 1, 1], [], []>} : vector<16x64xbf16>, vector<64x128xbf16>, vector<16x128xf32> -> vector<16x128xf32>
    %420 = vector.extract_strided_slice %417 {offsets = [0, 0], sizes = [16, 128], strides = [1, 1]} : vector<16x192xf32> to vector<16x128xf32>
    %421 = arith.addf %420, %419 : vector<16x128xf32>
    %422 = arith.negf %421 : vector<16x128xf32>
    %423 = math.exp %422 : vector<16x128xf32>
    %cst_93 = arith.constant 1.000000e+00 : f32
    %424 = vector.broadcast %cst_93 : f32 to vector<16x128xf32>
    %425 = arith.addf %424, %423 : vector<16x128xf32>
    %426 = arith.divf %424, %425 : vector<16x128xf32>
    %427 = vector.extract_strided_slice %426 {offsets = [0, 0], sizes = [16, 64], strides = [1, 1]} : vector<16x128xf32> to vector<16x64xf32>
    %428 = vector.extract_strided_slice %426 {offsets = [0, 64], sizes = [16, 64], strides = [1, 1]} : vector<16x128xf32> to vector<16x64xf32>
    %429 = vector.extract_strided_slice %417 {offsets = [0, 128], sizes = [16, 64], strides = [1, 1]} : vector<16x192xf32> to vector<16x64xf32>
    %430 = arith.mulf %412, %428 : vector<16x64xf32>
    %431 = arith.truncf %430 : vector<16x64xf32> to vector<16x64xbf16>
    %cst_94 = arith.constant dense<0.000000e+00> : vector<16x64xf32>
    %432 = tpu.matmul %431, %9, %cst_94 {dimension_numbers = #tpu.dot_dimension_numbers<[1], [0], [0], [1], [0, 0, 1, 1], [], []>} : vector<16x64xbf16>, vector<64x64xbf16>, vector<16x64xf32> -> vector<16x64xf32>
    %433 = arith.addf %429, %432 : vector<16x64xf32>
    %434 = math.tanh %433 : vector<16x64xf32>
    %435 = arith.mulf %427, %412 : vector<16x64xf32>
    %cst_95 = arith.constant 1.000000e+00 : f32
    %436 = vector.broadcast %cst_95 : f32 to vector<16x64xf32>
    %437 = arith.subf %436, %427 : vector<16x64xf32>
    %438 = arith.mulf %437, %434 : vector<16x64xf32>
    %439 = arith.addf %435, %438 : vector<16x64xf32>
    %c15 = arith.constant 15 : index
    %440 = memref.load %arg6[%c15] : memref<16xf32, #tpu.memory_space<smem>>
    %441 = vector.broadcast %440 : f32 to vector<16x64xf32>
    %442 = arith.mulf %441, %439 : vector<16x64xf32>
    %443 = arith.addf %416, %442 : vector<16x64xf32>
    %444 = arith.truncf %443 : vector<16x64xf32> to vector<16x64xbf16>
    %c0_96 = arith.constant 0 : index
    %c0_97 = arith.constant 0 : index
    %445 = vector.load %arg7[%c0_96, %c0_97] : memref<64x8xbf16, #tpu.memory_space<vmem>>, vector<64x8xbf16>
    %cst_98 = arith.constant dense<0.000000e+00> : vector<16x8xf32>
    %446 = tpu.matmul %444, %445, %cst_98 {dimension_numbers = #tpu.dot_dimension_numbers<[1], [0], [0], [1], [0, 0, 1, 1], [], []>} : vector<16x64xbf16>, vector<64x8xbf16>, vector<16x8xf32> -> vector<16x8xf32>
    %c0_99 = arith.constant 0 : index
    %c0_100 = arith.constant 0 : index
    %447 = vector.load %arg8[%c0_99, %c0_100] : memref<1x8xf32, #tpu.memory_space<vmem>>, vector<1x8xf32>
    %448 = vector.broadcast %447 : vector<1x8xf32> to vector<16x8xf32>
    %449 = arith.addf %446, %448 : vector<16x8xf32>
    %c0_101 = arith.constant 0 : index
    %c0_102 = arith.constant 0 : index
    %c0_103 = arith.constant 0 : index
    %450 = vector.load %arg9[%c0_101, %c0_102, %c0_103] : memref<1x16x8xf32, #tpu.memory_space<vmem>>, vector<1x16x8xf32>
    %451 = vector.shape_cast %450 : vector<1x16x8xf32> to vector<16x8xf32>
    %452 = vector.shape_cast %449 : vector<16x8xf32> to vector<1x16x8xf32>
    tpu.vector_store %arg9[%c0_101, %c0_102, %c0_103], %452 {strides = array<i32>} : memref<1x16x8xf32, #tpu.memory_space<vmem>>, vector<1x16x8xf32>,
    return
  }
  func.func @transform_0(%arg0: i32) -> (i32, i32, i32) {
    %c0_i32 = arith.constant 0 : i32
    %c0_i32_0 = arith.constant 0 : i32
    %c0_i32_1 = arith.constant 0 : i32
    return %arg0, %c0_i32, %c0_i32_0 : i32, i32, i32
  }
  func.func @transform_1(%arg0: i32) -> (i32, i32) {
    %c0_i32 = arith.constant 0 : i32
    %c0_i32_0 = arith.constant 0 : i32
    %c0_i32_1 = arith.constant 0 : i32
    return %c0_i32, %c0_i32_0 : i32, i32
  }
  func.func @transform_2(%arg0: i32) -> (i32, i32) {
    %c0_i32 = arith.constant 0 : i32
    %c0_i32_0 = arith.constant 0 : i32
    %c0_i32_1 = arith.constant 0 : i32
    return %c0_i32, %c0_i32_0 : i32, i32
  }
  func.func @transform_3(%arg0: i32) -> (i32, i32) {
    %c0_i32 = arith.constant 0 : i32
    %c0_i32_0 = arith.constant 0 : i32
    %c0_i32_1 = arith.constant 0 : i32
    return %c0_i32, %c0_i32_0 : i32, i32
  }
  func.func @transform_4(%arg0: i32) -> (i32, i32) {
    %c0_i32 = arith.constant 0 : i32
    %c0_i32_0 = arith.constant 0 : i32
    %c0_i32_1 = arith.constant 0 : i32
    return %c0_i32, %c0_i32_0 : i32, i32
  }
  func.func @transform_5(%arg0: i32) -> i32 {
    %c0_i32 = arith.constant 0 : i32
    %c0_i32_0 = arith.constant 0 : i32
    return %c0_i32 : i32
  }
  func.func @transform_6(%arg0: i32) -> (i32, i32) {
    %c0_i32 = arith.constant 0 : i32
    %c0_i32_0 = arith.constant 0 : i32
    %c0_i32_1 = arith.constant 0 : i32
    return %c0_i32, %c0_i32_0 : i32, i32
  }
  func.func @transform_7(%arg0: i32) -> (i32, i32) {
    %c0_i32 = arith.constant 0 : i32
    %c0_i32_0 = arith.constant 0 : i32
    %c0_i32_1 = arith.constant 0 : i32
    return %c0_i32, %c0_i32_0 : i32, i32
  }
  func.func @transform_8(%arg0: i32) -> (i32, i32, i32) {
    %c0_i32 = arith.constant 0 : i32
    %c0_i32_0 = arith.constant 0 : i32
    %c0_i32_1 = arith.constant 0 : i32
    return %arg0, %c0_i32, %c0_i32_0 : i32, i32, i32
  }
}

</mosaic_0001>

<llo_original>
// kernel: tpu_custom_call.1
$region0: #{tpu_custom_call.1}
  #allocation0 [shape = 'u32[]', space=smem, size = 0x4, offset = 0x4, fixed_abs, tag = 'smem constant byte address 0x4 - core index']
  #allocation1 [shape = 'u32[144,128]{1,0:T(1,128)}', space=vmem, size = 0x12000, scoped, tag = 'internal scratch']
  #allocation2 [shape = 'f32[256,192]{1,0:T(8,128)}', space=vmem, size = 0x40000, scoped, tag = 'scratch operand']
  %s0 = inlined_call_operand.vmem [shape: bf16[2,256,192], index: 0, kind: input, shape index: {}]
  %s1 = inlined_call_operand.vmem [shape: bf16[256,256], index: 1, kind: input, shape index: {}]
  %s2 = inlined_call_operand.vmem [shape: f32[1,192], index: 2, kind: input, shape index: {}]
  %s3 = inlined_call_operand.vmem [shape: bf16[64,128], index: 3, kind: input, shape index: {}]
  %s4 = inlined_call_operand.vmem [shape: bf16[64,64], index: 4, kind: input, shape index: {}]
  %s5 = inlined_call_operand.vmem [shape: f32[16], index: 5, kind: input, shape index: {}]
  %s6 = inlined_call_operand.vmem [shape: bf16[64,8], index: 6, kind: input, shape index: {}]
  %s7 = inlined_call_operand.vmem [shape: f32[1,8], index: 7, kind: input, shape index: {}]
  %s8 = inlined_call_operand.vmem [shape: f32[2,16,8], index: 8, kind: output, shape index: {}]
  %s9 = sld [smem:[#allocation0]]
  $region69: #{tpu_custom_call.1} parent=0
    _
  %s11 = ssub.s32 1, %s9
  %s12 = scalar_select 0, %s11, %s9
  $region1: #{tpu_custom_call.1} parent=0
    #allocation3 [shape = 'u8[512]{0}', space=smem, size = 0x200, scoped, tag = 'input window, operand 5, single buffered']
    #allocation4 [shape = 's32[2]{0}', space=sflag, size = 0x8, scoped, tag = 'scoped memory for tpu_custom_call.1']
    %13 = vsyncpa [#allocation4], 0
    loop: start=0, step=1, limit=4
    $region2: #{tpu_custom_call.1} parent=1 // loop_pre_header
      _
    $region3: #{tpu_custom_call.1} parent=1 // loop_header
      %s15 = sphi 0, %s19
      %p16 = scmp.ge.s32.totalorder %s15, 4
      %s25 = sphi 0, %s27
      %s28 = sphi 0, %s25
      %s29 = sphi 0, %s28
      %s45 = sphi 0, %s29
      %s49 = sphi 0, %s49
      %s51 = sphi 0, %s49
      %s52 = sphi 0, %s51
      %s66 = sphi 0, %s52
      %s70 = sphi 0, %s70
      %s72 = sphi 0, %s70
      %s73 = sphi 0, %s72
      %s87 = sphi 0, %s73
      %s91 = sphi 0, %s91
      %s93 = sphi 0, %s91
      %s94 = sphi 0, %s93
      %s108 = sphi 0, %s94
      %s112 = sphi 0, %s112
      %s114 = sphi 0, %s112
      %s115 = sphi 0, %s114
      %s129 = sphi 0, %s115
      %s133 = sphi 0, %s133
      %s135 = sphi 0, %s133
      %s136 = sphi 0, %s135
      %s150 = sphi 0, %s136
      %s154 = sphi 0, %s154
      %s156 = sphi 0, %s154
      %s157 = sphi 0, %s156
      %s171 = sphi 0, %s157
      %s175 = sphi 0, %s175
      %s177 = sphi 0, %s175
      %s178 = sphi 0, %s177
      %s192 = sphi 0, %s178
      %s198 = sphi 0, %s200
      %s201 = sphi 0, %s198
      %s202 = sphi 0, %s201
      %s218 = sphi 0, %s202
    $region4: #{tpu_custom_call.1} parent=1 // loop_header_branch
      %18 = sbr.rel (%p16) target = $region8
    $region5: #{tpu_custom_call.1} parent=1 // loop_body
      %s20 = ssub.s32 %s15, 1
      %s21 = ssub.s32 %s15, 2
      %s22 = sadd.s32 %s15, 1
      %s23 = ssub.s32 %s15, %s22
      %p24 = scmp.eq.s32.totalorder %s23, 0
      %s26 = sadd.s32 %s25, 1
      %s27 = scalar_select %p24, %s25, %s26
      %p30 = pneg %p24
      %p31 = scmp.eq.s32.totalorder %s15, 1
      %p32 = por %p30, %p31
      %p33 = scmp.ne.s32.totalorder %s25, %s28
      %p34 = scmp.eq.s32.totalorder %s15, 0
      %p35 = por %p33, %p34
      %p36 = scmp.ne.s32.totalorder %s25, %s28
      %p37 = scmp.eq.s32.totalorder %s20, 1
      %p38 = por %p36, %p37
      %p39 = scmp.ne.s32.totalorder %s28, %s29
      %p40 = scmp.eq.s32.totalorder %s20, 0
      %p41 = por %p39, %p40
      %p42 = scmp.ne.s32.totalorder %s28, %s29
      %p43 = scmp.eq.s32.totalorder %s21, 1
      %p44 = por %p42, %p43
      %p46 = scmp.ne.s32.totalorder %s29, %s45
      %p47 = scmp.eq.s32.totalorder %s21, 0
      %p48 = por %p46, %p47
      %s50 = sadd.s32 %s49, 1
      %p53 = scmp.eq.s32.totalorder %s15, 1
      %p54 = scmp.ne.s32.totalorder %s49, %s51
      %p55 = scmp.eq.s32.totalorder %s15, 0
      %p56 = por %p54, %p55
      %p57 = scmp.ne.s32.totalorder %s49, %s51
      %p58 = scmp.eq.s32.totalorder %s20, 1
      %p59 = por %p57, %p58
      %p60 = scmp.ne.s32.totalorder %s51, %s52
      %p61 = scmp.eq.s32.totalorder %s20, 0
      %p62 = por %p60, %p61
      %p63 = scmp.ne.s32.totalorder %s51, %s52
      %p64 = scmp.eq.s32.totalorder %s21, 1
      %p65 = por %p63, %p64
      %p67 = scmp.ne.s32.totalorder %s52, %s66
      %p68 = scmp.eq.s32.totalorder %s21, 0
      %p69 = por %p67, %p68
      %s71 = sadd.s32 %s70, 1
      %p74 = scmp.eq.s32.totalorder %s15, 1
      %p75 = scmp.ne.s32.totalorder %s70, %s72
      %p76 = scmp.eq.s32.totalorder %s15, 0
      %p77 = por %p75, %p76
      %p78 = scmp.ne.s32.totalorder %s70, %s72
      %p79 = scmp.eq.s32.totalorder %s20, 1
      %p80 = por %p78, %p79
      %p81 = scmp.ne.s32.totalorder %s72, %s73
      %p82 = scmp.eq.s32.totalorder %s20, 0
      %p83 = por %p81, %p82
      %p84 = scmp.ne.s32.totalorder %s72, %s73
      %p85 = scmp.eq.s32.totalorder %s21, 1
      %p86 = por %p84, %p85
      %p88 = scmp.ne.s32.totalorder %s73, %s87
      %p89 = scmp.eq.s32.totalorder %s21, 0
      %p90 = por %p88, %p89
      %s92 = sadd.s32 %s91, 1
      %p95 = scmp.eq.s32.totalorder %s15, 1
      %p96 = scmp.ne.s32.totalorder %s91, %s93
      %p97 = scmp.eq.s32.totalorder %s15, 0
      %p98 = por %p96, %p97
      %p99 = scmp.ne.s32.totalorder %s91, %s93
      %p100 = scmp.eq.s32.totalorder %s20, 1
      %p101 = por %p99, %p100
      %p102 = scmp.ne.s32.totalorder %s93, %s94
      %p103 = scmp.eq.s32.totalorder %s20, 0
      %p104 = por %p102, %p103
      %p105 = scmp.ne.s32.totalorder %s93, %s94
      %p106 = scmp.eq.s32.totalorder %s21, 1
      %p107 = por %p105, %p106
      %p109 = scmp.ne.s32.totalorder %s94, %s108
      %p110 = scmp.eq.s32.totalorder %s21, 0
      %p111 = por %p109, %p110
      %s113 = sadd.s32 %s112, 1
      %p116 = scmp.eq.s32.totalorder %s15, 1
      %p117 = scmp.ne.s32.totalorder %s112, %s114
      %p118 = scmp.eq.s32.totalorder %s15, 0
      %p119 = por %p117, %p118
      %p120 = scmp.ne.s32.totalorder %s112, %s114
      %p121 = scmp.eq.s32.totalorder %s20, 1
      %p122 = por %p120, %p121
      %p123 = scmp.ne.s32.totalorder %s114, %s115
      %p124 = scmp.eq.s32.totalorder %s20, 0
      %p125 = por %p123, %p124
      %p126 = scmp.ne.s32.totalorder %s114, %s115
      %p127 = scmp.eq.s32.totalorder %s21, 1
      %p128 = por %p126, %p127
      %p130 = scmp.ne.s32.totalorder %s115, %s129
      %p131 = scmp.eq.s32.totalorder %s21, 0
      %p132 = por %p130, %p131
      %s134 = sadd.s32 %s133, 1
      %p137 = scmp.eq.s32.totalorder %s15, 1
      %p138 = scmp.ne.s32.totalorder %s133, %s135
      %p139 = scmp.eq.s32.totalorder %s15, 0
      %p140 = por %p138, %p139
      %p141 = scmp.ne.s32.totalorder %s133, %s135
      %p142 = scmp.eq.s32.totalorder %s20, 1
      %p143 = por %p141, %p142
      %p144 = scmp.ne.s32.totalorder %s135, %s136
      %p145 = scmp.eq.s32.totalorder %s20, 0
      %p146 = por %p144, %p145
      %p147 = scmp.ne.s32.totalorder %s135, %s136
      %p148 = scmp.eq.s32.totalorder %s21, 1
      %p149 = por %p147, %p148
      %p151 = scmp.ne.s32.totalorder %s136, %s150
      %p152 = scmp.eq.s32.totalorder %s21, 0
      %p153 = por %p151, %p152
      %s155 = sadd.s32 %s154, 1
      %p158 = scmp.eq.s32.totalorder %s15, 1
      %p159 = scmp.ne.s32.totalorder %s154, %s156
      %p160 = scmp.eq.s32.totalorder %s15, 0
      %p161 = por %p159, %p160
      %p162 = scmp.ne.s32.totalorder %s154, %s156
      %p163 = scmp.eq.s32.totalorder %s20, 1
      %p164 = por %p162, %p163
      %p165 = scmp.ne.s32.totalorder %s156, %s157
      %p166 = scmp.eq.s32.totalorder %s20, 0
      %p167 = por %p165, %p166
      %p168 = scmp.ne.s32.totalorder %s156, %s157
      %p169 = scmp.eq.s32.totalorder %s21, 1
      %p170 = por %p168, %p169
      %p172 = scmp.ne.s32.totalorder %s157, %s171
      %p173 = scmp.eq.s32.totalorder %s21, 0
      %p174 = por %p172, %p173
      %s176 = sadd.s32 %s175, 1
      %p179 = scmp.eq.s32.totalorder %s15, 1
      %p180 = scmp.ne.s32.totalorder %s175, %s177
      %p181 = scmp.eq.s32.totalorder %s15, 0
      %p182 = por %p180, %p181
      %p183 = scmp.ne.s32.totalorder %s175, %s177
      %p184 = scmp.eq.s32.totalorder %s20, 1
      %p185 = por %p183, %p184
      %p186 = scmp.ne.s32.totalorder %s177, %s178
      %p187 = scmp.eq.s32.totalorder %s20, 0
      %p188 = por %p186, %p187
      %p189 = scmp.ne.s32.totalorder %s177, %s178
      %p190 = scmp.eq.s32.totalorder %s21, 1
      %p191 = por %p189, %p190
      %p193 = scmp.ne.s32.totalorder %s178, %s192
      %p194 = scmp.eq.s32.totalorder %s21, 0
      %p195 = por %p193, %p194
      %s196 = ssub.s32 %s15, %s22
      %p197 = scmp.eq.s32.totalorder %s196, 0
      %s199 = sadd.s32 %s198, 1
      %s200 = scalar_select %p197, %s198, %s199
      %p203 = pneg %p197
      %p204 = scmp.eq.s32.totalorder %s15, 1
      %p205 = por %p203, %p204
      %p206 = scmp.ne.s32.totalorder %s198, %s201
      %p207 = scmp.eq.s32.totalorder %s15, 0
      %p208 = por %p206, %p207
      %p209 = scmp.ne.s32.totalorder %s198, %s201
      %p210 = scmp.eq.s32.totalorder %s20, 1
      %p211 = por %p209, %p210
      %p212 = scmp.ne.s32.totalorder %s201, %s202
      %p213 = scmp.eq.s32.totalorder %s20, 0
      %p214 = por %p212, %p213
      %p215 = scmp.ne.s32.totalorder %s201, %s202
      %p216 = scmp.eq.s32.totalorder %s21, 1
      %p217 = por %p215, %p216
      %p219 = scmp.ne.s32.totalorder %s202, %s218
      %p220 = scmp.eq.s32.totalorder %s21, 0
      %p221 = por %p219, %p220
      %p222 = scmp.le.s32.totalorder 1, %s15
      %p223 = scmp.lt.s32.totalorder %s15, 3
      %p224 = pnand %p222, %p223
      %p225 = pneg %p224
      // Predicated region
      $region9: #{tpu_custom_call.1} parent=5 // pred_check
        _
      $region10: #{tpu_custom_call.1} parent=5 // pred_check_branch
        %227 = sbr.rel (%p224) target = $region12
      $region11: #{tpu_custom_call.1} parent=5 // pred_region
        %s228 = ssub.s32 %s15, 1
        // Predicated region
        $region13: #{tpu_custom_call.1} parent=11 // pred_check
          %p229 = pneg %p62
        $region14: #{tpu_custom_call.1} parent=11 // pred_check_branch
          %231 = sbr.rel (%p229) target = $region16
        $region15: #{tpu_custom_call.1} parent=11 // pred_region
          _
        $region16: #{tpu_custom_call.1} parent=11 // pred_fallthru
          _
        // Predicated region
        $region17: #{tpu_custom_call.1} parent=11 // pred_check
          %p232 = pneg %p83
        $region18: #{tpu_custom_call.1} parent=11 // pred_check_branch
          %234 = sbr.rel (%p232) target = $region20
        $region19: #{tpu_custom_call.1} parent=11 // pred_region
          _
        $region20: #{tpu_custom_call.1} parent=11 // pred_fallthru
          _
        // Predicated region
        $region21: #{tpu_custom_call.1} parent=11 // pred_check
          %p235 = pneg %p104
        $region22: #{tpu_custom_call.1} parent=11 // pred_check_branch
          %237 = sbr.rel (%p235) target = $region24
        $region23: #{tpu_custom_call.1} parent=11 // pred_region
          _
        $region24: #{tpu_custom_call.1} parent=11 // pred_fallthru
          _
        // Predicated region
        $region25: #{tpu_custom_call.1} parent=11 // pred_check
          %p238 = pneg %p125
        $region26: #{tpu_custom_call.1} parent=11 // pred_check_branch
          %240 = sbr.rel (%p238) target = $region28
        $region27: #{tpu_custom_call.1} parent=11 // pred_region
          _
        $region28: #{tpu_custom_call.1} parent=11 // pred_fallthru
          _
        // Predicated region
        $region29: #{tpu_custom_call.1} parent=11 // pred_check
          %p241 = pneg %p146
        $region30: #{tpu_custom_call.1} parent=11 // pred_check_branch
          %243 = sbr.rel (%p241) target = $region32
        $region31: #{tpu_custom_call.1} parent=11 // pred_region
          %s245 = ssub.s32 16, 16
          %246 = vsyncadd [#allocation4], %s245
          %s248 = sshll.u32 %s5, 4
          %s249 = int_to_ptr.vmem [resolvable:$true] %s248
          %251 = dma.vmem_to_smem %s249, 16, [#allocation3], [#allocation4]
        $region32: #{tpu_custom_call.1} parent=11 // pred_fallthru
          _
        // Predicated region
        $region33: #{tpu_custom_call.1} parent=11 // pred_check
          %p252 = pneg %p167
        $region34: #{tpu_custom_call.1} parent=11 // pred_check_branch
          %254 = sbr.rel (%p252) target = $region36
        $region35: #{tpu_custom_call.1} parent=11 // pred_region
          _
        $region36: #{tpu_custom_call.1} parent=11 // pred_fallthru
          _
        // Predicated region
        $region37: #{tpu_custom_call.1} parent=11 // pred_check
          %p255 = pneg %p188
        $region38: #{tpu_custom_call.1} parent=11 // pred_check_branch
          %257 = sbr.rel (%p255) target = $region40
        $region39: #{tpu_custom_call.1} parent=11 // pred_region
          _
        $region40: #{tpu_custom_call.1} parent=11 // pred_fallthru
          _
      $region12: #{tpu_custom_call.1} parent=5 // pred_fallthru
        _
      %p258 = scmp.lt.s32.totalorder %s15, 2
      // Predicated region
      $region41: #{tpu_custom_call.1} parent=5 // pred_check
        %p259 = pneg %p258
      $region42: #{tpu_custom_call.1} parent=5 // pred_check_branch
        %261 = sbr.rel (%p259) target = $region44
      $region43: #{tpu_custom_call.1} parent=5 // pred_region
        // Predicated region
        $region45: #{tpu_custom_call.1} parent=43 // pred_check
          %p262 = pneg %p35
        $region46: #{tpu_custom_call.1} parent=43 // pred_check_branch
          %264 = sbr.rel (%p262) target = $region48
        $region47: #{tpu_custom_call.1} parent=43 // pred_region
          %p265 = scmp.lt.s32.totalorder %s15, 1
          %s266 = scalar_select %p265, %s15, 1
          %s267 = smul.addr %s266, 64
          %s268 = smul.addr %s267, 4
          %s269 = scalar_lea.vmem %s0, %s268
        $region48: #{tpu_custom_call.1} parent=43 // pred_fallthru
          _
      $region44: #{tpu_custom_call.1} parent=5 // pred_fallthru
        _
      %p270 = scmp.le.s32.totalorder 1, %s15
      %p271 = scmp.lt.s32.totalorder %s15, 3
      %p272 = pnand %p270, %p271
      %p273 = pneg %p272
      // Predicated region
      $region49: #{tpu_custom_call.1} parent=5 // pred_check
        _
      $region50: #{tpu_custom_call.1} parent=5 // pred_check_branch
        %275 = sbr.rel (%p272) target = $region52
      $region51: #{tpu_custom_call.1} parent=5 // pred_region
        %s276 = ssub.s32 %s15, 1
        // Predicated region
        $region53: #{tpu_custom_call.1} parent=51 // pred_check
          %p277 = pneg %p146
        $region54: #{tpu_custom_call.1} parent=51 // pred_check_branch
          %279 = sbr.rel (%p277) target = $region56
        $region55: #{tpu_custom_call.1} parent=51 // pred_region
          %280 = dma.done [#allocation4], 16
        $region56: #{tpu_custom_call.1} parent=51 // pred_fallthru
          _
        %281 = sfence
        %p282 = scmp.lt.s32.totalorder %s20, 1
        %s283 = scalar_select %p282, %s20, 1
        %s284 = smul.addr %s283, 64
        %s285 = smul.addr %s284, 4
        %s286 = scalar_lea.vmem %s0, %s285
        %p287 = pneg %p41
        %p288 = pneg %p38
        %p289 = pneg %p62
        %p290 = pneg %p59
        %p291 = pneg %p83
        %p292 = pneg %p80
        %p293 = pneg %p104
        %p294 = pneg %p101
        %p295 = pneg %p125
        %p296 = pneg %p122
        %p297 = pneg %p146
        %p298 = pneg %p143
        %p299 = pneg %p167
        %p300 = pneg %p164
        %p301 = pneg %p188
        %p302 = pneg %p185
        %p303 = pneg %p214
        %p304 = pneg %p211
        %p305 = scmp.lt.s32.totalorder %s20, 1
        %s306 = scalar_select %p305, %s20, 1
        %s307 = smul.addr %s306, 2
        %s308 = smul.addr %s307, 8
        %s309 = scalar_lea.vmem %s8, %s308
        %p310 = scmp.lt.s32.totalorder %s20, 1
        %s311 = scalar_select %p310, %s20, 1
        %s312 = smul.addr %s311, 64
        %s313 = smul.addr %s312, 4
        %s314 = scalar_lea.vmem %s0, %s313
        %p315 = scmp.lt.s32.totalorder %s20, 1
        %s316 = scalar_select %p315, %s20, 1
        %s317 = smul.addr %s316, 2
        %s318 = smul.addr %s317, 8
        %s319 = scalar_lea.vmem %s8, %s318
        %v321 = vld [vmem:[%s1] sm:$0xff]
        %v322 = vld [vmem:[%s1 + $0x8] sm:$0xff]
        %v323 = vld [vmem:[%s1 + $0x10] sm:$0xff]
        %v324 = vld [vmem:[%s1 + $0x18] sm:$0xff]
        %v325 = vld [vmem:[%s1 + $0x20] sm:$0xff]
        %v326 = vld [vmem:[%s1 + $0x28] sm:$0xff]
        %v327 = vld [vmem:[%s1 + $0x30] sm:$0xff]
        %v328 = vld [vmem:[%s1 + $0x38] sm:$0xff]
        %v329 = vld [vmem:[%s1 + $0x40] sm:$0xff]
        %v330 = vld [vmem:[%s1 + $0x48] sm:$0xff]
        %v331 = vld [vmem:[%s1 + $0x50] sm:$0xff]
        %v332 = vld [vmem:[%s1 + $0x58] sm:$0xff]
        %v333 = vld [vmem:[%s1 + $0x60] sm:$0xff]
        %v334 = vld [vmem:[%s1 + $0x68] sm:$0xff]
        %v335 = vld [vmem:[%s1 + $0x70] sm:$0xff]
        %v336 = vld [vmem:[%s1 + $0x78] sm:$0xff]
        %v337 = vld [vmem:[%s1 + $0x80] sm:$0xff]
        %v338 = vld [vmem:[%s1 + $0x88] sm:$0xff]
        %v339 = vld [vmem:[%s1 + $0x90] sm:$0xff]
        %v340 = vld [vmem:[%s1 + $0x98] sm:$0xff]
        %v341 = vld [vmem:[%s1 + $0xa0] sm:$0xff]
        %v342 = vld [vmem:[%s1 + $0xa8] sm:$0xff]
        %v343 = vld [vmem:[%s1 + $0xb0] sm:$0xff]
        %v344 = vld [vmem:[%s1 + $0xb8] sm:$0xff]
        %v345 = vld [vmem:[%s1 + $0xc0] sm:$0xff]
        %v346 = vld [vmem:[%s1 + $0xc8] sm:$0xff]
        %v347 = vld [vmem:[%s1 + $0xd0] sm:$0xff]
        %v348 = vld [vmem:[%s1 + $0xd8] sm:$0xff]
        %v349 = vld [vmem:[%s1 + $0xe0] sm:$0xff]
        %v350 = vld [vmem:[%s1 + $0xe8] sm:$0xff]
        %v351 = vld [vmem:[%s1 + $0xf0] sm:$0xff]
        %v352 = vld [vmem:[%s1 + $0xf8] sm:$0xff]
        %v353 = vld [vmem:[%s314] sm:$0xff]
        %v354 = vld [vmem:[%s314 + $0x8] sm:$0xff]
        %v355 = vld [vmem:[%s314 + $0x10] sm:$0xff]
        %v356 = vld [vmem:[%s314 + $0x18] sm:$0xff]
        %v357 = vld [vmem:[%s314 + $0x20] sm:$0xff]
        %v358 = vld [vmem:[%s314 + $0x28] sm:$0xff]
        %v359 = vld [vmem:[%s314 + $0x30] sm:$0xff]
        %v360 = vld [vmem:[%s314 + $0x38] sm:$0xff]
        %v361 = vld [vmem:[%s314 + $0x40] sm:$0xff]
        %v362 = vld [vmem:[%s314 + $0x48] sm:$0xff]
        %v363 = vld [vmem:[%s314 + $0x50] sm:$0xff]
        %v364 = vld [vmem:[%s314 + $0x58] sm:$0xff]
        %v365 = vld [vmem:[%s314 + $0x60] sm:$0xff]
        %v366 = vld [vmem:[%s314 + $0x68] sm:$0xff]
        %v367 = vld [vmem:[%s314 + $0x70] sm:$0xff]
        %v368 = vld [vmem:[%s314 + $0x78] sm:$0xff]
        %v369 = vld [vmem:[%s314 + $0x80] sm:$0xff]
        %v370 = vld [vmem:[%s314 + $0x88] sm:$0xff]
        %v371 = vld [vmem:[%s314 + $0x90] sm:$0xff]
        %v372 = vld [vmem:[%s314 + $0x98] sm:$0xff]
        %v373 = vld [vmem:[%s314 + $0xa0] sm:$0xff]
        %v374 = vld [vmem:[%s314 + $0xa8] sm:$0xff]
        %v375 = vld [vmem:[%s314 + $0xb0] sm:$0xff]
        %v376 = vld [vmem:[%s314 + $0xb8] sm:$0xff]
        %v377 = vld [vmem:[%s314 + $0xc0] sm:$0xff]
        %v378 = vld [vmem:[%s314 + $0xc8] sm:$0xff]
        %v379 = vld [vmem:[%s314 + $0xd0] sm:$0xff]
        %v380 = vld [vmem:[%s314 + $0xd8] sm:$0xff]
        %v381 = vld [vmem:[%s314 + $0xe0] sm:$0xff]
        %v382 = vld [vmem:[%s314 + $0xe8] sm:$0xff]
        %v383 = vld [vmem:[%s314 + $0xf0] sm:$0xff]
        %v384 = vld [vmem:[%s314 + $0xf8] sm:$0xff]
        %v385 = vld [vmem:[%s2] sm:$0x3]
        %v387 = vlaneseq
        %v388 = vshrl.u32 %v387, 7
        %v389 = vsub.s32 0, %v388
        %v390 = vrot.slane %v385, %v389
        %v391 = vlaneseq
        %v392 = vshrl.u32 %v391, 7
        %v393 = vsub.s32 1, %v392
        %v394 = vrot.slane %v385, %v393
        %v429 = vunpack.c.l.b16 %v321
        %v430 = vunpack.c.h.b16 %v321
        %v431 = vunpack.c.l.b16 %v322
        %v432 = vunpack.c.h.b16 %v322
        %v433 = vunpack.c.l.b16 %v323
        %v434 = vunpack.c.h.b16 %v323
        %v435 = vunpack.c.l.b16 %v324
        %v436 = vunpack.c.h.b16 %v324
        %v437 = vunpack.c.l.b16 %v325
        %v438 = vunpack.c.h.b16 %v325
        %v439 = vunpack.c.l.b16 %v326
        %v440 = vunpack.c.h.b16 %v326
        %v441 = vunpack.c.l.b16 %v327
        %v442 = vunpack.c.h.b16 %v327
        %v443 = vunpack.c.l.b16 %v328
        %v444 = vunpack.c.h.b16 %v328
        %v445 = vunpack.c.l.b16 %v329
        %v446 = vunpack.c.h.b16 %v329
        %v447 = vunpack.c.l.b16 %v330
        %v448 = vunpack.c.h.b16 %v330
        %v449 = vunpack.c.l.b16 %v331
        %v450 = vunpack.c.h.b16 %v331
        %v451 = vunpack.c.l.b16 %v332
        %v452 = vunpack.c.h.b16 %v332
        %v453 = vunpack.c.l.b16 %v333
        %v454 = vunpack.c.h.b16 %v333
        %v455 = vunpack.c.l.b16 %v334
        %v456 = vunpack.c.h.b16 %v334
        %v457 = vunpack.c.l.b16 %v335
        %v458 = vunpack.c.h.b16 %v335
        %v459 = vunpack.c.l.b16 %v336
        %v460 = vunpack.c.h.b16 %v336
        %v461 = vunpack.c.l.b16 %v337
        %v462 = vunpack.c.h.b16 %v337
        %v463 = vunpack.c.l.b16 %v338
        %v464 = vunpack.c.h.b16 %v338
        %v465 = vunpack.c.l.b16 %v339
        %v466 = vunpack.c.h.b16 %v339
        %v467 = vunpack.c.l.b16 %v340
        %v468 = vunpack.c.h.b16 %v340
        %v469 = vunpack.c.l.b16 %v341
        %v470 = vunpack.c.h.b16 %v341
        %v471 = vunpack.c.l.b16 %v342
        %v472 = vunpack.c.h.b16 %v342
        %v473 = vunpack.c.l.b16 %v343
        %v474 = vunpack.c.h.b16 %v343
        %v475 = vunpack.c.l.b16 %v344
        %v476 = vunpack.c.h.b16 %v344
        %v477 = vunpack.c.l.b16 %v345
        %v478 = vunpack.c.h.b16 %v345
        %v479 = vunpack.c.l.b16 %v346
        %v480 = vunpack.c.h.b16 %v346
        %v481 = vunpack.c.l.b16 %v347
        %v482 = vunpack.c.h.b16 %v347
        %v483 = vunpack.c.l.b16 %v348
        %v484 = vunpack.c.h.b16 %v348
        %v485 = vunpack.c.l.b16 %v349
        %v486 = vunpack.c.h.b16 %v349
        %v487 = vunpack.c.l.b16 %v350
        %v488 = vunpack.c.h.b16 %v350
        %v489 = vunpack.c.l.b16 %v351
        %v490 = vunpack.c.h.b16 %v351
        %v491 = vunpack.c.l.b16 %v352
        %v492 = vunpack.c.h.b16 %v352
        %v493 = vpack.c.b16 %v431, %v429
        %v494 = vpack.c.b16 %v432, %v430
        %v495 = vpack.c.b16 %v435, %v433
        %v496 = vpack.c.b16 %v436, %v434
        %v497 = vpack.c.b16 %v439, %v437
        %v498 = vpack.c.b16 %v440, %v438
        %v499 = vpack.c.b16 %v443, %v441
        %v500 = vpack.c.b16 %v444, %v442
        %v501 = vpack.c.b16 %v447, %v445
        %v502 = vpack.c.b16 %v448, %v446
        %v503 = vpack.c.b16 %v451, %v449
        %v504 = vpack.c.b16 %v452, %v450
        %v505 = vpack.c.b16 %v455, %v453
        %v506 = vpack.c.b16 %v456, %v454
        %v507 = vpack.c.b16 %v459, %v457
        %v508 = vpack.c.b16 %v460, %v458
        %v509 = vpack.c.b16 %v463, %v461
        %v510 = vpack.c.b16 %v464, %v462
        %v511 = vpack.c.b16 %v467, %v465
        %v512 = vpack.c.b16 %v468, %v466
        %v513 = vpack.c.b16 %v471, %v469
        %v514 = vpack.c.b16 %v472, %v470
        %v515 = vpack.c.b16 %v475, %v473
        %v516 = vpack.c.b16 %v476, %v474
        %v517 = vpack.c.b16 %v479, %v477
        %v518 = vpack.c.b16 %v480, %v478
        %v519 = vpack.c.b16 %v483, %v481
        %v520 = vpack.c.b16 %v484, %v482
        %v521 = vpack.c.b16 %v487, %v485
        %v522 = vpack.c.b16 %v488, %v486
        %v523 = vpack.c.b16 %v491, %v489
        %v524 = vpack.c.b16 %v492, %v490
        %v589 = vunpack.c.l.b16 %v353
        %v590 = vunpack.c.h.b16 %v353
        %v591 = vunpack.c.l.b16 %v354
        %v592 = vunpack.c.h.b16 %v354
        %v593 = vunpack.c.l.b16 %v355
        %v594 = vunpack.c.h.b16 %v355
        %v595 = vunpack.c.l.b16 %v356
        %v596 = vunpack.c.h.b16 %v356
        %v597 = vunpack.c.l.b16 %v357
        %v598 = vunpack.c.h.b16 %v357
        %v599 = vunpack.c.l.b16 %v358
        %v600 = vunpack.c.h.b16 %v358
        %v601 = vunpack.c.l.b16 %v359
        %v602 = vunpack.c.h.b16 %v359
        %v603 = vunpack.c.l.b16 %v360
        %v604 = vunpack.c.h.b16 %v360
        %v605 = vunpack.c.l.b16 %v361
        %v606 = vunpack.c.h.b16 %v361
        %v607 = vunpack.c.l.b16 %v362
        %v608 = vunpack.c.h.b16 %v362
        %v609 = vunpack.c.l.b16 %v363
        %v610 = vunpack.c.h.b16 %v363
        %v611 = vunpack.c.l.b16 %v364
        %v612 = vunpack.c.h.b16 %v364
        %v613 = vunpack.c.l.b16 %v365
        %v614 = vunpack.c.h.b16 %v365
        %v615 = vunpack.c.l.b16 %v366
        %v616 = vunpack.c.h.b16 %v366
        %v617 = vunpack.c.l.b16 %v367
        %v618 = vunpack.c.h.b16 %v367
        %v619 = vunpack.c.l.b16 %v368
        %v620 = vunpack.c.h.b16 %v368
        %v621 = vunpack.c.l.b16 %v369
        %v622 = vunpack.c.h.b16 %v369
        %v623 = vunpack.c.l.b16 %v370
        %v624 = vunpack.c.h.b16 %v370
        %v625 = vunpack.c.l.b16 %v371
        %v626 = vunpack.c.h.b16 %v371
        %v627 = vunpack.c.l.b16 %v372
        %v628 = vunpack.c.h.b16 %v372
        %v629 = vunpack.c.l.b16 %v373
        %v630 = vunpack.c.h.b16 %v373
        %v631 = vunpack.c.l.b16 %v374
        %v632 = vunpack.c.h.b16 %v374
        %v633 = vunpack.c.l.b16 %v375
        %v634 = vunpack.c.h.b16 %v375
        %v635 = vunpack.c.l.b16 %v376
        %v636 = vunpack.c.h.b16 %v376
        %v637 = vunpack.c.l.b16 %v377
        %v638 = vunpack.c.h.b16 %v377
        %v639 = vunpack.c.l.b16 %v378
        %v640 = vunpack.c.h.b16 %v378
        %v641 = vunpack.c.l.b16 %v379
        %v642 = vunpack.c.h.b16 %v379
        %v643 = vunpack.c.l.b16 %v380
        %v644 = vunpack.c.h.b16 %v380
        %v645 = vunpack.c.l.b16 %v381
        %v646 = vunpack.c.h.b16 %v381
        %v647 = vunpack.c.l.b16 %v382
        %v648 = vunpack.c.h.b16 %v382
        %v649 = vunpack.c.l.b16 %v383
        %v650 = vunpack.c.h.b16 %v383
        %v651 = vunpack.c.l.b16 %v384
        %v652 = vunpack.c.h.b16 %v384
        %v653 = vpack.c.b16 %v591, %v589
        %v654 = vpack.c.b16 %v592, %v590
        %v655 = vpack.c.b16 %v595, %v593
        %v656 = vpack.c.b16 %v596, %v594
        %v657 = vpack.c.b16 %v599, %v597
        %v658 = vpack.c.b16 %v600, %v598
        %v659 = vpack.c.b16 %v603, %v601
        %v660 = vpack.c.b16 %v604, %v602
        %v661 = vpack.c.b16 %v607, %v605
        %v662 = vpack.c.b16 %v608, %v606
        %v663 = vpack.c.b16 %v611, %v609
        %v664 = vpack.c.b16 %v612, %v610
        %v665 = vpack.c.b16 %v615, %v613
        %v666 = vpack.c.b16 %v616, %v614
        %v667 = vpack.c.b16 %v619, %v617
        %v668 = vpack.c.b16 %v620, %v618
        %v669 = vpack.c.b16 %v623, %v621
        %v670 = vpack.c.b16 %v624, %v622
        %v671 = vpack.c.b16 %v627, %v625
        %v672 = vpack.c.b16 %v628, %v626
        %v673 = vpack.c.b16 %v631, %v629
        %v674 = vpack.c.b16 %v632, %v630
        %v675 = vpack.c.b16 %v635, %v633
        %v676 = vpack.c.b16 %v636, %v634
        %v677 = vpack.c.b16 %v639, %v637
        %v678 = vpack.c.b16 %v640, %v638
        %v679 = vpack.c.b16 %v643, %v641
        %v680 = vpack.c.b16 %v644, %v642
        %v681 = vpack.c.b16 %v647, %v645
        %v682 = vpack.c.b16 %v648, %v646
        %v683 = vpack.c.b16 %v651, %v649
        %v684 = vpack.c.b16 %v652, %v650
        %717 = vmatprep.subr.bf16.mxu0 %v668
        %718 = vmatpush1.bf16.msra.mxu0 %v667
        %719 = vmatprep.subr.bf16.mxu0 %v666
        %720 = vmatpush1.bf16.msra.mxu0 %v665
        %721 = vmatprep.subr.bf16.mxu0 %v664
        %722 = vmatpush1.bf16.msra.mxu0 %v663
        %723 = vmatprep.subr.bf16.mxu0 %v662
        %724 = vmatpush1.bf16.msra.mxu0 %v661
        %725 = vmatprep.subr.bf16.mxu0 %v660
        %726 = vmatpush1.bf16.msra.mxu0 %v659
        %727 = vmatprep.subr.bf16.mxu0 %v658
        %728 = vmatpush1.bf16.msra.mxu0 %v657
        %729 = vmatprep.subr.bf16.mxu0 %v656
        %730 = vmatpush1.bf16.msra.mxu0 %v655
        %731 = vmatprep.subr.bf16.mxu0 %v654
        %732 = vmatpush1.bf16.msra.mxu0 %v653
        %733 = vmatprep.subr.bf16.mxu0 %v684
        %734 = vmatpush2.bf16.msra.mxu0 %v683
        %735 = vmatprep.subr.bf16.mxu0 %v682
        %736 = vmatpush2.bf16.msra.mxu0 %v681
        %737 = vmatprep.subr.bf16.mxu0 %v680
        %738 = vmatpush2.bf16.msra.mxu0 %v679
        %739 = vmatprep.subr.bf16.mxu0 %v678
        %740 = vmatpush2.bf16.msra.mxu0 %v677
        %741 = vmatprep.subr.bf16.mxu0 %v676
        %742 = vmatpush2.bf16.msra.mxu0 %v675
        %743 = vmatprep.subr.bf16.mxu0 %v674
        %744 = vmatpush2.bf16.msra.mxu0 %v673
        %745 = vmatprep.subr.bf16.mxu0 %v672
        %746 = vmatpush2.bf16.msra.mxu0 %v671
        %747 = vmatprep.subr.bf16.mxu0 %v670
        %748 = vmatpush2.bf16.msra.mxu0 %v669
        %749 = vmatprep.mubr.bf16.mxu0 %v494
        %750 = vmatmul.mubr.bf16.gmra.mxu0 %v493
        %v751 = vpop.f32.mrf.mxu0
        %v752 = vadd.f32 %v390, %v751
        %v753 = vpop.f32.mrf.mxu0
        %v754 = vadd.f32 %v394, %v753
        %v755 = vpop.f32.mrf.mxu0
        %v756 = vadd.f32 %v390, %v755
        %v757 = vpop.f32.mrf.mxu0
        %v758 = vadd.f32 %v394, %v757
        %759 = vmatprep.mubr.bf16.mxu0 %v496
        %760 = vmatmul.mubr.bf16.gmra.mxu0 %v495
        %v761 = vpop.f32.mrf.mxu0
        %v762 = vadd.f32 %v390, %v761
        %v763 = vpop.f32.mrf.mxu0
        %v764 = vadd.f32 %v394, %v763
        %v765 = vpop.f32.mrf.mxu0
        %v766 = vadd.f32 %v390, %v765
        %v767 = vpop.f32.mrf.mxu0
        %v768 = vadd.f32 %v394, %v767
        %769 = vmatprep.mubr.bf16.mxu0 %v498
        %770 = vmatmul.mubr.bf16.gmra.mxu0 %v497
        %v771 = vpop.f32.mrf.mxu0
        %v772 = vadd.f32 %v390, %v771
        %v773 = vpop.f32.mrf.mxu0
        %v774 = vadd.f32 %v394, %v773
        %v775 = vpop.f32.mrf.mxu0
        %v776 = vadd.f32 %v390, %v775
        %v777 = vpop.f32.mrf.mxu0
        %v778 = vadd.f32 %v394, %v777
        %779 = vmatprep.mubr.bf16.mxu0 %v500
        %780 = vmatmul.mubr.bf16.gmra.mxu0 %v499
        %v781 = vpop.f32.mrf.mxu0
        %v782 = vadd.f32 %v390, %v781
        %v783 = vpop.f32.mrf.mxu0
        %v784 = vadd.f32 %v394, %v783
        %v785 = vpop.f32.mrf.mxu0
        %v786 = vadd.f32 %v390, %v785
        %v787 = vpop.f32.mrf.mxu0
        %v788 = vadd.f32 %v394, %v787
        %789 = vmatprep.mubr.bf16.mxu0 %v502
        %790 = vmatmul.mubr.bf16.gmra.mxu0 %v501
        %v791 = vpop.f32.mrf.mxu0
        %v792 = vadd.f32 %v390, %v791
        %v793 = vpop.f32.mrf.mxu0
        %v794 = vadd.f32 %v394, %v793
        %v795 = vpop.f32.mrf.mxu0
        %v796 = vadd.f32 %v390, %v795
        %v797 = vpop.f32.mrf.mxu0
        %v798 = vadd.f32 %v394, %v797
        %799 = vmatprep.mubr.bf16.mxu0 %v504
        %800 = vmatmul.mubr.bf16.gmra.mxu0 %v503
        %v801 = vpop.f32.mrf.mxu0
        %v802 = vadd.f32 %v390, %v801
        %v803 = vpop.f32.mrf.mxu0
        %v804 = vadd.f32 %v394, %v803
        %v805 = vpop.f32.mrf.mxu0
        %v806 = vadd.f32 %v390, %v805
        %v807 = vpop.f32.mrf.mxu0
        %v808 = vadd.f32 %v394, %v807
        %809 = vmatprep.mubr.bf16.mxu0 %v506
        %810 = vmatmul.mubr.bf16.gmra.mxu0 %v505
        %v811 = vpop.f32.mrf.mxu0
        %v812 = vadd.f32 %v390, %v811
        %v813 = vpop.f32.mrf.mxu0
        %v814 = vadd.f32 %v394, %v813
        %v815 = vpop.f32.mrf.mxu0
        %v816 = vadd.f32 %v390, %v815
        %v817 = vpop.f32.mrf.mxu0
        %v818 = vadd.f32 %v394, %v817
        %819 = vmatprep.mubr.bf16.mxu0 %v508
        %820 = vmatmul.mubr.bf16.gmra.mxu0 %v507
        %v821 = vpop.f32.mrf.mxu0
        %v822 = vadd.f32 %v390, %v821
        %v823 = vpop.f32.mrf.mxu0
        %v824 = vadd.f32 %v394, %v823
        %v825 = vpop.f32.mrf.mxu0
        %v826 = vadd.f32 %v390, %v825
        %v827 = vpop.f32.mrf.mxu0
        %v828 = vadd.f32 %v394, %v827
        %829 = vmatprep.mubr.bf16.mxu0 %v510
        %830 = vmatmul.mubr.bf16.gmra.mxu0 %v509
        %v831 = vpop.f32.mrf.mxu0
        %v832 = vadd.f32 %v390, %v831
        %v833 = vpop.f32.mrf.mxu0
        %v834 = vadd.f32 %v394, %v833
        %v835 = vpop.f32.mrf.mxu0
        %v836 = vadd.f32 %v390, %v835
        %v837 = vpop.f32.mrf.mxu0
        %v838 = vadd.f32 %v394, %v837
        %839 = vmatprep.mubr.bf16.mxu0 %v512
        %840 = vmatmul.mubr.bf16.gmra.mxu0 %v511
        %v841 = vpop.f32.mrf.mxu0
        %v842 = vadd.f32 %v390, %v841
        %v843 = vpop.f32.mrf.mxu0
        %v844 = vadd.f32 %v394, %v843
        %v845 = vpop.f32.mrf.mxu0
        %v846 = vadd.f32 %v390, %v845
        %v847 = vpop.f32.mrf.mxu0
        %v848 = vadd.f32 %v394, %v847
        %849 = vmatprep.mubr.bf16.mxu0 %v514
        %850 = vmatmul.mubr.bf16.gmra.mxu0 %v513
        %v851 = vpop.f32.mrf.mxu0
        %v852 = vadd.f32 %v390, %v851
        %v853 = vpop.f32.mrf.mxu0
        %v854 = vadd.f32 %v394, %v853
        %v855 = vpop.f32.mrf.mxu0
        %v856 = vadd.f32 %v390, %v855
        %v857 = vpop.f32.mrf.mxu0
        %v858 = vadd.f32 %v394, %v857
        %859 = vmatprep.mubr.bf16.mxu0 %v516
        %860 = vmatmul.mubr.bf16.gmra.mxu0 %v515
        %v861 = vpop.f32.mrf.mxu0
        %v862 = vadd.f32 %v390, %v861
        %v863 = vpop.f32.mrf.mxu0
        %v864 = vadd.f32 %v394, %v863
        %v865 = vpop.f32.mrf.mxu0
        %v866 = vadd.f32 %v390, %v865
        %v867 = vpop.f32.mrf.mxu0
        %v868 = vadd.f32 %v394, %v867
        %869 = vmatprep.mubr.bf16.mxu0 %v518
        %870 = vmatmul.mubr.bf16.gmra.mxu0 %v517
        %v871 = vpop.f32.mrf.mxu0
        %v872 = vadd.f32 %v390, %v871
        %v873 = vpop.f32.mrf.mxu0
        %v874 = vadd.f32 %v394, %v873
        %v875 = vpop.f32.mrf.mxu0
        %v876 = vadd.f32 %v390, %v875
        %v877 = vpop.f32.mrf.mxu0
        %v878 = vadd.f32 %v394, %v877
        %879 = vmatprep.mubr.bf16.mxu0 %v520
        %880 = vmatmul.mubr.bf16.gmra.mxu0 %v519
        %v881 = vpop.f32.mrf.mxu0
        %v882 = vadd.f32 %v390, %v881
        %v883 = vpop.f32.mrf.mxu0
        %v884 = vadd.f32 %v394, %v883
        %v885 = vpop.f32.mrf.mxu0
        %v886 = vadd.f32 %v390, %v885
        %v887 = vpop.f32.mrf.mxu0
        %v888 = vadd.f32 %v394, %v887
        %889 = vmatprep.mubr.bf16.mxu0 %v522
        %890 = vmatmul.mubr.bf16.gmra.mxu0 %v521
        %v891 = vpop.f32.mrf.mxu0
        %v892 = vadd.f32 %v390, %v891
        %v893 = vpop.f32.mrf.mxu0
        %v894 = vadd.f32 %v394, %v893
        %v895 = vpop.f32.mrf.mxu0
        %v896 = vadd.f32 %v390, %v895
        %v897 = vpop.f32.mrf.mxu0
        %v898 = vadd.f32 %v394, %v897
        %899 = vmatprep.mubr.bf16.mxu0 %v524
        %900 = vmatmul.mubr.bf16.gmra.mxu0 %v523
        %v901 = vpop.f32.mrf.mxu0
        %v902 = vadd.f32 %v390, %v901
        %v903 = vpop.f32.mrf.mxu0
        %v904 = vadd.f32 %v394, %v903
        %v905 = vpop.f32.mrf.mxu0
        %v906 = vadd.f32 %v390, %v905
        %v907 = vpop.f32.mrf.mxu0
        %v908 = vadd.f32 %v394, %v907
        %909 = vdwg.mxu0
        %910 = vst [vmem:[#allocation2] sm:$0xff] %v752
        %vm911 = vcmask 523264
        %912 = vst.msk [vmem:[#allocation2 + $0x8] sm:$0xff] %vm911, %v754
        %913 = vst [vmem:[#allocation2 + $0x10] sm:$0xff] %v756
        %914 = vst.msk [vmem:[#allocation2 + $0x18] sm:$0xff] %vm911, %v758
        %915 = vst [vmem:[#allocation2 + $0x20] sm:$0xff] %v762
        %916 = vst.msk [vmem:[#allocation2 + $0x28] sm:$0xff] %vm911, %v764
        %917 = vst [vmem:[#allocation2 + $0x30] sm:$0xff] %v766
        %918 = vst.msk [vmem:[#allocation2 + $0x38] sm:$0xff] %vm911, %v768
        %919 = vst [vmem:[#allocation2 + $0x40] sm:$0xff] %v772
        %920 = vst.msk [vmem:[#allocation2 + $0x48] sm:$0xff] %vm911, %v774
        %921 = vst [vmem:[#allocation2 + $0x50] sm:$0xff] %v776
        %922 = vst.msk [vmem:[#allocation2 + $0x58] sm:$0xff] %vm911, %v778
        %923 = vst [vmem:[#allocation2 + $0x60] sm:$0xff] %v782
        %924 = vst.msk [vmem:[#allocation2 + $0x68] sm:$0xff] %vm911, %v784
        %925 = vst [vmem:[#allocation2 + $0x70] sm:$0xff] %v786
        %926 = vst.msk [vmem:[#allocation2 + $0x78] sm:$0xff] %vm911, %v788
        %927 = vst [vmem:[#allocation2 + $0x80] sm:$0xff] %v792
        %928 = vst.msk [vmem:[#allocation2 + $0x88] sm:$0xff] %vm911, %v794
        %929 = vst [vmem:[#allocation2 + $0x90] sm:$0xff] %v796
        %930 = vst.msk [vmem:[#allocation2 + $0x98] sm:$0xff] %vm911, %v798
        %931 = vst [vmem:[#allocation2 + $0xa0] sm:$0xff] %v802
        %932 = vst.msk [vmem:[#allocation2 + $0xa8] sm:$0xff] %vm911, %v804
        %933 = vst [vmem:[#allocation2 + $0xb0] sm:$0xff] %v806
        %934 = vst.msk [vmem:[#allocation2 + $0xb8] sm:$0xff] %vm911, %v808
        %935 = vst [vmem:[#allocation2 + $0xc0] sm:$0xff] %v812
        %936 = vst.msk [vmem:[#allocation2 + $0xc8] sm:$0xff] %vm911, %v814
        %937 = vst [vmem:[#allocation2 + $0xd0] sm:$0xff] %v816
        %938 = vst.msk [vmem:[#allocation2 + $0xd8] sm:$0xff] %vm911, %v818
        %939 = vst [vmem:[#allocation2 + $0xe0] sm:$0xff] %v822
        %940 = vst.msk [vmem:[#allocation2 + $0xe8] sm:$0xff] %vm911, %v824
        %941 = vst [vmem:[#allocation2 + $0xf0] sm:$0xff] %v826
        %942 = vst.msk [vmem:[#allocation2 + $0xf8] sm:$0xff] %vm911, %v828
        %943 = vst [vmem:[#allocation2 + $0x100] sm:$0xff] %v832
        %944 = vst.msk [vmem:[#allocation2 + $0x108] sm:$0xff] %vm911, %v834
        %945 = vst [vmem:[#allocation2 + $0x110] sm:$0xff] %v836
        %946 = vst.msk [vmem:[#allocation2 + $0x118] sm:$0xff] %vm911, %v838
        %947 = vst [vmem:[#allocation2 + $0x120] sm:$0xff] %v842
        %948 = vst.msk [vmem:[#allocation2 + $0x128] sm:$0xff] %vm911, %v844
        %949 = vst [vmem:[#allocation2 + $0x130] sm:$0xff] %v846
        %950 = vst.msk [vmem:[#allocation2 + $0x138] sm:$0xff] %vm911, %v848
        %951 = vst [vmem:[#allocation2 + $0x140] sm:$0xff] %v852
        %952 = vst.msk [vmem:[#allocation2 + $0x148] sm:$0xff] %vm911, %v854
        %953 = vst [vmem:[#allocation2 + $0x150] sm:$0xff] %v856
        %954 = vst.msk [vmem:[#allocation2 + $0x158] sm:$0xff] %vm911, %v858
        %955 = vst [vmem:[#allocation2 + $0x160] sm:$0xff] %v862
        %956 = vst.msk [vmem:[#allocation2 + $0x168] sm:$0xff] %vm911, %v864
        %957 = vst [vmem:[#allocation2 + $0x170] sm:$0xff] %v866
        %958 = vst.msk [vmem:[#allocation2 + $0x178] sm:$0xff] %vm911, %v868
        %959 = vst [vmem:[#allocation2 + $0x180] sm:$0xff] %v872
        %960 = vst.msk [vmem:[#allocation2 + $0x188] sm:$0xff] %vm911, %v874
        %961 = vst [vmem:[#allocation2 + $0x190] sm:$0xff] %v876
        %962 = vst.msk [vmem:[#allocation2 + $0x198] sm:$0xff] %vm911, %v878
        %963 = vst [vmem:[#allocation2 + $0x1a0] sm:$0xff] %v882
        %964 = vst.msk [vmem:[#allocation2 + $0x1a8] sm:$0xff] %vm911, %v884
        %965 = vst [vmem:[#allocation2 + $0x1b0] sm:$0xff] %v886
        %966 = vst.msk [vmem:[#allocation2 + $0x1b8] sm:$0xff] %vm911, %v888
        %967 = vst [vmem:[#allocation2 + $0x1c0] sm:$0xff] %v892
        %968 = vst.msk [vmem:[#allocation2 + $0x1c8] sm:$0xff] %vm911, %v894
        %969 = vst [vmem:[#allocation2 + $0x1d0] sm:$0xff] %v896
        %970 = vst.msk [vmem:[#allocation2 + $0x1d8] sm:$0xff] %vm911, %v898
        %971 = vst [vmem:[#allocation2 + $0x1e0] sm:$0xff] %v902
        %972 = vst.msk [vmem:[#allocation2 + $0x1e8] sm:$0xff] %vm911, %v904
        %973 = vst [vmem:[#allocation2 + $0x1f0] sm:$0xff] %v906
        %974 = vst.msk [vmem:[#allocation2 + $0x1f8] sm:$0xff] %vm911, %v908
        %v975 = vld [vmem:[%s3] sm:$0xf]
        %v976 = vld [vmem:[%s3 + $0x4] sm:$0xf]
        %v977 = vld [vmem:[%s3 + $0x8] sm:$0xf]
        %v978 = vld [vmem:[%s3 + $0xc] sm:$0xf]
        %v979 = vld [vmem:[%s3 + $0x10] sm:$0xf]
        %v980 = vld [vmem:[%s3 + $0x14] sm:$0xf]
        %v981 = vld [vmem:[%s3 + $0x18] sm:$0xf]
        %v982 = vld [vmem:[%s3 + $0x1c] sm:$0xf]
        %v983 = vld [vmem:[%s4] sm:$0xf]
        %v984 = vld [vmem:[%s4 + $0x4] sm:$0xf]
        %v985 = vld [vmem:[%s4 + $0x8] sm:$0xf]
        %v986 = vld [vmem:[%s4 + $0xc] sm:$0xf]
        %v987 = vld [vmem:[%s4 + $0x10] sm:$0xf]
        %v988 = vld [vmem:[%s4 + $0x14] sm:$0xf]
        %v989 = vld [vmem:[%s4 + $0x18] sm:$0xf]
        %v990 = vld [vmem:[%s4 + $0x1c] sm:$0xf]
        %v991 = vld [vmem:[#allocation2] sm:$0xff]
        %v992 = vld [vmem:[#allocation2 + $0x8] sm:$0xff]
        %v993 = vld [vmem:[#allocation2 + $0x10] sm:$0xff]
        %v994 = vld [vmem:[#allocation2 + $0x18] sm:$0xff]
        %v1003 = vunpack.c.l.b16 %v975
        %v1004 = vunpack.c.l.b16 %v976
        %v1005 = vunpack.c.l.b16 %v977
        %v1006 = vunpack.c.l.b16 %v978
        %v1007 = vunpack.c.l.b16 %v979
        %v1008 = vunpack.c.l.b16 %v980
        %v1009 = vunpack.c.l.b16 %v981
        %v1010 = vunpack.c.l.b16 %v982
        %v1011 = vpack.c.b16 %v1004, %v1003
        %v1012 = vpack.c.b16 %v1006, %v1005
        %v1013 = vpack.c.b16 %v1008, %v1007
        %v1014 = vpack.c.b16 %v1010, %v1009
        %v1020 = vsel %vm911, 0, 0
        %1022 = vmatprep.subr.bf16.mxu0 0
        %1023 = vmatpush1.bf16.msra.mxu0 0
        %1024 = vmatprep.subr.bf16.mxu0 0
        %1025 = vmatpush1.bf16.msra.mxu0 0
        %1026 = vmatprep.subr.bf16.mxu0 0
        %1027 = vmatpush1.bf16.msra.mxu0 0
        %1028 = vmatprep.subr.bf16.mxu0 0
        %1029 = vmatpush1.bf16.msra.mxu0 0
        %1030 = vmatprep.subr.bf16.mxu0 0
        %1031 = vmatpush1.bf16.msra.mxu0 %v1014
        %1032 = vmatprep.subr.bf16.mxu0 0
        %1033 = vmatpush1.bf16.msra.mxu0 %v1013
        %1034 = vmatprep.subr.bf16.mxu0 0
        %1035 = vmatpush1.bf16.msra.mxu0 %v1012
        %1036 = vmatprep.subr.bf16.mxu0 0
        %1037 = vmatpush1.bf16.msra.mxu0 %v1011
        %1038 = vmatprep.subr.bf16.mxu0 0
        %1039 = vmatpush2.bf16.msra.mxu0 0
        %1040 = vmatprep.subr.bf16.mxu0 0
        %1041 = vmatpush2.bf16.msra.mxu0 0
        %1042 = vmatprep.subr.bf16.mxu0 0
        %1043 = vmatpush2.bf16.msra.mxu0 0
        %1044 = vmatprep.subr.bf16.mxu0 0
        %1045 = vmatpush2.bf16.msra.mxu0 0
        %1046 = vmatprep.subr.bf16.mxu0 0
        %1047 = vmatpush2.bf16.msra.mxu0 0
        %1048 = vmatprep.subr.bf16.mxu0 0
        %1049 = vmatpush2.bf16.msra.mxu0 0
        %1050 = vmatprep.subr.bf16.mxu0 0
        %1051 = vmatpush2.bf16.msra.mxu0 0
        %1052 = vmatprep.subr.bf16.mxu0 0
        %1053 = vmatpush2.bf16.msra.mxu0 0
        %1054 = vmatprep.mubr.bf16.mxu0 0
        %1055 = vmatmul.mubr.bf16.gmra.mxu0 %v1020
        %v1056 = vpop.f32.mrf.mxu0
        %v1057 = vadd.f32 0.0, %v1056
        %v1058 = vpop.f32.mrf.mxu0
        %v1059 = vpop.f32.mrf.mxu0
        %v1060 = vadd.f32 0.0, %v1059
        %v1061 = vpop.f32.mrf.mxu0
        %1062 = vdwg.mxu0
        %v1063 = vadd.f32 %v991, %v1057
        %v1064 = vadd.f32 %v993, %v1060
        %v1065 = vxor.u32 %v1063, 2147483648
        %v1066 = vxor.u32 %v1064, 2147483648
        %v1067 = vmul.f32 %v1065, 1.442695
        %v1068 = vpow.pop %v1067
        %v1069 = vmul.f32 %v1066, 1.442695
        %v1070 = vpow.pop %v1069
        %v1071 = vadd.f32 %v1068, 1.0
        %v1072 = vadd.f32 %v1070, 1.0
        %v1073 = vrcp.pop %v1071
        %v1074 = vmul.f32 1.0, %v1073
        %v1075 = vrcp.pop %v1072
        %v1076 = vmul.f32 1.0, %v1075
        %v1077 = vmul.f32 %v1074, 0.0
        %v1078 = vmul.f32 %v1076, 0.0
        %v1079 = vpack.c.bf16 %v1078, %v1077
        %1081 = vrot.lane.b32.xlu0 %v1079, 64
        %v1082 = vpop.permute.xlu0 %1081
        %v1091 = vunpack.c.l.b16 %v983
        %v1092 = vunpack.c.l.b16 %v984
        %v1093 = vunpack.c.l.b16 %v985
        %v1094 = vunpack.c.l.b16 %v986
        %v1095 = vunpack.c.l.b16 %v987
        %v1096 = vunpack.c.l.b16 %v988
        %v1097 = vunpack.c.l.b16 %v989
        %v1098 = vunpack.c.l.b16 %v990
        %v1099 = vpack.c.b16 %v1092, %v1091
        %v1100 = vpack.c.b16 %v1094, %v1093
        %v1101 = vpack.c.b16 %v1096, %v1095
        %v1102 = vpack.c.b16 %v1098, %v1097
        %v1108 = vsel %vm911, %v1082, 0
        %1110 = vmatprep.subr.bf16.mxu0 0
        %1111 = vmatpush1.bf16.msra.mxu0 0
        %1112 = vmatprep.subr.bf16.mxu0 0
        %1113 = vmatpush1.bf16.msra.mxu0 0
        %1114 = vmatprep.subr.bf16.mxu0 0
        %1115 = vmatpush1.bf16.msra.mxu0 0
        %1116 = vmatprep.subr.bf16.mxu0 0
        %1117 = vmatpush1.bf16.msra.mxu0 0
        %1118 = vmatprep.subr.bf16.mxu0 0
        %1119 = vmatpush1.bf16.msra.mxu0 %v1102
        %1120 = vmatprep.subr.bf16.mxu0 0
        %1121 = vmatpush1.bf16.msra.mxu0 %v1101
        %1122 = vmatprep.subr.bf16.mxu0 0
        %1123 = vmatpush1.bf16.msra.mxu0 %v1100
        %1124 = vmatprep.subr.bf16.mxu0 0
        %1125 = vmatpush1.bf16.msra.mxu0 %v1099
        %1126 = vmatprep.subr.bf16.mxu0 0
        %1127 = vmatpush2.bf16.msra.mxu0 0
        %1128 = vmatprep.subr.bf16.mxu0 0
        %1129 = vmatpush2.bf16.msra.mxu0 0
        %1130 = vmatprep.subr.bf16.mxu0 0
        %1131 = vmatpush2.bf16.msra.mxu0 0
        %1132 = vmatprep.subr.bf16.mxu0 0
        %1133 = vmatpush2.bf16.msra.mxu0 0
        %1134 = vmatprep.subr.bf16.mxu0 0
        %1135 = vmatpush2.bf16.msra.mxu0 0
        %1136 = vmatprep.subr.bf16.mxu0 0
        %1137 = vmatpush2.bf16.msra.mxu0 0
        %1138 = vmatprep.subr.bf16.mxu0 0
        %1139 = vmatpush2.bf16.msra.mxu0 0
        %1140 = vmatprep.subr.bf16.mxu0 0
        %1141 = vmatpush2.bf16.msra.mxu0 0
        %1142 = vmatprep.mubr.bf16.mxu0 0
        %1143 = vmatmul.mubr.bf16.gmra.mxu0 %v1108
        %v1144 = vpop.f32.mrf.mxu0
        %v1145 = vadd.f32 0.0, %v1144
        %v1146 = vpop.f32.mrf.mxu0
        %v1147 = vpop.f32.mrf.mxu0
        %v1148 = vadd.f32 0.0, %v1147
        %v1149 = vpop.f32.mrf.mxu0
        %1150 = vdwg.mxu0
        %v1151 = vadd.f32 %v992, %v1145
        %v1152 = vadd.f32 %v994, %v1148
        %v1153 = vtanh.pop %v1151
        %v1154 = vtanh.pop %v1152
        %v1155 = vsub.f32 1.0, %v1074
        %v1156 = vsub.f32 1.0, %v1076
        %v1157 = vmul.f32 %v1155, %v1153
        %v1158 = vmul.f32 %v1156, %v1154
        %v1159 = vadd.f32 %v1077, %v1157
        %v1160 = vadd.f32 %v1078, %v1158
        %s1161 = sld [smem:[#allocation3]]
        %v1162 = vstv %s1161
        %v1163 = vmul.f32 %v1162, %v1159
        %v1164 = vmul.f32 %v1162, %v1160
        %v1165 = vadd.f32 %v1163, 0.0
        %v1166 = vadd.f32 %v1164, 0.0
        %v1167 = vld [vmem:[#allocation2 + $0x20] sm:$0xff]
        %v1168 = vld [vmem:[#allocation2 + $0x28] sm:$0xff]
        %v1169 = vld [vmem:[#allocation2 + $0x30] sm:$0xff]
        %v1170 = vld [vmem:[#allocation2 + $0x38] sm:$0xff]
        %v1171 = vpack.c.bf16 %v1160, %v1159
        %v1173 = vsel %vm911, %v1171, 0
        %1175 = vmatprep.subr.bf16.mxu0 0
        %1176 = vmatpush1.bf16.msra.mxu0 0
        %1177 = vmatprep.subr.bf16.mxu0 0
        %1178 = vmatpush1.bf16.msra.mxu0 0
        %1179 = vmatprep.subr.bf16.mxu0 0
        %1180 = vmatpush1.bf16.msra.mxu0 0
        %1181 = vmatprep.subr.bf16.mxu0 0
        %1182 = vmatpush1.bf16.msra.mxu0 0
        %1183 = vmatprep.subr.bf16.mxu0 0
        %1184 = vmatpush1.bf16.msra.mxu0 %v1014
        %1185 = vmatprep.subr.bf16.mxu0 0
        %1186 = vmatpush1.bf16.msra.mxu0 %v1013
        %1187 = vmatprep.subr.bf16.mxu0 0
        %1188 = vmatpush1.bf16.msra.mxu0 %v1012
        %1189 = vmatprep.subr.bf16.mxu0 0
        %1190 = vmatpush1.bf16.msra.mxu0 %v1011
        %1191 = vmatprep.subr.bf16.mxu0 0
        %1192 = vmatpush2.bf16.msra.mxu0 0
        %1193 = vmatprep.subr.bf16.mxu0 0
        %1194 = vmatpush2.bf16.msra.mxu0 0
        %1195 = vmatprep.subr.bf16.mxu0 0
        %1196 = vmatpush2.bf16.msra.mxu0 0
        %1197 = vmatprep.subr.bf16.mxu0 0
        %1198 = vmatpush2.bf16.msra.mxu0 0
        %1199 = vmatprep.subr.bf16.mxu0 0
        %1200 = vmatpush2.bf16.msra.mxu0 0
        %1201 = vmatprep.subr.bf16.mxu0 0
        %1202 = vmatpush2.bf16.msra.mxu0 0
        %1203 = vmatprep.subr.bf16.mxu0 0
        %1204 = vmatpush2.bf16.msra.mxu0 0
        %1205 = vmatprep.subr.bf16.mxu0 0
        %1206 = vmatpush2.bf16.msra.mxu0 0
        %1207 = vmatprep.mubr.bf16.mxu0 0
        %1208 = vmatmul.mubr.bf16.gmra.mxu0 %v1173
        %v1209 = vpop.f32.mrf.mxu0
        %v1210 = vadd.f32 0.0, %v1209
        %v1211 = vpop.f32.mrf.mxu0
        %v1212 = vpop.f32.mrf.mxu0
        %v1213 = vadd.f32 0.0, %v1212
        %v1214 = vpop.f32.mrf.mxu0
        %1215 = vdwg.mxu0
        %v1216 = vadd.f32 %v1167, %v1210
        %v1217 = vadd.f32 %v1169, %v1213
        %v1218 = vxor.u32 %v1216, 2147483648
        %v1219 = vxor.u32 %v1217, 2147483648
        %v1220 = vmul.f32 %v1218, 1.442695
        %v1221 = vpow.pop %v1220
        %v1222 = vmul.f32 %v1219, 1.442695
        %v1223 = vpow.pop %v1222
        %v1224 = vadd.f32 %v1221, 1.0
        %v1225 = vadd.f32 %v1223, 1.0
        %v1226 = vrcp.pop %v1224
        %v1227 = vmul.f32 1.0, %v1226
        %v1228 = vrcp.pop %v1225
        %v1229 = vmul.f32 1.0, %v1228
        %1232 = vrot.lane.b32.xlu0 %v1227, 64
        %v1233 = vpop.permute.xlu0 %1232
        %1234 = vrot.lane.b32.xlu0 %v1229, 64
        %v1235 = vpop.permute.xlu0 %1234
        %v1238 = vmul.f32 %v1159, %v1233
        %v1239 = vmul.f32 %v1160, %v1235
        %v1240 = vpack.c.bf16 %v1239, %v1238
        %v1242 = vsel %vm911, %v1240, 0
        %1244 = vmatprep.subr.bf16.mxu0 0
        %1245 = vmatpush1.bf16.msra.mxu0 0
        %1246 = vmatprep.subr.bf16.mxu0 0
        %1247 = vmatpush1.bf16.msra.mxu0 0
        %1248 = vmatprep.subr.bf16.mxu0 0
        %1249 = vmatpush1.bf16.msra.mxu0 0
        %1250 = vmatprep.subr.bf16.mxu0 0
        %1251 = vmatpush1.bf16.msra.mxu0 0
        %1252 = vmatprep.subr.bf16.mxu0 0
        %1253 = vmatpush1.bf16.msra.mxu0 %v1102
        %1254 = vmatprep.subr.bf16.mxu0 0
        %1255 = vmatpush1.bf16.msra.mxu0 %v1101
        %1256 = vmatprep.subr.bf16.mxu0 0
        %1257 = vmatpush1.bf16.msra.mxu0 %v1100
        %1258 = vmatprep.subr.bf16.mxu0 0
        %1259 = vmatpush1.bf16.msra.mxu0 %v1099
        %1260 = vmatprep.subr.bf16.mxu0 0
        %1261 = vmatpush2.bf16.msra.mxu0 0
        %1262 = vmatprep.subr.bf16.mxu0 0
        %1263 = vmatpush2.bf16.msra.mxu0 0
        %1264 = vmatprep.subr.bf16.mxu0 0
        %1265 = vmatpush2.bf16.msra.mxu0 0
        %1266 = vmatprep.subr.bf16.mxu0 0
        %1267 = vmatpush2.bf16.msra.mxu0 0
        %1268 = vmatprep.subr.bf16.mxu0 0
        %1269 = vmatpush2.bf16.msra.mxu0 0
        %1270 = vmatprep.subr.bf16.mxu0 0
        %1271 = vmatpush2.bf16.msra.mxu0 0
        %1272 = vmatprep.subr.bf16.mxu0 0
        %1273 = vmatpush2.bf16.msra.mxu0 0
        %1274 = vmatprep.subr.bf16.mxu0 0
        %1275 = vmatpush2.bf16.msra.mxu0 0
        %1276 = vmatprep.mubr.bf16.mxu0 0
        %1277 = vmatmul.mubr.bf16.gmra.mxu0 %v1242
        %v1278 = vpop.f32.mrf.mxu0
        %v1279 = vadd.f32 0.0, %v1278
        %v1280 = vpop.f32.mrf.mxu0
        %v1281 = vpop.f32.mrf.mxu0
        %v1282 = vadd.f32 0.0, %v1281
        %v1283 = vpop.f32.mrf.mxu0
        %1284 = vdwg.mxu0
        %v1285 = vadd.f32 %v1168, %v1279
        %v1286 = vadd.f32 %v1170, %v1282
        %v1287 = vtanh.pop %v1285
        %v1288 = vtanh.pop %v1286
        %v1289 = vmul.f32 %v1227, %v1159
        %v1290 = vmul.f32 %v1229, %v1160
        %v1291 = vsub.f32 1.0, %v1227
        %v1292 = vsub.f32 1.0, %v1229
        %v1293 = vmul.f32 %v1291, %v1287
        %v1294 = vmul.f32 %v1292, %v1288
        %v1295 = vadd.f32 %v1289, %v1293
        %v1296 = vadd.f32 %v1290, %v1294
        %s1297 = sld [smem:[#allocation3 + $0x1]]
        %v1298 = vstv %s1297
        %v1299 = vmul.f32 %v1298, %v1295
        %v1300 = vmul.f32 %v1298, %v1296
        %v1301 = vadd.f32 %v1165, %v1299
        %v1302 = vadd.f32 %v1166, %v1300
        %v1303 = vld [vmem:[#allocation2 + $0x40] sm:$0xff]
        %v1304 = vld [vmem:[#allocation2 + $0x48] sm:$0xff]
        %v1305 = vld [vmem:[#allocation2 + $0x50] sm:$0xff]
        %v1306 = vld [vmem:[#allocation2 + $0x58] sm:$0xff]
        %v1307 = vpack.c.bf16 %v1296, %v1295
        %v1309 = vsel %vm911, %v1307, 0
        %1311 = vmatprep.subr.bf16.mxu0 0
        %1312 = vmatpush1.bf16.msra.mxu0 0
        %1313 = vmatprep.subr.bf16.mxu0 0
        %1314 = vmatpush1.bf16.msra.mxu0 0
        %1315 = vmatprep.subr.bf16.mxu0 0
        %1316 = vmatpush1.bf16.msra.mxu0 0
        %1317 = vmatprep.subr.bf16.mxu0 0
        %1318 = vmatpush1.bf16.msra.mxu0 0
        %1319 = vmatprep.subr.bf16.mxu0 0
        %1320 = vmatpush1.bf16.msra.mxu0 %v1014
        %1321 = vmatprep.subr.bf16.mxu0 0
        %1322 = vmatpush1.bf16.msra.mxu0 %v1013
        %1323 = vmatprep.subr.bf16.mxu0 0
        %1324 = vmatpush1.bf16.msra.mxu0 %v1012
        %1325 = vmatprep.subr.bf16.mxu0 0
        %1326 = vmatpush1.bf16.msra.mxu0 %v1011
        %1327 = vmatprep.subr.bf16.mxu0 0
        %1328 = vmatpush2.bf16.msra.mxu0 0
        %1329 = vmatprep.subr.bf16.mxu0 0
        %1330 = vmatpush2.bf16.msra.mxu0 0
        %1331 = vmatprep.subr.bf16.mxu0 0
        %1332 = vmatpush2.bf16.msra.mxu0 0
        %1333 = vmatprep.subr.bf16.mxu0 0
        %1334 = vmatpush2.bf16.msra.mxu0 0
        %1335 = vmatprep.subr.bf16.mxu0 0
        %1336 = vmatpush2.bf16.msra.mxu0 0
        %1337 = vmatprep.subr.bf16.mxu0 0
        %1338 = vmatpush2.bf16.msra.mxu0 0
        %1339 = vmatprep.subr.bf16.mxu0 0
        %1340 = vmatpush2.bf16.msra.mxu0 0
        %1341 = vmatprep.subr.bf16.mxu0 0
        %1342 = vmatpush2.bf16.msra.mxu0 0
        %1343 = vmatprep.mubr.bf16.mxu0 0
        %1344 = vmatmul.mubr.bf16.gmra.mxu0 %v1309
        %v1345 = vpop.f32.mrf.mxu0
        %v1346 = vadd.f32 0.0, %v1345
        %v1347 = vpop.f32.mrf.mxu0
        %v1348 = vpop.f32.mrf.mxu0
        %v1349 = vadd.f32 0.0, %v1348
        %v1350 = vpop.f32.mrf.mxu0
        %1351 = vdwg.mxu0
        %v1352 = vadd.f32 %v1303, %v1346
        %v1353 = vadd.f32 %v1305, %v1349
        %v1354 = vxor.u32 %v1352, 2147483648
        %v1355 = vxor.u32 %v1353, 2147483648
        %v1356 = vmul.f32 %v1354, 1.442695
        %v1357 = vpow.pop %v1356
        %v1358 = vmul.f32 %v1355, 1.442695
        %v1359 = vpow.pop %v1358
        %v1360 = vadd.f32 %v1357, 1.0
        %v1361 = vadd.f32 %v1359, 1.0
        %v1362 = vrcp.pop %v1360
        %v1363 = vmul.f32 1.0, %v1362
        %v1364 = vrcp.pop %v1361
        %v1365 = vmul.f32 1.0, %v1364
        %1368 = vrot.lane.b32.xlu0 %v1363, 64
        %v1369 = vpop.permute.xlu0 %1368
        %1370 = vrot.lane.b32.xlu0 %v1365, 64
        %v1371 = vpop.permute.xlu0 %1370
        %v1374 = vmul.f32 %v1295, %v1369
        %v1375 = vmul.f32 %v1296, %v1371
        %v1376 = vpack.c.bf16 %v1375, %v1374
        %v1378 = vsel %vm911, %v1376, 0
        %1380 = vmatprep.subr.bf16.mxu0 0
        %1381 = vmatpush1.bf16.msra.mxu0 0
        %1382 = vmatprep.subr.bf16.mxu0 0
        %1383 = vmatpush1.bf16.msra.mxu0 0
        %1384 = vmatprep.subr.bf16.mxu0 0
        %1385 = vmatpush1.bf16.msra.mxu0 0
        %1386 = vmatprep.subr.bf16.mxu0 0
        %1387 = vmatpush1.bf16.msra.mxu0 0
        %1388 = vmatprep.subr.bf16.mxu0 0
        %1389 = vmatpush1.bf16.msra.mxu0 %v1102
        %1390 = vmatprep.subr.bf16.mxu0 0
        %1391 = vmatpush1.bf16.msra.mxu0 %v1101
        %1392 = vmatprep.subr.bf16.mxu0 0
        %1393 = vmatpush1.bf16.msra.mxu0 %v1100
        %1394 = vmatprep.subr.bf16.mxu0 0
        %1395 = vmatpush1.bf16.msra.mxu0 %v1099
        %1396 = vmatprep.subr.bf16.mxu0 0
        %1397 = vmatpush2.bf16.msra.mxu0 0
        %1398 = vmatprep.subr.bf16.mxu0 0
        %1399 = vmatpush2.bf16.msra.mxu0 0
        %1400 = vmatprep.subr.bf16.mxu0 0
        %1401 = vmatpush2.bf16.msra.mxu0 0
        %1402 = vmatprep.subr.bf16.mxu0 0
        %1403 = vmatpush2.bf16.msra.mxu0 0
        %1404 = vmatprep.subr.bf16.mxu0 0
        %1405 = vmatpush2.bf16.msra.mxu0 0
        %1406 = vmatprep.subr.bf16.mxu0 0
        %1407 = vmatpush2.bf16.msra.mxu0 0
        %1408 = vmatprep.subr.bf16.mxu0 0
        %1409 = vmatpush2.bf16.msra.mxu0 0
        %1410 = vmatprep.subr.bf16.mxu0 0
        %1411 = vmatpush2.bf16.msra.mxu0 0
        %1412 = vmatprep.mubr.bf16.mxu0 0
        %1413 = vmatmul.mubr.bf16.gmra.mxu0 %v1378
        %v1414 = vpop.f32.mrf.mxu0
        %v1415 = vadd.f32 0.0, %v1414
        %v1416 = vpop.f32.mrf.mxu0
        %v1417 = vpop.f32.mrf.mxu0
        %v1418 = vadd.f32 0.0, %v1417
        %v1419 = vpop.f32.mrf.mxu0
        %1420 = vdwg.mxu0
        %v1421 = vadd.f32 %v1304, %v1415
        %v1422 = vadd.f32 %v1306, %v1418
        %v1423 = vtanh.pop %v1421
        %v1424 = vtanh.pop %v1422
        %v1425 = vmul.f32 %v1363, %v1295
        %v1426 = vmul.f32 %v1365, %v1296
        %v1427 = vsub.f32 1.0, %v1363
        %v1428 = vsub.f32 1.0, %v1365
        %v1429 = vmul.f32 %v1427, %v1423
        %v1430 = vmul.f32 %v1428, %v1424
        %v1431 = vadd.f32 %v1425, %v1429
        %v1432 = vadd.f32 %v1426, %v1430
        %s1433 = sld [smem:[#allocation3 + $0x2]]
        %v1434 = vstv %s1433
        %v1435 = vmul.f32 %v1434, %v1431
        %v1436 = vmul.f32 %v1434, %v1432
        %v1437 = vadd.f32 %v1301, %v1435
        %v1438 = vadd.f32 %v1302, %v1436
        %v1439 = vld [vmem:[#allocation2 + $0x60] sm:$0xff]
        %v1440 = vld [vmem:[#allocation2 + $0x68] sm:$0xff]
        %v1441 = vld [vmem:[#allocation2 + $0x70] sm:$0xff]
        %v1442 = vld [vmem:[#allocation2 + $0x78] sm:$0xff]
        %v1443 = vpack.c.bf16 %v1432, %v1431
        %v1445 = vsel %vm911, %v1443, 0
        %1447 = vmatprep.subr.bf16.mxu0 0
        %1448 = vmatpush1.bf16.msra.mxu0 0
        %1449 = vmatprep.subr.bf16.mxu0 0
        %1450 = vmatpush1.bf16.msra.mxu0 0
        %1451 = vmatprep.subr.bf16.mxu0 0
        %1452 = vmatpush1.bf16.msra.mxu0 0
        %1453 = vmatprep.subr.bf16.mxu0 0
        %1454 = vmatpush1.bf16.msra.mxu0 0
        %1455 = vmatprep.subr.bf16.mxu0 0
        %1456 = vmatpush1.bf16.msra.mxu0 %v1014
        %1457 = vmatprep.subr.bf16.mxu0 0
        %1458 = vmatpush1.bf16.msra.mxu0 %v1013
        %1459 = vmatprep.subr.bf16.mxu0 0
        %1460 = vmatpush1.bf16.msra.mxu0 %v1012
        %1461 = vmatprep.subr.bf16.mxu0 0
        %1462 = vmatpush1.bf16.msra.mxu0 %v1011
        %1463 = vmatprep.subr.bf16.mxu0 0
        %1464 = vmatpush2.bf16.msra.mxu0 0
        %1465 = vmatprep.subr.bf16.mxu0 0
        %1466 = vmatpush2.bf16.msra.mxu0 0
        %1467 = vmatprep.subr.bf16.mxu0 0
        %1468 = vmatpush2.bf16.msra.mxu0 0
        %1469 = vmatprep.subr.bf16.mxu0 0
        %1470 = vmatpush2.bf16.msra.mxu0 0
        %1471 = vmatprep.subr.bf16.mxu0 0
        %1472 = vmatpush2.bf16.msra.mxu0 0
        %1473 = vmatprep.subr.bf16.mxu0 0
        %1474 = vmatpush2.bf16.msra.mxu0 0
        %1475 = vmatprep.subr.bf16.mxu0 0
        %1476 = vmatpush2.bf16.msra.mxu0 0
        %1477 = vmatprep.subr.bf16.mxu0 0
        %1478 = vmatpush2.bf16.msra.mxu0 0
        %1479 = vmatprep.mubr.bf16.mxu0 0
        %1480 = vmatmul.mubr.bf16.gmra.mxu0 %v1445
        %v1481 = vpop.f32.mrf.mxu0
        %v1482 = vadd.f32 0.0, %v1481
        %v1483 = vpop.f32.mrf.mxu0
        %v1484 = vpop.f32.mrf.mxu0
        %v1485 = vadd.f32 0.0, %v1484
        %v1486 = vpop.f32.mrf.mxu0
        %1487 = vdwg.mxu0
        %v1488 = vadd.f32 %v1439, %v1482
        %v1489 = vadd.f32 %v1441, %v1485
        %v1490 = vxor.u32 %v1488, 2147483648
        %v1491 = vxor.u32 %v1489, 2147483648
        %v1492 = vmul.f32 %v1490, 1.442695
        %v1493 = vpow.pop %v1492
        %v1494 = vmul.f32 %v1491, 1.442695
        %v1495 = vpow.pop %v1494
        %v1496 = vadd.f32 %v1493, 1.0
        %v1497 = vadd.f32 %v1495, 1.0
        %v1498 = vrcp.pop %v1496
        %v1499 = vmul.f32 1.0, %v1498
        %v1500 = vrcp.pop %v1497
        %v1501 = vmul.f32 1.0, %v1500
        %1504 = vrot.lane.b32.xlu0 %v1499, 64
        %v1505 = vpop.permute.xlu0 %1504
        %1506 = vrot.lane.b32.xlu0 %v1501, 64
        %v1507 = vpop.permute.xlu0 %1506
        %v1510 = vmul.f32 %v1431, %v1505
        %v1511 = vmul.f32 %v1432, %v1507
        %v1512 = vpack.c.bf16 %v1511, %v1510
        %v1514 = vsel %vm911, %v1512, 0
        %1516 = vmatprep.subr.bf16.mxu0 0
        %1517 = vmatpush1.bf16.msra.mxu0 0
        %1518 = vmatprep.subr.bf16.mxu0 0
        %1519 = vmatpush1.bf16.msra.mxu0 0
        %1520 = vmatprep.subr.bf16.mxu0 0
        %1521 = vmatpush1.bf16.msra.mxu0 0
        %1522 = vmatprep.subr.bf16.mxu0 0
        %1523 = vmatpush1.bf16.msra.mxu0 0
        %1524 = vmatprep.subr.bf16.mxu0 0
        %1525 = vmatpush1.bf16.msra.mxu0 %v1102
        %1526 = vmatprep.subr.bf16.mxu0 0
        %1527 = vmatpush1.bf16.msra.mxu0 %v1101
        %1528 = vmatprep.subr.bf16.mxu0 0
        %1529 = vmatpush1.bf16.msra.mxu0 %v1100
        %1530 = vmatprep.subr.bf16.mxu0 0
        %1531 = vmatpush1.bf16.msra.mxu0 %v1099
        %1532 = vmatprep.subr.bf16.mxu0 0
        %1533 = vmatpush2.bf16.msra.mxu0 0
        %1534 = vmatprep.subr.bf16.mxu0 0
        %1535 = vmatpush2.bf16.msra.mxu0 0
        %1536 = vmatprep.subr.bf16.mxu0 0
        %1537 = vmatpush2.bf16.msra.mxu0 0
        %1538 = vmatprep.subr.bf16.mxu0 0
        %1539 = vmatpush2.bf16.msra.mxu0 0
        %1540 = vmatprep.subr.bf16.mxu0 0
        %1541 = vmatpush2.bf16.msra.mxu0 0
        %1542 = vmatprep.subr.bf16.mxu0 0
        %1543 = vmatpush2.bf16.msra.mxu0 0
        %1544 = vmatprep.subr.bf16.mxu0 0
        %1545 = vmatpush2.bf16.msra.mxu0 0
        %1546 = vmatprep.subr.bf16.mxu0 0
        %1547 = vmatpush2.bf16.msra.mxu0 0
        %1548 = vmatprep.mubr.bf16.mxu0 0
        %1549 = vmatmul.mubr.bf16.gmra.mxu0 %v1514
        %v1550 = vpop.f32.mrf.mxu0
        %v1551 = vadd.f32 0.0, %v1550
        %v1552 = vpop.f32.mrf.mxu0
        %v1553 = vpop.f32.mrf.mxu0
        %v1554 = vadd.f32 0.0, %v1553
        %v1555 = vpop.f32.mrf.mxu0
        %1556 = vdwg.mxu0
        %v1557 = vadd.f32 %v1440, %v1551
        %v1558 = vadd.f32 %v1442, %v1554
        %v1559 = vtanh.pop %v1557
        %v1560 = vtanh.pop %v1558
        %v1561 = vmul.f32 %v1499, %v1431
        %v1562 = vmul.f32 %v1501, %v1432
        %v1563 = vsub.f32 1.0, %v1499
        %v1564 = vsub.f32 1.0, %v1501
        %v1565 = vmul.f32 %v1563, %v1559
        %v1566 = vmul.f32 %v1564, %v1560
        %v1567 = vadd.f32 %v1561, %v1565
        %v1568 = vadd.f32 %v1562, %v1566
        %s1569 = sld [smem:[#allocation3 + $0x3]]
        %v1570 = vstv %s1569
        %v1571 = vmul.f32 %v1570, %v1567
        %v1572 = vmul.f32 %v1570, %v1568
        %v1573 = vadd.f32 %v1437, %v1571
        %v1574 = vadd.f32 %v1438, %v1572
        %v1575 = vld [vmem:[#allocation2 + $0x80] sm:$0xff]
        %v1576 = vld [vmem:[#allocation2 + $0x88] sm:$0xff]
        %v1577 = vld [vmem:[#allocation2 + $0x90] sm:$0xff]
        %v1578 = vld [vmem:[#allocation2 + $0x98] sm:$0xff]
        %v1579 = vpack.c.bf16 %v1568, %v1567
        %v1581 = vsel %vm911, %v1579, 0
        %1583 = vmatprep.subr.bf16.mxu0 0
        %1584 = vmatpush1.bf16.msra.mxu0 0
        %1585 = vmatprep.subr.bf16.mxu0 0
        %1586 = vmatpush1.bf16.msra.mxu0 0
        %1587 = vmatprep.subr.bf16.mxu0 0
        %1588 = vmatpush1.bf16.msra.mxu0 0
        %1589 = vmatprep.subr.bf16.mxu0 0
        %1590 = vmatpush1.bf16.msra.mxu0 0
        %1591 = vmatprep.subr.bf16.mxu0 0
        %1592 = vmatpush1.bf16.msra.mxu0 %v1014
        %1593 = vmatprep.subr.bf16.mxu0 0
        %1594 = vmatpush1.bf16.msra.mxu0 %v1013
        %1595 = vmatprep.subr.bf16.mxu0 0
        %1596 = vmatpush1.bf16.msra.mxu0 %v1012
        %1597 = vmatprep.subr.bf16.mxu0 0
        %1598 = vmatpush1.bf16.msra.mxu0 %v1011
        %1599 = vmatprep.subr.bf16.mxu0 0
        %1600 = vmatpush2.bf16.msra.mxu0 0
        %1601 = vmatprep.subr.bf16.mxu0 0
        %1602 = vmatpush2.bf16.msra.mxu0 0
        %1603 = vmatprep.subr.bf16.mxu0 0
        %1604 = vmatpush2.bf16.msra.mxu0 0
        %1605 = vmatprep.subr.bf16.mxu0 0
        %1606 = vmatpush2.bf16.msra.mxu0 0
        %1607 = vmatprep.subr.bf16.mxu0 0
        %1608 = vmatpush2.bf16.msra.mxu0 0
        %1609 = vmatprep.subr.bf16.mxu0 0
        %1610 = vmatpush2.bf16.msra.mxu0 0
        %1611 = vmatprep.subr.bf16.mxu0 0
        %1612 = vmatpush2.bf16.msra.mxu0 0
        %1613 = vmatprep.subr.bf16.mxu0 0
        %1614 = vmatpush2.bf16.msra.mxu0 0
        %1615 = vmatprep.mubr.bf16.mxu0 0
        %1616 = vmatmul.mubr.bf16.gmra.mxu0 %v1581
        %v1617 = vpop.f32.mrf.mxu0
        %v1618 = vadd.f32 0.0, %v1617
        %v1619 = vpop.f32.mrf.mxu0
        %v1620 = vpop.f32.mrf.mxu0
        %v1621 = vadd.f32 0.0, %v1620
        %v1622 = vpop.f32.mrf.mxu0
        %1623 = vdwg.mxu0
        %v1624 = vadd.f32 %v1575, %v1618
        %v1625 = vadd.f32 %v1577, %v1621
        %v1626 = vxor.u32 %v1624, 2147483648
        %v1627 = vxor.u32 %v1625, 2147483648
        %v1628 = vmul.f32 %v1626, 1.442695
        %v1629 = vpow.pop %v1628
        %v1630 = vmul.f32 %v1627, 1.442695
        %v1631 = vpow.pop %v1630
        %v1632 = vadd.f32 %v1629, 1.0
        %v1633 = vadd.f32 %v1631, 1.0
        %v1634 = vrcp.pop %v1632
        %v1635 = vmul.f32 1.0, %v1634
        %v1636 = vrcp.pop %v1633
        %v1637 = vmul.f32 1.0, %v1636
        %1640 = vrot.lane.b32.xlu0 %v1635, 64
        %v1641 = vpop.permute.xlu0 %1640
        %1642 = vrot.lane.b32.xlu0 %v1637, 64
        %v1643 = vpop.permute.xlu0 %1642
        %v1646 = vmul.f32 %v1567, %v1641
        %v1647 = vmul.f32 %v1568, %v1643
        %v1648 = vpack.c.bf16 %v1647, %v1646
        %v1650 = vsel %vm911, %v1648, 0
        %1652 = vmatprep.subr.bf16.mxu0 0
        %1653 = vmatpush1.bf16.msra.mxu0 0
        %1654 = vmatprep.subr.bf16.mxu0 0
        %1655 = vmatpush1.bf16.msra.mxu0 0
        %1656 = vmatprep.subr.bf16.mxu0 0
        %1657 = vmatpush1.bf16.msra.mxu0 0
        %1658 = vmatprep.subr.bf16.mxu0 0
        %1659 = vmatpush1.bf16.msra.mxu0 0
        %1660 = vmatprep.subr.bf16.mxu0 0
        %1661 = vmatpush1.bf16.msra.mxu0 %v1102
        %1662 = vmatprep.subr.bf16.mxu0 0
        %1663 = vmatpush1.bf16.msra.mxu0 %v1101
        %1664 = vmatprep.subr.bf16.mxu0 0
        %1665 = vmatpush1.bf16.msra.mxu0 %v1100
        %1666 = vmatprep.subr.bf16.mxu0 0
        %1667 = vmatpush1.bf16.msra.mxu0 %v1099
        %1668 = vmatprep.subr.bf16.mxu0 0
        %1669 = vmatpush2.bf16.msra.mxu0 0
        %1670 = vmatprep.subr.bf16.mxu0 0
        %1671 = vmatpush2.bf16.msra.mxu0 0
        %1672 = vmatprep.subr.bf16.mxu0 0
        %1673 = vmatpush2.bf16.msra.mxu0 0
        %1674 = vmatprep.subr.bf16.mxu0 0
        %1675 = vmatpush2.bf16.msra.mxu0 0
        %1676 = vmatprep.subr.bf16.mxu0 0
        %1677 = vmatpush2.bf16.msra.mxu0 0
        %1678 = vmatprep.subr.bf16.mxu0 0
        %1679 = vmatpush2.bf16.msra.mxu0 0
        %1680 = vmatprep.subr.bf16.mxu0 0
        %1681 = vmatpush2.bf16.msra.mxu0 0
        %1682 = vmatprep.subr.bf16.mxu0 0
        %1683 = vmatpush2.bf16.msra.mxu0 0
        %1684 = vmatprep.mubr.bf16.mxu0 0
        %1685 = vmatmul.mubr.bf16.gmra.mxu0 %v1650
        %v1686 = vpop.f32.mrf.mxu0
        %v1687 = vadd.f32 0.0, %v1686
        %v1688 = vpop.f32.mrf.mxu0
        %v1689 = vpop.f32.mrf.mxu0
        %v1690 = vadd.f32 0.0, %v1689
        %v1691 = vpop.f32.mrf.mxu0
        %1692 = vdwg.mxu0
        %v1693 = vadd.f32 %v1576, %v1687
        %v1694 = vadd.f32 %v1578, %v1690
        %v1695 = vtanh.pop %v1693
        %v1696 = vtanh.pop %v1694
        %v1697 = vmul.f32 %v1635, %v1567
        %v1698 = vmul.f32 %v1637, %v1568
        %v1699 = vsub.f32 1.0, %v1635
        %v1700 = vsub.f32 1.0, %v1637
        %v1701 = vmul.f32 %v1699, %v1695
        %v1702 = vmul.f32 %v1700, %v1696
        %v1703 = vadd.f32 %v1697, %v1701
        %v1704 = vadd.f32 %v1698, %v1702
        %s1705 = sld [smem:[#allocation3 + $0x4]]
        %v1706 = vstv %s1705
        %v1707 = vmul.f32 %v1706, %v1703
        %v1708 = vmul.f32 %v1706, %v1704
        %v1709 = vadd.f32 %v1573, %v1707
        %v1710 = vadd.f32 %v1574, %v1708
        %v1711 = vld [vmem:[#allocation2 + $0xa0] sm:$0xff]
        %v1712 = vld [vmem:[#allocation2 + $0xa8] sm:$0xff]
        %v1713 = vld [vmem:[#allocation2 + $0xb0] sm:$0xff]
        %v1714 = vld [vmem:[#allocation2 + $0xb8] sm:$0xff]
        %v1715 = vpack.c.bf16 %v1704, %v1703
        %v1717 = vsel %vm911, %v1715, 0
        %1719 = vmatprep.subr.bf16.mxu0 0
        %1720 = vmatpush1.bf16.msra.mxu0 0
        %1721 = vmatprep.subr.bf16.mxu0 0
        %1722 = vmatpush1.bf16.msra.mxu0 0
        %1723 = vmatprep.subr.bf16.mxu0 0
        %1724 = vmatpush1.bf16.msra.mxu0 0
        %1725 = vmatprep.subr.bf16.mxu0 0
        %1726 = vmatpush1.bf16.msra.mxu0 0
        %1727 = vmatprep.subr.bf16.mxu0 0
        %1728 = vmatpush1.bf16.msra.mxu0 %v1014
        %1729 = vmatprep.subr.bf16.mxu0 0
        %1730 = vmatpush1.bf16.msra.mxu0 %v1013
        %1731 = vmatprep.subr.bf16.mxu0 0
        %1732 = vmatpush1.bf16.msra.mxu0 %v1012
        %1733 = vmatprep.subr.bf16.mxu0 0
        %1734 = vmatpush1.bf16.msra.mxu0 %v1011
        %1735 = vmatprep.subr.bf16.mxu0 0
        %1736 = vmatpush2.bf16.msra.mxu0 0
        %1737 = vmatprep.subr.bf16.mxu0 0
        %1738 = vmatpush2.bf16.msra.mxu0 0
        %1739 = vmatprep.subr.bf16.mxu0 0
        %1740 = vmatpush2.bf16.msra.mxu0 0
        %1741 = vmatprep.subr.bf16.mxu0 0
        %1742 = vmatpush2.bf16.msra.mxu0 0
        %1743 = vmatprep.subr.bf16.mxu0 0
        %1744 = vmatpush2.bf16.msra.mxu0 0
        %1745 = vmatprep.subr.bf16.mxu0 0
        %1746 = vmatpush2.bf16.msra.mxu0 0
        %1747 = vmatprep.subr.bf16.mxu0 0
        %1748 = vmatpush2.bf16.msra.mxu0 0
        %1749 = vmatprep.subr.bf16.mxu0 0
        %1750 = vmatpush2.bf16.msra.mxu0 0
        %1751 = vmatprep.mubr.bf16.mxu0 0
        %1752 = vmatmul.mubr.bf16.gmra.mxu0 %v1717
        %v1753 = vpop.f32.mrf.mxu0
        %v1754 = vadd.f32 0.0, %v1753
        %v1755 = vpop.f32.mrf.mxu0
        %v1756 = vpop.f32.mrf.mxu0
        %v1757 = vadd.f32 0.0, %v1756
        %v1758 = vpop.f32.mrf.mxu0
        %1759 = vdwg.mxu0
        %v1760 = vadd.f32 %v1711, %v1754
        %v1761 = vadd.f32 %v1713, %v1757
        %v1762 = vxor.u32 %v1760, 2147483648
        %v1763 = vxor.u32 %v1761, 2147483648
        %v1764 = vmul.f32 %v1762, 1.442695
        %v1765 = vpow.pop %v1764
        %v1766 = vmul.f32 %v1763, 1.442695
        %v1767 = vpow.pop %v1766
        %v1768 = vadd.f32 %v1765, 1.0
        %v1769 = vadd.f32 %v1767, 1.0
        %v1770 = vrcp.pop %v1768
        %v1771 = vmul.f32 1.0, %v1770
        %v1772 = vrcp.pop %v1769
        %v1773 = vmul.f32 1.0, %v1772
        %1776 = vrot.lane.b32.xlu0 %v1771, 64
        %v1777 = vpop.permute.xlu0 %1776
        %1778 = vrot.lane.b32.xlu0 %v1773, 64
        %v1779 = vpop.permute.xlu0 %1778
        %v1782 = vmul.f32 %v1703, %v1777
        %v1783 = vmul.f32 %v1704, %v1779
        %v1784 = vpack.c.bf16 %v1783, %v1782
        %v1786 = vsel %vm911, %v1784, 0
        %1788 = vmatprep.subr.bf16.mxu0 0
        %1789 = vmatpush1.bf16.msra.mxu0 0
        %1790 = vmatprep.subr.bf16.mxu0 0
        %1791 = vmatpush1.bf16.msra.mxu0 0
        %1792 = vmatprep.subr.bf16.mxu0 0
        %1793 = vmatpush1.bf16.msra.mxu0 0
        %1794 = vmatprep.subr.bf16.mxu0 0
        %1795 = vmatpush1.bf16.msra.mxu0 0
        %1796 = vmatprep.subr.bf16.mxu0 0
        %1797 = vmatpush1.bf16.msra.mxu0 %v1102
        %1798 = vmatprep.subr.bf16.mxu0 0
        %1799 = vmatpush1.bf16.msra.mxu0 %v1101
        %1800 = vmatprep.subr.bf16.mxu0 0
        %1801 = vmatpush1.bf16.msra.mxu0 %v1100
        %1802 = vmatprep.subr.bf16.mxu0 0
        %1803 = vmatpush1.bf16.msra.mxu0 %v1099
        %1804 = vmatprep.subr.bf16.mxu0 0
        %1805 = vmatpush2.bf16.msra.mxu0 0
        %1806 = vmatprep.subr.bf16.mxu0 0
        %1807 = vmatpush2.bf16.msra.mxu0 0
        %1808 = vmatprep.subr.bf16.mxu0 0
        %1809 = vmatpush2.bf16.msra.mxu0 0
        %1810 = vmatprep.subr.bf16.mxu0 0
        %1811 = vmatpush2.bf16.msra.mxu0 0
        %1812 = vmatprep.subr.bf16.mxu0 0
        %1813 = vmatpush2.bf16.msra.mxu0 0
        %1814 = vmatprep.subr.bf16.mxu0 0
        %1815 = vmatpush2.bf16.msra.mxu0 0
        %1816 = vmatprep.subr.bf16.mxu0 0
        %1817 = vmatpush2.bf16.msra.mxu0 0
        %1818 = vmatprep.subr.bf16.mxu0 0
        %1819 = vmatpush2.bf16.msra.mxu0 0
        %1820 = vmatprep.mubr.bf16.mxu0 0
        %1821 = vmatmul.mubr.bf16.gmra.mxu0 %v1786
        %v1822 = vpop.f32.mrf.mxu0
        %v1823 = vadd.f32 0.0, %v1822
        %v1824 = vpop.f32.mrf.mxu0
        %v1825 = vpop.f32.mrf.mxu0
        %v1826 = vadd.f32 0.0, %v1825
        %v1827 = vpop.f32.mrf.mxu0
        %1828 = vdwg.mxu0
        %v1829 = vadd.f32 %v1712, %v1823
        %v1830 = vadd.f32 %v1714, %v1826
        %v1831 = vtanh.pop %v1829
        %v1832 = vtanh.pop %v1830
        %v1833 = vmul.f32 %v1771, %v1703
        %v1834 = vmul.f32 %v1773, %v1704
        %v1835 = vsub.f32 1.0, %v1771
        %v1836 = vsub.f32 1.0, %v1773
        %v1837 = vmul.f32 %v1835, %v1831
        %v1838 = vmul.f32 %v1836, %v1832
        %v1839 = vadd.f32 %v1833, %v1837
        %v1840 = vadd.f32 %v1834, %v1838
        %s1841 = sld [smem:[#allocation3 + $0x5]]
        %v1842 = vstv %s1841
        %v1843 = vmul.f32 %v1842, %v1839
        %v1844 = vmul.f32 %v1842, %v1840
        %v1845 = vadd.f32 %v1709, %v1843
        %v1846 = vadd.f32 %v1710, %v1844
        %v1847 = vld [vmem:[#allocation2 + $0xc0] sm:$0xff]
        %v1848 = vld [vmem:[#allocation2 + $0xc8] sm:$0xff]
        %v1849 = vld [vmem:[#allocation2 + $0xd0] sm:$0xff]
        %v1850 = vld [vmem:[#allocation2 + $0xd8] sm:$0xff]
        %v1851 = vpack.c.bf16 %v1840, %v1839
        %v1853 = vsel %vm911, %v1851, 0
        %1855 = vmatprep.subr.bf16.mxu0 0
        %1856 = vmatpush1.bf16.msra.mxu0 0
        %1857 = vmatprep.subr.bf16.mxu0 0
        %1858 = vmatpush1.bf16.msra.mxu0 0
        %1859 = vmatprep.subr.bf16.mxu0 0
        %1860 = vmatpush1.bf16.msra.mxu0 0
        %1861 = vmatprep.subr.bf16.mxu0 0
        %1862 = vmatpush1.bf16.msra.mxu0 0
        %1863 = vmatprep.subr.bf16.mxu0 0
        %1864 = vmatpush1.bf16.msra.mxu0 %v1014
        %1865 = vmatprep.subr.bf16.mxu0 0
        %1866 = vmatpush1.bf16.msra.mxu0 %v1013
        %1867 = vmatprep.subr.bf16.mxu0 0
        %1868 = vmatpush1.bf16.msra.mxu0 %v1012
        %1869 = vmatprep.subr.bf16.mxu0 0
        %1870 = vmatpush1.bf16.msra.mxu0 %v1011
        %1871 = vmatprep.subr.bf16.mxu0 0
        %1872 = vmatpush2.bf16.msra.mxu0 0
        %1873 = vmatprep.subr.bf16.mxu0 0
        %1874 = vmatpush2.bf16.msra.mxu0 0
        %1875 = vmatprep.subr.bf16.mxu0 0
        %1876 = vmatpush2.bf16.msra.mxu0 0
        %1877 = vmatprep.subr.bf16.mxu0 0
        %1878 = vmatpush2.bf16.msra.mxu0 0
        %1879 = vmatprep.subr.bf16.mxu0 0
        %1880 = vmatpush2.bf16.msra.mxu0 0
        %1881 = vmatprep.subr.bf16.mxu0 0
        %1882 = vmatpush2.bf16.msra.mxu0 0
        %1883 = vmatprep.subr.bf16.mxu0 0
        %1884 = vmatpush2.bf16.msra.mxu0 0
        %1885 = vmatprep.subr.bf16.mxu0 0
        %1886 = vmatpush2.bf16.msra.mxu0 0
        %1887 = vmatprep.mubr.bf16.mxu0 0
        %1888 = vmatmul.mubr.bf16.gmra.mxu0 %v1853
        %v1889 = vpop.f32.mrf.mxu0
        %v1890 = vadd.f32 0.0, %v1889
        %v1891 = vpop.f32.mrf.mxu0
        %v1892 = vpop.f32.mrf.mxu0
        %v1893 = vadd.f32 0.0, %v1892
        %v1894 = vpop.f32.mrf.mxu0
        %1895 = vdwg.mxu0
        %v1896 = vadd.f32 %v1847, %v1890
        %v1897 = vadd.f32 %v1849, %v1893
        %v1898 = vxor.u32 %v1896, 2147483648
        %v1899 = vxor.u32 %v1897, 2147483648
        %v1900 = vmul.f32 %v1898, 1.442695
        %v1901 = vpow.pop %v1900
        %v1902 = vmul.f32 %v1899, 1.442695
        %v1903 = vpow.pop %v1902
        %v1904 = vadd.f32 %v1901, 1.0
        %v1905 = vadd.f32 %v1903, 1.0
        %v1906 = vrcp.pop %v1904
        %v1907 = vmul.f32 1.0, %v1906
        %v1908 = vrcp.pop %v1905
        %v1909 = vmul.f32 1.0, %v1908
        %1912 = vrot.lane.b32.xlu0 %v1907, 64
        %v1913 = vpop.permute.xlu0 %1912
        %1914 = vrot.lane.b32.xlu0 %v1909, 64
        %v1915 = vpop.permute.xlu0 %1914
        %v1918 = vmul.f32 %v1839, %v1913
        %v1919 = vmul.f32 %v1840, %v1915
        %v1920 = vpack.c.bf16 %v1919, %v1918
        %v1922 = vsel %vm911, %v1920, 0
        %1924 = vmatprep.subr.bf16.mxu0 0
        %1925 = vmatpush1.bf16.msra.mxu0 0
        %1926 = vmatprep.subr.bf16.mxu0 0
        %1927 = vmatpush1.bf16.msra.mxu0 0
        %1928 = vmatprep.subr.bf16.mxu0 0
        %1929 = vmatpush1.bf16.msra.mxu0 0
        %1930 = vmatprep.subr.bf16.mxu0 0
        %1931 = vmatpush1.bf16.msra.mxu0 0
        %1932 = vmatprep.subr.bf16.mxu0 0
        %1933 = vmatpush1.bf16.msra.mxu0 %v1102
        %1934 = vmatprep.subr.bf16.mxu0 0
        %1935 = vmatpush1.bf16.msra.mxu0 %v1101
        %1936 = vmatprep.subr.bf16.mxu0 0
        %1937 = vmatpush1.bf16.msra.mxu0 %v1100
        %1938 = vmatprep.subr.bf16.mxu0 0
        %1939 = vmatpush1.bf16.msra.mxu0 %v1099
        %1940 = vmatprep.subr.bf16.mxu0 0
        %1941 = vmatpush2.bf16.msra.mxu0 0
        %1942 = vmatprep.subr.bf16.mxu0 0
        %1943 = vmatpush2.bf16.msra.mxu0 0
        %1944 = vmatprep.subr.bf16.mxu0 0
        %1945 = vmatpush2.bf16.msra.mxu0 0
        %1946 = vmatprep.subr.bf16.mxu0 0
        %1947 = vmatpush2.bf16.msra.mxu0 0
        %1948 = vmatprep.subr.bf16.mxu0 0
        %1949 = vmatpush2.bf16.msra.mxu0 0
        %1950 = vmatprep.subr.bf16.mxu0 0
        %1951 = vmatpush2.bf16.msra.mxu0 0
        %1952 = vmatprep.subr.bf16.mxu0 0
        %1953 = vmatpush2.bf16.msra.mxu0 0
        %1954 = vmatprep.subr.bf16.mxu0 0
        %1955 = vmatpush2.bf16.msra.mxu0 0
        %1956 = vmatprep.mubr.bf16.mxu0 0
        %1957 = vmatmul.mubr.bf16.gmra.mxu0 %v1922
        %v1958 = vpop.f32.mrf.mxu0
        %v1959 = vadd.f32 0.0, %v1958
        %v1960 = vpop.f32.mrf.mxu0
        %v1961 = vpop.f32.mrf.mxu0
        %v1962 = vadd.f32 0.0, %v1961
        %v1963 = vpop.f32.mrf.mxu0
        %1964 = vdwg.mxu0
        %v1965 = vadd.f32 %v1848, %v1959
        %v1966 = vadd.f32 %v1850, %v1962
        %v1967 = vtanh.pop %v1965
        %v1968 = vtanh.pop %v1966
        %v1969 = vmul.f32 %v1907, %v1839
        %v1970 = vmul.f32 %v1909, %v1840
        %v1971 = vsub.f32 1.0, %v1907
        %v1972 = vsub.f32 1.0, %v1909
        %v1973 = vmul.f32 %v1971, %v1967
        %v1974 = vmul.f32 %v1972, %v1968
        %v1975 = vadd.f32 %v1969, %v1973
        %v1976 = vadd.f32 %v1970, %v1974
        %s1977 = sld [smem:[#allocation3 + $0x6]]
        %v1978 = vstv %s1977
        %v1979 = vmul.f32 %v1978, %v1975
        %v1980 = vmul.f32 %v1978, %v1976
        %v1981 = vadd.f32 %v1845, %v1979
        %v1982 = vadd.f32 %v1846, %v1980
        %v1983 = vld [vmem:[#allocation2 + $0xe0] sm:$0xff]
        %v1984 = vld [vmem:[#allocation2 + $0xe8] sm:$0xff]
        %v1985 = vld [vmem:[#allocation2 + $0xf0] sm:$0xff]
        %v1986 = vld [vmem:[#allocation2 + $0xf8] sm:$0xff]
        %v1987 = vpack.c.bf16 %v1976, %v1975
        %v1989 = vsel %vm911, %v1987, 0
        %1991 = vmatprep.subr.bf16.mxu0 0
        %1992 = vmatpush1.bf16.msra.mxu0 0
        %1993 = vmatprep.subr.bf16.mxu0 0
        %1994 = vmatpush1.bf16.msra.mxu0 0
        %1995 = vmatprep.subr.bf16.mxu0 0
        %1996 = vmatpush1.bf16.msra.mxu0 0
        %1997 = vmatprep.subr.bf16.mxu0 0
        %1998 = vmatpush1.bf16.msra.mxu0 0
        %1999 = vmatprep.subr.bf16.mxu0 0
        %2000 = vmatpush1.bf16.msra.mxu0 %v1014
        %2001 = vmatprep.subr.bf16.mxu0 0
        %2002 = vmatpush1.bf16.msra.mxu0 %v1013
        %2003 = vmatprep.subr.bf16.mxu0 0
        %2004 = vmatpush1.bf16.msra.mxu0 %v1012
        %2005 = vmatprep.subr.bf16.mxu0 0
        %2006 = vmatpush1.bf16.msra.mxu0 %v1011
        %2007 = vmatprep.subr.bf16.mxu0 0
        %2008 = vmatpush2.bf16.msra.mxu0 0
        %2009 = vmatprep.subr.bf16.mxu0 0
        %2010 = vmatpush2.bf16.msra.mxu0 0
        %2011 = vmatprep.subr.bf16.mxu0 0
        %2012 = vmatpush2.bf16.msra.mxu0 0
        %2013 = vmatprep.subr.bf16.mxu0 0
        %2014 = vmatpush2.bf16.msra.mxu0 0
        %2015 = vmatprep.subr.bf16.mxu0 0
        %2016 = vmatpush2.bf16.msra.mxu0 0
        %2017 = vmatprep.subr.bf16.mxu0 0
        %2018 = vmatpush2.bf16.msra.mxu0 0
        %2019 = vmatprep.subr.bf16.mxu0 0
        %2020 = vmatpush2.bf16.msra.mxu0 0
        %2021 = vmatprep.subr.bf16.mxu0 0
        %2022 = vmatpush2.bf16.msra.mxu0 0
        %2023 = vmatprep.mubr.bf16.mxu0 0
        %2024 = vmatmul.mubr.bf16.gmra.mxu0 %v1989
        %v2025 = vpop.f32.mrf.mxu0
        %v2026 = vadd.f32 0.0, %v2025
        %v2027 = vpop.f32.mrf.mxu0
        %v2028 = vpop.f32.mrf.mxu0
        %v2029 = vadd.f32 0.0, %v2028
        %v2030 = vpop.f32.mrf.mxu0
        %2031 = vdwg.mxu0
        %v2032 = vadd.f32 %v1983, %v2026
        %v2033 = vadd.f32 %v1985, %v2029
        %v2034 = vxor.u32 %v2032, 2147483648
        %v2035 = vxor.u32 %v2033, 2147483648
        %v2036 = vmul.f32 %v2034, 1.442695
        %v2037 = vpow.pop %v2036
        %v2038 = vmul.f32 %v2035, 1.442695
        %v2039 = vpow.pop %v2038
        %v2040 = vadd.f32 %v2037, 1.0
        %v2041 = vadd.f32 %v2039, 1.0
        %v2042 = vrcp.pop %v2040
        %v2043 = vmul.f32 1.0, %v2042
        %v2044 = vrcp.pop %v2041
        %v2045 = vmul.f32 1.0, %v2044
        %2048 = vrot.lane.b32.xlu0 %v2043, 64
        %v2049 = vpop.permute.xlu0 %2048
        %2050 = vrot.lane.b32.xlu0 %v2045, 64
        %v2051 = vpop.permute.xlu0 %2050
        %v2054 = vmul.f32 %v1975, %v2049
        %v2055 = vmul.f32 %v1976, %v2051
        %v2056 = vpack.c.bf16 %v2055, %v2054
        %v2058 = vsel %vm911, %v2056, 0
        %2060 = vmatprep.subr.bf16.mxu0 0
        %2061 = vmatpush1.bf16.msra.mxu0 0
        %2062 = vmatprep.subr.bf16.mxu0 0
        %2063 = vmatpush1.bf16.msra.mxu0 0
        %2064 = vmatprep.subr.bf16.mxu0 0
        %2065 = vmatpush1.bf16.msra.mxu0 0
        %2066 = vmatprep.subr.bf16.mxu0 0
        %2067 = vmatpush1.bf16.msra.mxu0 0
        %2068 = vmatprep.subr.bf16.mxu0 0
        %2069 = vmatpush1.bf16.msra.mxu0 %v1102
        %2070 = vmatprep.subr.bf16.mxu0 0
        %2071 = vmatpush1.bf16.msra.mxu0 %v1101
        %2072 = vmatprep.subr.bf16.mxu0 0
        %2073 = vmatpush1.bf16.msra.mxu0 %v1100
        %2074 = vmatprep.subr.bf16.mxu0 0
        %2075 = vmatpush1.bf16.msra.mxu0 %v1099
        %2076 = vmatprep.subr.bf16.mxu0 0
        %2077 = vmatpush2.bf16.msra.mxu0 0
        %2078 = vmatprep.subr.bf16.mxu0 0
        %2079 = vmatpush2.bf16.msra.mxu0 0
        %2080 = vmatprep.subr.bf16.mxu0 0
        %2081 = vmatpush2.bf16.msra.mxu0 0
        %2082 = vmatprep.subr.bf16.mxu0 0
        %2083 = vmatpush2.bf16.msra.mxu0 0
        %2084 = vmatprep.subr.bf16.mxu0 0
        %2085 = vmatpush2.bf16.msra.mxu0 0
        %2086 = vmatprep.subr.bf16.mxu0 0
        %2087 = vmatpush2.bf16.msra.mxu0 0
        %2088 = vmatprep.subr.bf16.mxu0 0
        %2089 = vmatpush2.bf16.msra.mxu0 0
        %2090 = vmatprep.subr.bf16.mxu0 0
        %2091 = vmatpush2.bf16.msra.mxu0 0
        %2092 = vmatprep.mubr.bf16.mxu0 0
        %2093 = vmatmul.mubr.bf16.gmra.mxu0 %v2058
        %v2094 = vpop.f32.mrf.mxu0
        %v2095 = vadd.f32 0.0, %v2094
        %v2096 = vpop.f32.mrf.mxu0
        %v2097 = vpop.f32.mrf.mxu0
        %v2098 = vadd.f32 0.0, %v2097
        %v2099 = vpop.f32.mrf.mxu0
        %2100 = vdwg.mxu0
        %v2101 = vadd.f32 %v1984, %v2095
        %v2102 = vadd.f32 %v1986, %v2098
        %v2103 = vtanh.pop %v2101
        %v2104 = vtanh.pop %v2102
        %v2105 = vmul.f32 %v2043, %v1975
        %v2106 = vmul.f32 %v2045, %v1976
        %v2107 = vsub.f32 1.0, %v2043
        %v2108 = vsub.f32 1.0, %v2045
        %v2109 = vmul.f32 %v2107, %v2103
        %v2110 = vmul.f32 %v2108, %v2104
        %v2111 = vadd.f32 %v2105, %v2109
        %v2112 = vadd.f32 %v2106, %v2110
        %s2113 = sld [smem:[#allocation3 + $0x7]]
        %v2114 = vstv %s2113
        %v2115 = vmul.f32 %v2114, %v2111
        %v2116 = vmul.f32 %v2114, %v2112
        %v2117 = vadd.f32 %v1981, %v2115
        %v2118 = vadd.f32 %v1982, %v2116
        %v2119 = vld [vmem:[#allocation2 + $0x100] sm:$0xff]
        %v2120 = vld [vmem:[#allocation2 + $0x108] sm:$0xff]
        %v2121 = vld [vmem:[#allocation2 + $0x110] sm:$0xff]
        %v2122 = vld [vmem:[#allocation2 + $0x118] sm:$0xff]
        %v2123 = vpack.c.bf16 %v2112, %v2111
        %v2125 = vsel %vm911, %v2123, 0
        %2127 = vmatprep.subr.bf16.mxu0 0
        %2128 = vmatpush1.bf16.msra.mxu0 0
        %2129 = vmatprep.subr.bf16.mxu0 0
        %2130 = vmatpush1.bf16.msra.mxu0 0
        %2131 = vmatprep.subr.bf16.mxu0 0
        %2132 = vmatpush1.bf16.msra.mxu0 0
        %2133 = vmatprep.subr.bf16.mxu0 0
        %2134 = vmatpush1.bf16.msra.mxu0 0
        %2135 = vmatprep.subr.bf16.mxu0 0
        %2136 = vmatpush1.bf16.msra.mxu0 %v1014
        %2137 = vmatprep.subr.bf16.mxu0 0
        %2138 = vmatpush1.bf16.msra.mxu0 %v1013
        %2139 = vmatprep.subr.bf16.mxu0 0
        %2140 = vmatpush1.bf16.msra.mxu0 %v1012
        %2141 = vmatprep.subr.bf16.mxu0 0
        %2142 = vmatpush1.bf16.msra.mxu0 %v1011
        %2143 = vmatprep.subr.bf16.mxu0 0
        %2144 = vmatpush2.bf16.msra.mxu0 0
        %2145 = vmatprep.subr.bf16.mxu0 0
        %2146 = vmatpush2.bf16.msra.mxu0 0
        %2147 = vmatprep.subr.bf16.mxu0 0
        %2148 = vmatpush2.bf16.msra.mxu0 0
        %2149 = vmatprep.subr.bf16.mxu0 0
        %2150 = vmatpush2.bf16.msra.mxu0 0
        %2151 = vmatprep.subr.bf16.mxu0 0
        %2152 = vmatpush2.bf16.msra.mxu0 0
        %2153 = vmatprep.subr.bf16.mxu0 0
        %2154 = vmatpush2.bf16.msra.mxu0 0
        %2155 = vmatprep.subr.bf16.mxu0 0
        %2156 = vmatpush2.bf16.msra.mxu0 0
        %2157 = vmatprep.subr.bf16.mxu0 0
        %2158 = vmatpush2.bf16.msra.mxu0 0
        %2159 = vmatprep.mubr.bf16.mxu0 0
        %2160 = vmatmul.mubr.bf16.gmra.mxu0 %v2125
        %v2161 = vpop.f32.mrf.mxu0
        %v2162 = vadd.f32 0.0, %v2161
        %v2163 = vpop.f32.mrf.mxu0
        %v2164 = vpop.f32.mrf.mxu0
        %v2165 = vadd.f32 0.0, %v2164
        %v2166 = vpop.f32.mrf.mxu0
        %2167 = vdwg.mxu0
        %v2168 = vadd.f32 %v2119, %v2162
        %v2169 = vadd.f32 %v2121, %v2165
        %v2170 = vxor.u32 %v2168, 2147483648
        %v2171 = vxor.u32 %v2169, 2147483648
        %v2172 = vmul.f32 %v2170, 1.442695
        %v2173 = vpow.pop %v2172
        %v2174 = vmul.f32 %v2171, 1.442695
        %v2175 = vpow.pop %v2174
        %v2176 = vadd.f32 %v2173, 1.0
        %v2177 = vadd.f32 %v2175, 1.0
        %v2178 = vrcp.pop %v2176
        %v2179 = vmul.f32 1.0, %v2178
        %v2180 = vrcp.pop %v2177
        %v2181 = vmul.f32 1.0, %v2180
        %2184 = vrot.lane.b32.xlu0 %v2179, 64
        %v2185 = vpop.permute.xlu0 %2184
        %2186 = vrot.lane.b32.xlu0 %v2181, 64
        %v2187 = vpop.permute.xlu0 %2186
        %v2190 = vmul.f32 %v2111, %v2185
        %v2191 = vmul.f32 %v2112, %v2187
        %v2192 = vpack.c.bf16 %v2191, %v2190
        %v2194 = vsel %vm911, %v2192, 0
        %2196 = vmatprep.subr.bf16.mxu0 0
        %2197 = vmatpush1.bf16.msra.mxu0 0
        %2198 = vmatprep.subr.bf16.mxu0 0
        %2199 = vmatpush1.bf16.msra.mxu0 0
        %2200 = vmatprep.subr.bf16.mxu0 0
        %2201 = vmatpush1.bf16.msra.mxu0 0
        %2202 = vmatprep.subr.bf16.mxu0 0
        %2203 = vmatpush1.bf16.msra.mxu0 0
        %2204 = vmatprep.subr.bf16.mxu0 0
        %2205 = vmatpush1.bf16.msra.mxu0 %v1102
        %2206 = vmatprep.subr.bf16.mxu0 0
        %2207 = vmatpush1.bf16.msra.mxu0 %v1101
        %2208 = vmatprep.subr.bf16.mxu0 0
        %2209 = vmatpush1.bf16.msra.mxu0 %v1100
        %2210 = vmatprep.subr.bf16.mxu0 0
        %2211 = vmatpush1.bf16.msra.mxu0 %v1099
        %2212 = vmatprep.subr.bf16.mxu0 0
        %2213 = vmatpush2.bf16.msra.mxu0 0
        %2214 = vmatprep.subr.bf16.mxu0 0
        %2215 = vmatpush2.bf16.msra.mxu0 0
        %2216 = vmatprep.subr.bf16.mxu0 0
        %2217 = vmatpush2.bf16.msra.mxu0 0
        %2218 = vmatprep.subr.bf16.mxu0 0
        %2219 = vmatpush2.bf16.msra.mxu0 0
        %2220 = vmatprep.subr.bf16.mxu0 0
        %2221 = vmatpush2.bf16.msra.mxu0 0
        %2222 = vmatprep.subr.bf16.mxu0 0
        %2223 = vmatpush2.bf16.msra.mxu0 0
        %2224 = vmatprep.subr.bf16.mxu0 0
        %2225 = vmatpush2.bf16.msra.mxu0 0
        %2226 = vmatprep.subr.bf16.mxu0 0
        %2227 = vmatpush2.bf16.msra.mxu0 0
        %2228 = vmatprep.mubr.bf16.mxu0 0
        %2229 = vmatmul.mubr.bf16.gmra.mxu0 %v2194
        %v2230 = vpop.f32.mrf.mxu0
        %v2231 = vadd.f32 0.0, %v2230
        %v2232 = vpop.f32.mrf.mxu0
        %v2233 = vpop.f32.mrf.mxu0
        %v2234 = vadd.f32 0.0, %v2233
        %v2235 = vpop.f32.mrf.mxu0
        %2236 = vdwg.mxu0
        %v2237 = vadd.f32 %v2120, %v2231
        %v2238 = vadd.f32 %v2122, %v2234
        %v2239 = vtanh.pop %v2237
        %v2240 = vtanh.pop %v2238
        %v2241 = vmul.f32 %v2179, %v2111
        %v2242 = vmul.f32 %v2181, %v2112
        %v2243 = vsub.f32 1.0, %v2179
        %v2244 = vsub.f32 1.0, %v2181
        %v2245 = vmul.f32 %v2243, %v2239
        %v2246 = vmul.f32 %v2244, %v2240
        %v2247 = vadd.f32 %v2241, %v2245
        %v2248 = vadd.f32 %v2242, %v2246
        %s2249 = sld [smem:[#allocation3 + $0x8]]
        %v2250 = vstv %s2249
        %v2251 = vmul.f32 %v2250, %v2247
        %v2252 = vmul.f32 %v2250, %v2248
        %v2253 = vadd.f32 %v2117, %v2251
        %v2254 = vadd.f32 %v2118, %v2252
        %v2255 = vld [vmem:[#allocation2 + $0x120] sm:$0xff]
        %v2256 = vld [vmem:[#allocation2 + $0x128] sm:$0xff]
        %v2257 = vld [vmem:[#allocation2 + $0x130] sm:$0xff]
        %v2258 = vld [vmem:[#allocation2 + $0x138] sm:$0xff]
        %v2259 = vpack.c.bf16 %v2248, %v2247
        %v2261 = vsel %vm911, %v2259, 0
        %2263 = vmatprep.subr.bf16.mxu0 0
        %2264 = vmatpush1.bf16.msra.mxu0 0
        %2265 = vmatprep.subr.bf16.mxu0 0
        %2266 = vmatpush1.bf16.msra.mxu0 0
        %2267 = vmatprep.subr.bf16.mxu0 0
        %2268 = vmatpush1.bf16.msra.mxu0 0
        %2269 = vmatprep.subr.bf16.mxu0 0
        %2270 = vmatpush1.bf16.msra.mxu0 0
        %2271 = vmatprep.subr.bf16.mxu0 0
        %2272 = vmatpush1.bf16.msra.mxu0 %v1014
        %2273 = vmatprep.subr.bf16.mxu0 0
        %2274 = vmatpush1.bf16.msra.mxu0 %v1013
        %2275 = vmatprep.subr.bf16.mxu0 0
        %2276 = vmatpush1.bf16.msra.mxu0 %v1012
        %2277 = vmatprep.subr.bf16.mxu0 0
        %2278 = vmatpush1.bf16.msra.mxu0 %v1011
        %2279 = vmatprep.subr.bf16.mxu0 0
        %2280 = vmatpush2.bf16.msra.mxu0 0
        %2281 = vmatprep.subr.bf16.mxu0 0
        %2282 = vmatpush2.bf16.msra.mxu0 0
        %2283 = vmatprep.subr.bf16.mxu0 0
        %2284 = vmatpush2.bf16.msra.mxu0 0
        %2285 = vmatprep.subr.bf16.mxu0 0
        %2286 = vmatpush2.bf16.msra.mxu0 0
        %2287 = vmatprep.subr.bf16.mxu0 0
        %2288 = vmatpush2.bf16.msra.mxu0 0
        %2289 = vmatprep.subr.bf16.mxu0 0
        %2290 = vmatpush2.bf16.msra.mxu0 0
        %2291 = vmatprep.subr.bf16.mxu0 0
        %2292 = vmatpush2.bf16.msra.mxu0 0
        %2293 = vmatprep.subr.bf16.mxu0 0
        %2294 = vmatpush2.bf16.msra.mxu0 0
        %2295 = vmatprep.mubr.bf16.mxu0 0
        %2296 = vmatmul.mubr.bf16.gmra.mxu0 %v2261
        %v2297 = vpop.f32.mrf.mxu0
        %v2298 = vadd.f32 0.0, %v2297
        %v2299 = vpop.f32.mrf.mxu0
        %v2300 = vpop.f32.mrf.mxu0
        %v2301 = vadd.f32 0.0, %v2300
        %v2302 = vpop.f32.mrf.mxu0
        %2303 = vdwg.mxu0
        %v2304 = vadd.f32 %v2255, %v2298
        %v2305 = vadd.f32 %v2257, %v2301
        %v2306 = vxor.u32 %v2304, 2147483648
        %v2307 = vxor.u32 %v2305, 2147483648
        %v2308 = vmul.f32 %v2306, 1.442695
        %v2309 = vpow.pop %v2308
        %v2310 = vmul.f32 %v2307, 1.442695
        %v2311 = vpow.pop %v2310
        %v2312 = vadd.f32 %v2309, 1.0
        %v2313 = vadd.f32 %v2311, 1.0
        %v2314 = vrcp.pop %v2312
        %v2315 = vmul.f32 1.0, %v2314
        %v2316 = vrcp.pop %v2313
        %v2317 = vmul.f32 1.0, %v2316
        %2320 = vrot.lane.b32.xlu0 %v2315, 64
        %v2321 = vpop.permute.xlu0 %2320
        %2322 = vrot.lane.b32.xlu0 %v2317, 64
        %v2323 = vpop.permute.xlu0 %2322
        %v2326 = vmul.f32 %v2247, %v2321
        %v2327 = vmul.f32 %v2248, %v2323
        %v2328 = vpack.c.bf16 %v2327, %v2326
        %v2330 = vsel %vm911, %v2328, 0
        %2332 = vmatprep.subr.bf16.mxu0 0
        %2333 = vmatpush1.bf16.msra.mxu0 0
        %2334 = vmatprep.subr.bf16.mxu0 0
        %2335 = vmatpush1.bf16.msra.mxu0 0
        %2336 = vmatprep.subr.bf16.mxu0 0
        %2337 = vmatpush1.bf16.msra.mxu0 0
        %2338 = vmatprep.subr.bf16.mxu0 0
        %2339 = vmatpush1.bf16.msra.mxu0 0
        %2340 = vmatprep.subr.bf16.mxu0 0
        %2341 = vmatpush1.bf16.msra.mxu0 %v1102
        %2342 = vmatprep.subr.bf16.mxu0 0
        %2343 = vmatpush1.bf16.msra.mxu0 %v1101
        %2344 = vmatprep.subr.bf16.mxu0 0
        %2345 = vmatpush1.bf16.msra.mxu0 %v1100
        %2346 = vmatprep.subr.bf16.mxu0 0
        %2347 = vmatpush1.bf16.msra.mxu0 %v1099
        %2348 = vmatprep.subr.bf16.mxu0 0
        %2349 = vmatpush2.bf16.msra.mxu0 0
        %2350 = vmatprep.subr.bf16.mxu0 0
        %2351 = vmatpush2.bf16.msra.mxu0 0
        %2352 = vmatprep.subr.bf16.mxu0 0
        %2353 = vmatpush2.bf16.msra.mxu0 0
        %2354 = vmatprep.subr.bf16.mxu0 0
        %2355 = vmatpush2.bf16.msra.mxu0 0
        %2356 = vmatprep.subr.bf16.mxu0 0
        %2357 = vmatpush2.bf16.msra.mxu0 0
        %2358 = vmatprep.subr.bf16.mxu0 0
        %2359 = vmatpush2.bf16.msra.mxu0 0
        %2360 = vmatprep.subr.bf16.mxu0 0
        %2361 = vmatpush2.bf16.msra.mxu0 0
        %2362 = vmatprep.subr.bf16.mxu0 0
        %2363 = vmatpush2.bf16.msra.mxu0 0
        %2364 = vmatprep.mubr.bf16.mxu0 0
        %2365 = vmatmul.mubr.bf16.gmra.mxu0 %v2330
        %v2366 = vpop.f32.mrf.mxu0
        %v2367 = vadd.f32 0.0, %v2366
        %v2368 = vpop.f32.mrf.mxu0
        %v2369 = vpop.f32.mrf.mxu0
        %v2370 = vadd.f32 0.0, %v2369
        %v2371 = vpop.f32.mrf.mxu0
        %2372 = vdwg.mxu0
        %v2373 = vadd.f32 %v2256, %v2367
        %v2374 = vadd.f32 %v2258, %v2370
        %v2375 = vtanh.pop %v2373
        %v2376 = vtanh.pop %v2374
        %v2377 = vmul.f32 %v2315, %v2247
        %v2378 = vmul.f32 %v2317, %v2248
        %v2379 = vsub.f32 1.0, %v2315
        %v2380 = vsub.f32 1.0, %v2317
        %v2381 = vmul.f32 %v2379, %v2375
        %v2382 = vmul.f32 %v2380, %v2376
        %v2383 = vadd.f32 %v2377, %v2381
        %v2384 = vadd.f32 %v2378, %v2382
        %s2385 = sld [smem:[#allocation3 + $0x9]]
        %v2386 = vstv %s2385
        %v2387 = vmul.f32 %v2386, %v2383
        %v2388 = vmul.f32 %v2386, %v2384
        %v2389 = vadd.f32 %v2253, %v2387
        %v2390 = vadd.f32 %v2254, %v2388
        %v2391 = vld [vmem:[#allocation2 + $0x140] sm:$0xff]
        %v2392 = vld [vmem:[#allocation2 + $0x148] sm:$0xff]
        %v2393 = vld [vmem:[#allocation2 + $0x150] sm:$0xff]
        %v2394 = vld [vmem:[#allocation2 + $0x158] sm:$0xff]
        %v2395 = vpack.c.bf16 %v2384, %v2383
        %v2397 = vsel %vm911, %v2395, 0
        %2399 = vmatprep.subr.bf16.mxu0 0
        %2400 = vmatpush1.bf16.msra.mxu0 0
        %2401 = vmatprep.subr.bf16.mxu0 0
        %2402 = vmatpush1.bf16.msra.mxu0 0
        %2403 = vmatprep.subr.bf16.mxu0 0
        %2404 = vmatpush1.bf16.msra.mxu0 0
        %2405 = vmatprep.subr.bf16.mxu0 0
        %2406 = vmatpush1.bf16.msra.mxu0 0
        %2407 = vmatprep.subr.bf16.mxu0 0
        %2408 = vmatpush1.bf16.msra.mxu0 %v1014
        %2409 = vmatprep.subr.bf16.mxu0 0
        %2410 = vmatpush1.bf16.msra.mxu0 %v1013
        %2411 = vmatprep.subr.bf16.mxu0 0
        %2412 = vmatpush1.bf16.msra.mxu0 %v1012
        %2413 = vmatprep.subr.bf16.mxu0 0
        %2414 = vmatpush1.bf16.msra.mxu0 %v1011
        %2415 = vmatprep.subr.bf16.mxu0 0
        %2416 = vmatpush2.bf16.msra.mxu0 0
        %2417 = vmatprep.subr.bf16.mxu0 0
        %2418 = vmatpush2.bf16.msra.mxu0 0
        %2419 = vmatprep.subr.bf16.mxu0 0
        %2420 = vmatpush2.bf16.msra.mxu0 0
        %2421 = vmatprep.subr.bf16.mxu0 0
        %2422 = vmatpush2.bf16.msra.mxu0 0
        %2423 = vmatprep.subr.bf16.mxu0 0
        %2424 = vmatpush2.bf16.msra.mxu0 0
        %2425 = vmatprep.subr.bf16.mxu0 0
        %2426 = vmatpush2.bf16.msra.mxu0 0
        %2427 = vmatprep.subr.bf16.mxu0 0
        %2428 = vmatpush2.bf16.msra.mxu0 0
        %2429 = vmatprep.subr.bf16.mxu0 0
        %2430 = vmatpush2.bf16.msra.mxu0 0
        %2431 = vmatprep.mubr.bf16.mxu0 0
        %2432 = vmatmul.mubr.bf16.gmra.mxu0 %v2397
        %v2433 = vpop.f32.mrf.mxu0
        %v2434 = vadd.f32 0.0, %v2433
        %v2435 = vpop.f32.mrf.mxu0
        %v2436 = vpop.f32.mrf.mxu0
        %v2437 = vadd.f32 0.0, %v2436
        %v2438 = vpop.f32.mrf.mxu0
        %2439 = vdwg.mxu0
        %v2440 = vadd.f32 %v2391, %v2434
        %v2441 = vadd.f32 %v2393, %v2437
        %v2442 = vxor.u32 %v2440, 2147483648
        %v2443 = vxor.u32 %v2441, 2147483648
        %v2444 = vmul.f32 %v2442, 1.442695
        %v2445 = vpow.pop %v2444
        %v2446 = vmul.f32 %v2443, 1.442695
        %v2447 = vpow.pop %v2446
        %v2448 = vadd.f32 %v2445, 1.0
        %v2449 = vadd.f32 %v2447, 1.0
        %v2450 = vrcp.pop %v2448
        %v2451 = vmul.f32 1.0, %v2450
        %v2452 = vrcp.pop %v2449
        %v2453 = vmul.f32 1.0, %v2452
        %2456 = vrot.lane.b32.xlu0 %v2451, 64
        %v2457 = vpop.permute.xlu0 %2456
        %2458 = vrot.lane.b32.xlu0 %v2453, 64
        %v2459 = vpop.permute.xlu0 %2458
        %v2462 = vmul.f32 %v2383, %v2457
        %v2463 = vmul.f32 %v2384, %v2459
        %v2464 = vpack.c.bf16 %v2463, %v2462
        %v2466 = vsel %vm911, %v2464, 0
        %2468 = vmatprep.subr.bf16.mxu0 0
        %2469 = vmatpush1.bf16.msra.mxu0 0
        %2470 = vmatprep.subr.bf16.mxu0 0
        %2471 = vmatpush1.bf16.msra.mxu0 0
        %2472 = vmatprep.subr.bf16.mxu0 0
        %2473 = vmatpush1.bf16.msra.mxu0 0
        %2474 = vmatprep.subr.bf16.mxu0 0
        %2475 = vmatpush1.bf16.msra.mxu0 0
        %2476 = vmatprep.subr.bf16.mxu0 0
        %2477 = vmatpush1.bf16.msra.mxu0 %v1102
        %2478 = vmatprep.subr.bf16.mxu0 0
        %2479 = vmatpush1.bf16.msra.mxu0 %v1101
        %2480 = vmatprep.subr.bf16.mxu0 0
        %2481 = vmatpush1.bf16.msra.mxu0 %v1100
        %2482 = vmatprep.subr.bf16.mxu0 0
        %2483 = vmatpush1.bf16.msra.mxu0 %v1099
        %2484 = vmatprep.subr.bf16.mxu0 0
        %2485 = vmatpush2.bf16.msra.mxu0 0
        %2486 = vmatprep.subr.bf16.mxu0 0
        %2487 = vmatpush2.bf16.msra.mxu0 0
        %2488 = vmatprep.subr.bf16.mxu0 0
        %2489 = vmatpush2.bf16.msra.mxu0 0
        %2490 = vmatprep.subr.bf16.mxu0 0
        %2491 = vmatpush2.bf16.msra.mxu0 0
        %2492 = vmatprep.subr.bf16.mxu0 0
        %2493 = vmatpush2.bf16.msra.mxu0 0
        %2494 = vmatprep.subr.bf16.mxu0 0
        %2495 = vmatpush2.bf16.msra.mxu0 0
        %2496 = vmatprep.subr.bf16.mxu0 0
        %2497 = vmatpush2.bf16.msra.mxu0 0
        %2498 = vmatprep.subr.bf16.mxu0 0
        %2499 = vmatpush2.bf16.msra.mxu0 0
        %2500 = vmatprep.mubr.bf16.mxu0 0
        %2501 = vmatmul.mubr.bf16.gmra.mxu0 %v2466
        %v2502 = vpop.f32.mrf.mxu0
        %v2503 = vadd.f32 0.0, %v2502
        %v2504 = vpop.f32.mrf.mxu0
        %v2505 = vpop.f32.mrf.mxu0
        %v2506 = vadd.f32 0.0, %v2505
        %v2507 = vpop.f32.mrf.mxu0
        %2508 = vdwg.mxu0
        %v2509 = vadd.f32 %v2392, %v2503
        %v2510 = vadd.f32 %v2394, %v2506
        %v2511 = vtanh.pop %v2509
        %v2512 = vtanh.pop %v2510
        %v2513 = vmul.f32 %v2451, %v2383
        %v2514 = vmul.f32 %v2453, %v2384
        %v2515 = vsub.f32 1.0, %v2451
        %v2516 = vsub.f32 1.0, %v2453
        %v2517 = vmul.f32 %v2515, %v2511
        %v2518 = vmul.f32 %v2516, %v2512
        %v2519 = vadd.f32 %v2513, %v2517
        %v2520 = vadd.f32 %v2514, %v2518
        %s2521 = sld [smem:[#allocation3 + $0xa]]
        %v2522 = vstv %s2521
        %v2523 = vmul.f32 %v2522, %v2519
        %v2524 = vmul.f32 %v2522, %v2520
        %v2525 = vadd.f32 %v2389, %v2523
        %v2526 = vadd.f32 %v2390, %v2524
        %v2527 = vld [vmem:[#allocation2 + $0x160] sm:$0xff]
        %v2528 = vld [vmem:[#allocation2 + $0x168] sm:$0xff]
        %v2529 = vld [vmem:[#allocation2 + $0x170] sm:$0xff]
        %v2530 = vld [vmem:[#allocation2 + $0x178] sm:$0xff]
        %v2531 = vpack.c.bf16 %v2520, %v2519
        %v2533 = vsel %vm911, %v2531, 0
        %2535 = vmatprep.subr.bf16.mxu0 0
        %2536 = vmatpush1.bf16.msra.mxu0 0
        %2537 = vmatprep.subr.bf16.mxu0 0
        %2538 = vmatpush1.bf16.msra.mxu0 0
        %2539 = vmatprep.subr.bf16.mxu0 0
        %2540 = vmatpush1.bf16.msra.mxu0 0
        %2541 = vmatprep.subr.bf16.mxu0 0
        %2542 = vmatpush1.bf16.msra.mxu0 0
        %2543 = vmatprep.subr.bf16.mxu0 0
        %2544 = vmatpush1.bf16.msra.mxu0 %v1014
        %2545 = vmatprep.subr.bf16.mxu0 0
        %2546 = vmatpush1.bf16.msra.mxu0 %v1013
        %2547 = vmatprep.subr.bf16.mxu0 0
        %2548 = vmatpush1.bf16.msra.mxu0 %v1012
        %2549 = vmatprep.subr.bf16.mxu0 0
        %2550 = vmatpush1.bf16.msra.mxu0 %v1011
        %2551 = vmatprep.subr.bf16.mxu0 0
        %2552 = vmatpush2.bf16.msra.mxu0 0
        %2553 = vmatprep.subr.bf16.mxu0 0
        %2554 = vmatpush2.bf16.msra.mxu0 0
        %2555 = vmatprep.subr.bf16.mxu0 0
        %2556 = vmatpush2.bf16.msra.mxu0 0
        %2557 = vmatprep.subr.bf16.mxu0 0
        %2558 = vmatpush2.bf16.msra.mxu0 0
        %2559 = vmatprep.subr.bf16.mxu0 0
        %2560 = vmatpush2.bf16.msra.mxu0 0
        %2561 = vmatprep.subr.bf16.mxu0 0
        %2562 = vmatpush2.bf16.msra.mxu0 0
        %2563 = vmatprep.subr.bf16.mxu0 0
        %2564 = vmatpush2.bf16.msra.mxu0 0
        %2565 = vmatprep.subr.bf16.mxu0 0
        %2566 = vmatpush2.bf16.msra.mxu0 0
        %2567 = vmatprep.mubr.bf16.mxu0 0
        %2568 = vmatmul.mubr.bf16.gmra.mxu0 %v2533
        %v2569 = vpop.f32.mrf.mxu0
        %v2570 = vadd.f32 0.0, %v2569
        %v2571 = vpop.f32.mrf.mxu0
        %v2572 = vpop.f32.mrf.mxu0
        %v2573 = vadd.f32 0.0, %v2572
        %v2574 = vpop.f32.mrf.mxu0
        %2575 = vdwg.mxu0
        %v2576 = vadd.f32 %v2527, %v2570
        %v2577 = vadd.f32 %v2529, %v2573
        %v2578 = vxor.u32 %v2576, 2147483648
        %v2579 = vxor.u32 %v2577, 2147483648
        %v2580 = vmul.f32 %v2578, 1.442695
        %v2581 = vpow.pop %v2580
        %v2582 = vmul.f32 %v2579, 1.442695
        %v2583 = vpow.pop %v2582
        %v2584 = vadd.f32 %v2581, 1.0
        %v2585 = vadd.f32 %v2583, 1.0
        %v2586 = vrcp.pop %v2584
        %v2587 = vmul.f32 1.0, %v2586
        %v2588 = vrcp.pop %v2585
        %v2589 = vmul.f32 1.0, %v2588
        %2592 = vrot.lane.b32.xlu0 %v2587, 64
        %v2593 = vpop.permute.xlu0 %2592
        %2594 = vrot.lane.b32.xlu0 %v2589, 64
        %v2595 = vpop.permute.xlu0 %2594
        %v2598 = vmul.f32 %v2519, %v2593
        %v2599 = vmul.f32 %v2520, %v2595
        %v2600 = vpack.c.bf16 %v2599, %v2598
        %v2602 = vsel %vm911, %v2600, 0
        %2604 = vmatprep.subr.bf16.mxu0 0
        %2605 = vmatpush1.bf16.msra.mxu0 0
        %2606 = vmatprep.subr.bf16.mxu0 0
        %2607 = vmatpush1.bf16.msra.mxu0 0
        %2608 = vmatprep.subr.bf16.mxu0 0
        %2609 = vmatpush1.bf16.msra.mxu0 0
        %2610 = vmatprep.subr.bf16.mxu0 0
        %2611 = vmatpush1.bf16.msra.mxu0 0
        %2612 = vmatprep.subr.bf16.mxu0 0
        %2613 = vmatpush1.bf16.msra.mxu0 %v1102
        %2614 = vmatprep.subr.bf16.mxu0 0
        %2615 = vmatpush1.bf16.msra.mxu0 %v1101
        %2616 = vmatprep.subr.bf16.mxu0 0
        %2617 = vmatpush1.bf16.msra.mxu0 %v1100
        %2618 = vmatprep.subr.bf16.mxu0 0
        %2619 = vmatpush1.bf16.msra.mxu0 %v1099
        %2620 = vmatprep.subr.bf16.mxu0 0
        %2621 = vmatpush2.bf16.msra.mxu0 0
        %2622 = vmatprep.subr.bf16.mxu0 0
        %2623 = vmatpush2.bf16.msra.mxu0 0
        %2624 = vmatprep.subr.bf16.mxu0 0
        %2625 = vmatpush2.bf16.msra.mxu0 0
        %2626 = vmatprep.subr.bf16.mxu0 0
        %2627 = vmatpush2.bf16.msra.mxu0 0
        %2628 = vmatprep.subr.bf16.mxu0 0
        %2629 = vmatpush2.bf16.msra.mxu0 0
        %2630 = vmatprep.subr.bf16.mxu0 0
        %2631 = vmatpush2.bf16.msra.mxu0 0
        %2632 = vmatprep.subr.bf16.mxu0 0
        %2633 = vmatpush2.bf16.msra.mxu0 0
        %2634 = vmatprep.subr.bf16.mxu0 0
        %2635 = vmatpush2.bf16.msra.mxu0 0
        %2636 = vmatprep.mubr.bf16.mxu0 0
        %2637 = vmatmul.mubr.bf16.gmra.mxu0 %v2602
        %v2638 = vpop.f32.mrf.mxu0
        %v2639 = vadd.f32 0.0, %v2638
        %v2640 = vpop.f32.mrf.mxu0
        %v2641 = vpop.f32.mrf.mxu0
        %v2642 = vadd.f32 0.0, %v2641
        %v2643 = vpop.f32.mrf.mxu0
        %2644 = vdwg.mxu0
        %v2645 = vadd.f32 %v2528, %v2639
        %v2646 = vadd.f32 %v2530, %v2642
        %v2647 = vtanh.pop %v2645
        %v2648 = vtanh.pop %v2646
        %v2649 = vmul.f32 %v2587, %v2519
        %v2650 = vmul.f32 %v2589, %v2520
        %v2651 = vsub.f32 1.0, %v2587
        %v2652 = vsub.f32 1.0, %v2589
        %v2653 = vmul.f32 %v2651, %v2647
        %v2654 = vmul.f32 %v2652, %v2648
        %v2655 = vadd.f32 %v2649, %v2653
        %v2656 = vadd.f32 %v2650, %v2654
        %s2657 = sld [smem:[#allocation3 + $0xb]]
        %v2658 = vstv %s2657
        %v2659 = vmul.f32 %v2658, %v2655
        %v2660 = vmul.f32 %v2658, %v2656
        %v2661 = vadd.f32 %v2525, %v2659
        %v2662 = vadd.f32 %v2526, %v2660
        %v2663 = vld [vmem:[#allocation2 + $0x180] sm:$0xff]
        %v2664 = vld [vmem:[#allocation2 + $0x188] sm:$0xff]
        %v2665 = vld [vmem:[#allocation2 + $0x190] sm:$0xff]
        %v2666 = vld [vmem:[#allocation2 + $0x198] sm:$0xff]
        %v2667 = vpack.c.bf16 %v2656, %v2655
        %v2669 = vsel %vm911, %v2667, 0
        %2671 = vmatprep.subr.bf16.mxu0 0
        %2672 = vmatpush1.bf16.msra.mxu0 0
        %2673 = vmatprep.subr.bf16.mxu0 0
        %2674 = vmatpush1.bf16.msra.mxu0 0
        %2675 = vmatprep.subr.bf16.mxu0 0
        %2676 = vmatpush1.bf16.msra.mxu0 0
        %2677 = vmatprep.subr.bf16.mxu0 0
        %2678 = vmatpush1.bf16.msra.mxu0 0
        %2679 = vmatprep.subr.bf16.mxu0 0
        %2680 = vmatpush1.bf16.msra.mxu0 %v1014
        %2681 = vmatprep.subr.bf16.mxu0 0
        %2682 = vmatpush1.bf16.msra.mxu0 %v1013
        %2683 = vmatprep.subr.bf16.mxu0 0
        %2684 = vmatpush1.bf16.msra.mxu0 %v1012
        %2685 = vmatprep.subr.bf16.mxu0 0
        %2686 = vmatpush1.bf16.msra.mxu0 %v1011
        %2687 = vmatprep.subr.bf16.mxu0 0
        %2688 = vmatpush2.bf16.msra.mxu0 0
        %2689 = vmatprep.subr.bf16.mxu0 0
        %2690 = vmatpush2.bf16.msra.mxu0 0
        %2691 = vmatprep.subr.bf16.mxu0 0
        %2692 = vmatpush2.bf16.msra.mxu0 0
        %2693 = vmatprep.subr.bf16.mxu0 0
        %2694 = vmatpush2.bf16.msra.mxu0 0
        %2695 = vmatprep.subr.bf16.mxu0 0
        %2696 = vmatpush2.bf16.msra.mxu0 0
        %2697 = vmatprep.subr.bf16.mxu0 0
        %2698 = vmatpush2.bf16.msra.mxu0 0
        %2699 = vmatprep.subr.bf16.mxu0 0
        %2700 = vmatpush2.bf16.msra.mxu0 0
        %2701 = vmatprep.subr.bf16.mxu0 0
        %2702 = vmatpush2.bf16.msra.mxu0 0
        %2703 = vmatprep.mubr.bf16.mxu0 0
        %2704 = vmatmul.mubr.bf16.gmra.mxu0 %v2669
        %v2705 = vpop.f32.mrf.mxu0
        %v2706 = vadd.f32 0.0, %v2705
        %v2707 = vpop.f32.mrf.mxu0
        %v2708 = vpop.f32.mrf.mxu0
        %v2709 = vadd.f32 0.0, %v2708
        %v2710 = vpop.f32.mrf.mxu0
        %2711 = vdwg.mxu0
        %v2712 = vadd.f32 %v2663, %v2706
        %v2713 = vadd.f32 %v2665, %v2709
        %v2714 = vxor.u32 %v2712, 2147483648
        %v2715 = vxor.u32 %v2713, 2147483648
        %v2716 = vmul.f32 %v2714, 1.442695
        %v2717 = vpow.pop %v2716
        %v2718 = vmul.f32 %v2715, 1.442695
        %v2719 = vpow.pop %v2718
        %v2720 = vadd.f32 %v2717, 1.0
        %v2721 = vadd.f32 %v2719, 1.0
        %v2722 = vrcp.pop %v2720
        %v2723 = vmul.f32 1.0, %v2722
        %v2724 = vrcp.pop %v2721
        %v2725 = vmul.f32 1.0, %v2724
        %2728 = vrot.lane.b32.xlu0 %v2723, 64
        %v2729 = vpop.permute.xlu0 %2728
        %2730 = vrot.lane.b32.xlu0 %v2725, 64
        %v2731 = vpop.permute.xlu0 %2730
        %v2734 = vmul.f32 %v2655, %v2729
        %v2735 = vmul.f32 %v2656, %v2731
        %v2736 = vpack.c.bf16 %v2735, %v2734
        %v2738 = vsel %vm911, %v2736, 0
        %2740 = vmatprep.subr.bf16.mxu0 0
        %2741 = vmatpush1.bf16.msra.mxu0 0
        %2742 = vmatprep.subr.bf16.mxu0 0
        %2743 = vmatpush1.bf16.msra.mxu0 0
        %2744 = vmatprep.subr.bf16.mxu0 0
        %2745 = vmatpush1.bf16.msra.mxu0 0
        %2746 = vmatprep.subr.bf16.mxu0 0
        %2747 = vmatpush1.bf16.msra.mxu0 0
        %2748 = vmatprep.subr.bf16.mxu0 0
        %2749 = vmatpush1.bf16.msra.mxu0 %v1102
        %2750 = vmatprep.subr.bf16.mxu0 0
        %2751 = vmatpush1.bf16.msra.mxu0 %v1101
        %2752 = vmatprep.subr.bf16.mxu0 0
        %2753 = vmatpush1.bf16.msra.mxu0 %v1100
        %2754 = vmatprep.subr.bf16.mxu0 0
        %2755 = vmatpush1.bf16.msra.mxu0 %v1099
        %2756 = vmatprep.subr.bf16.mxu0 0
        %2757 = vmatpush2.bf16.msra.mxu0 0
        %2758 = vmatprep.subr.bf16.mxu0 0
        %2759 = vmatpush2.bf16.msra.mxu0 0
        %2760 = vmatprep.subr.bf16.mxu0 0
        %2761 = vmatpush2.bf16.msra.mxu0 0
        %2762 = vmatprep.subr.bf16.mxu0 0
        %2763 = vmatpush2.bf16.msra.mxu0 0
        %2764 = vmatprep.subr.bf16.mxu0 0
        %2765 = vmatpush2.bf16.msra.mxu0 0
        %2766 = vmatprep.subr.bf16.mxu0 0
        %2767 = vmatpush2.bf16.msra.mxu0 0
        %2768 = vmatprep.subr.bf16.mxu0 0
        %2769 = vmatpush2.bf16.msra.mxu0 0
        %2770 = vmatprep.subr.bf16.mxu0 0
        %2771 = vmatpush2.bf16.msra.mxu0 0
        %2772 = vmatprep.mubr.bf16.mxu0 0
        %2773 = vmatmul.mubr.bf16.gmra.mxu0 %v2738
        %v2774 = vpop.f32.mrf.mxu0
        %v2775 = vadd.f32 0.0, %v2774
        %v2776 = vpop.f32.mrf.mxu0
        %v2777 = vpop.f32.mrf.mxu0
        %v2778 = vadd.f32 0.0, %v2777
        %v2779 = vpop.f32.mrf.mxu0
        %2780 = vdwg.mxu0
        %v2781 = vadd.f32 %v2664, %v2775
        %v2782 = vadd.f32 %v2666, %v2778
        %v2783 = vtanh.pop %v2781
        %v2784 = vtanh.pop %v2782
        %v2785 = vmul.f32 %v2723, %v2655
        %v2786 = vmul.f32 %v2725, %v2656
        %v2787 = vsub.f32 1.0, %v2723
        %v2788 = vsub.f32 1.0, %v2725
        %v2789 = vmul.f32 %v2787, %v2783
        %v2790 = vmul.f32 %v2788, %v2784
        %v2791 = vadd.f32 %v2785, %v2789
        %v2792 = vadd.f32 %v2786, %v2790
        %s2793 = sld [smem:[#allocation3 + $0xc]]
        %v2794 = vstv %s2793
        %v2795 = vmul.f32 %v2794, %v2791
        %v2796 = vmul.f32 %v2794, %v2792
        %v2797 = vadd.f32 %v2661, %v2795
        %v2798 = vadd.f32 %v2662, %v2796
        %v2799 = vld [vmem:[#allocation2 + $0x1a0] sm:$0xff]
        %v2800 = vld [vmem:[#allocation2 + $0x1a8] sm:$0xff]
        %v2801 = vld [vmem:[#allocation2 + $0x1b0] sm:$0xff]
        %v2802 = vld [vmem:[#allocation2 + $0x1b8] sm:$0xff]
        %v2803 = vpack.c.bf16 %v2792, %v2791
        %v2805 = vsel %vm911, %v2803, 0
        %2807 = vmatprep.subr.bf16.mxu0 0
        %2808 = vmatpush1.bf16.msra.mxu0 0
        %2809 = vmatprep.subr.bf16.mxu0 0
        %2810 = vmatpush1.bf16.msra.mxu0 0
        %2811 = vmatprep.subr.bf16.mxu0 0
        %2812 = vmatpush1.bf16.msra.mxu0 0
        %2813 = vmatprep.subr.bf16.mxu0 0
        %2814 = vmatpush1.bf16.msra.mxu0 0
        %2815 = vmatprep.subr.bf16.mxu0 0
        %2816 = vmatpush1.bf16.msra.mxu0 %v1014
        %2817 = vmatprep.subr.bf16.mxu0 0
        %2818 = vmatpush1.bf16.msra.mxu0 %v1013
        %2819 = vmatprep.subr.bf16.mxu0 0
        %2820 = vmatpush1.bf16.msra.mxu0 %v1012
        %2821 = vmatprep.subr.bf16.mxu0 0
        %2822 = vmatpush1.bf16.msra.mxu0 %v1011
        %2823 = vmatprep.subr.bf16.mxu0 0
        %2824 = vmatpush2.bf16.msra.mxu0 0
        %2825 = vmatprep.subr.bf16.mxu0 0
        %2826 = vmatpush2.bf16.msra.mxu0 0
        %2827 = vmatprep.subr.bf16.mxu0 0
        %2828 = vmatpush2.bf16.msra.mxu0 0
        %2829 = vmatprep.subr.bf16.mxu0 0
        %2830 = vmatpush2.bf16.msra.mxu0 0
        %2831 = vmatprep.subr.bf16.mxu0 0
        %2832 = vmatpush2.bf16.msra.mxu0 0
        %2833 = vmatprep.subr.bf16.mxu0 0
        %2834 = vmatpush2.bf16.msra.mxu0 0
        %2835 = vmatprep.subr.bf16.mxu0 0
        %2836 = vmatpush2.bf16.msra.mxu0 0
        %2837 = vmatprep.subr.bf16.mxu0 0
        %2838 = vmatpush2.bf16.msra.mxu0 0
        %2839 = vmatprep.mubr.bf16.mxu0 0
        %2840 = vmatmul.mubr.bf16.gmra.mxu0 %v2805
        %v2841 = vpop.f32.mrf.mxu0
        %v2842 = vadd.f32 0.0, %v2841
        %v2843 = vpop.f32.mrf.mxu0
        %v2844 = vpop.f32.mrf.mxu0
        %v2845 = vadd.f32 0.0, %v2844
        %v2846 = vpop.f32.mrf.mxu0
        %2847 = vdwg.mxu0
        %v2848 = vadd.f32 %v2799, %v2842
        %v2849 = vadd.f32 %v2801, %v2845
        %v2850 = vxor.u32 %v2848, 2147483648
        %v2851 = vxor.u32 %v2849, 2147483648
        %v2852 = vmul.f32 %v2850, 1.442695
        %v2853 = vpow.pop %v2852
        %v2854 = vmul.f32 %v2851, 1.442695
        %v2855 = vpow.pop %v2854
        %v2856 = vadd.f32 %v2853, 1.0
        %v2857 = vadd.f32 %v2855, 1.0
        %v2858 = vrcp.pop %v2856
        %v2859 = vmul.f32 1.0, %v2858
        %v2860 = vrcp.pop %v2857
        %v2861 = vmul.f32 1.0, %v2860
        %2864 = vrot.lane.b32.xlu0 %v2859, 64
        %v2865 = vpop.permute.xlu0 %2864
        %2866 = vrot.lane.b32.xlu0 %v2861, 64
        %v2867 = vpop.permute.xlu0 %2866
        %v2870 = vmul.f32 %v2791, %v2865
        %v2871 = vmul.f32 %v2792, %v2867
        %v2872 = vpack.c.bf16 %v2871, %v2870
        %v2874 = vsel %vm911, %v2872, 0
        %2876 = vmatprep.subr.bf16.mxu0 0
        %2877 = vmatpush1.bf16.msra.mxu0 0
        %2878 = vmatprep.subr.bf16.mxu0 0
        %2879 = vmatpush1.bf16.msra.mxu0 0
        %2880 = vmatprep.subr.bf16.mxu0 0
        %2881 = vmatpush1.bf16.msra.mxu0 0
        %2882 = vmatprep.subr.bf16.mxu0 0
        %2883 = vmatpush1.bf16.msra.mxu0 0
        %2884 = vmatprep.subr.bf16.mxu0 0
        %2885 = vmatpush1.bf16.msra.mxu0 %v1102
        %2886 = vmatprep.subr.bf16.mxu0 0
        %2887 = vmatpush1.bf16.msra.mxu0 %v1101
        %2888 = vmatprep.subr.bf16.mxu0 0
        %2889 = vmatpush1.bf16.msra.mxu0 %v1100
        %2890 = vmatprep.subr.bf16.mxu0 0
        %2891 = vmatpush1.bf16.msra.mxu0 %v1099
        %2892 = vmatprep.subr.bf16.mxu0 0
        %2893 = vmatpush2.bf16.msra.mxu0 0
        %2894 = vmatprep.subr.bf16.mxu0 0
        %2895 = vmatpush2.bf16.msra.mxu0 0
        %2896 = vmatprep.subr.bf16.mxu0 0
        %2897 = vmatpush2.bf16.msra.mxu0 0
        %2898 = vmatprep.subr.bf16.mxu0 0
        %2899 = vmatpush2.bf16.msra.mxu0 0
        %2900 = vmatprep.subr.bf16.mxu0 0
        %2901 = vmatpush2.bf16.msra.mxu0 0
        %2902 = vmatprep.subr.bf16.mxu0 0
        %2903 = vmatpush2.bf16.msra.mxu0 0
        %2904 = vmatprep.subr.bf16.mxu0 0
        %2905 = vmatpush2.bf16.msra.mxu0 0
        %2906 = vmatprep.subr.bf16.mxu0 0
        %2907 = vmatpush2.bf16.msra.mxu0 0
        %2908 = vmatprep.mubr.bf16.mxu0 0
        %2909 = vmatmul.mubr.bf16.gmra.mxu0 %v2874
        %v2910 = vpop.f32.mrf.mxu0
        %v2911 = vadd.f32 0.0, %v2910
        %v2912 = vpop.f32.mrf.mxu0
        %v2913 = vpop.f32.mrf.mxu0
        %v2914 = vadd.f32 0.0, %v2913
        %v2915 = vpop.f32.mrf.mxu0
        %2916 = vdwg.mxu0
        %v2917 = vadd.f32 %v2800, %v2911
        %v2918 = vadd.f32 %v2802, %v2914
        %v2919 = vtanh.pop %v2917
        %v2920 = vtanh.pop %v2918
        %v2921 = vmul.f32 %v2859, %v2791
        %v2922 = vmul.f32 %v2861, %v2792
        %v2923 = vsub.f32 1.0, %v2859
        %v2924 = vsub.f32 1.0, %v2861
        %v2925 = vmul.f32 %v2923, %v2919
        %v2926 = vmul.f32 %v2924, %v2920
        %v2927 = vadd.f32 %v2921, %v2925
        %v2928 = vadd.f32 %v2922, %v2926
        %s2929 = sld [smem:[#allocation3 + $0xd]]
        %v2930 = vstv %s2929
        %v2931 = vmul.f32 %v2930, %v2927
        %v2932 = vmul.f32 %v2930, %v2928
        %v2933 = vadd.f32 %v2797, %v2931
        %v2934 = vadd.f32 %v2798, %v2932
        %v2935 = vld [vmem:[#allocation2 + $0x1c0] sm:$0xff]
        %v2936 = vld [vmem:[#allocation2 + $0x1c8] sm:$0xff]
        %v2937 = vld [vmem:[#allocation2 + $0x1d0] sm:$0xff]
        %v2938 = vld [vmem:[#allocation2 + $0x1d8] sm:$0xff]
        %v2939 = vpack.c.bf16 %v2928, %v2927
        %v2941 = vsel %vm911, %v2939, 0
        %2943 = vmatprep.subr.bf16.mxu0 0
        %2944 = vmatpush1.bf16.msra.mxu0 0
        %2945 = vmatprep.subr.bf16.mxu0 0
        %2946 = vmatpush1.bf16.msra.mxu0 0
        %2947 = vmatprep.subr.bf16.mxu0 0
        %2948 = vmatpush1.bf16.msra.mxu0 0
        %2949 = vmatprep.subr.bf16.mxu0 0
        %2950 = vmatpush1.bf16.msra.mxu0 0
        %2951 = vmatprep.subr.bf16.mxu0 0
        %2952 = vmatpush1.bf16.msra.mxu0 %v1014
        %2953 = vmatprep.subr.bf16.mxu0 0
        %2954 = vmatpush1.bf16.msra.mxu0 %v1013
        %2955 = vmatprep.subr.bf16.mxu0 0
        %2956 = vmatpush1.bf16.msra.mxu0 %v1012
        %2957 = vmatprep.subr.bf16.mxu0 0
        %2958 = vmatpush1.bf16.msra.mxu0 %v1011
        %2959 = vmatprep.subr.bf16.mxu0 0
        %2960 = vmatpush2.bf16.msra.mxu0 0
        %2961 = vmatprep.subr.bf16.mxu0 0
        %2962 = vmatpush2.bf16.msra.mxu0 0
        %2963 = vmatprep.subr.bf16.mxu0 0
        %2964 = vmatpush2.bf16.msra.mxu0 0
        %2965 = vmatprep.subr.bf16.mxu0 0
        %2966 = vmatpush2.bf16.msra.mxu0 0
        %2967 = vmatprep.subr.bf16.mxu0 0
        %2968 = vmatpush2.bf16.msra.mxu0 0
        %2969 = vmatprep.subr.bf16.mxu0 0
        %2970 = vmatpush2.bf16.msra.mxu0 0
        %2971 = vmatprep.subr.bf16.mxu0 0
        %2972 = vmatpush2.bf16.msra.mxu0 0
        %2973 = vmatprep.subr.bf16.mxu0 0
        %2974 = vmatpush2.bf16.msra.mxu0 0
        %2975 = vmatprep.mubr.bf16.mxu0 0
        %2976 = vmatmul.mubr.bf16.gmra.mxu0 %v2941
        %v2977 = vpop.f32.mrf.mxu0
        %v2978 = vadd.f32 0.0, %v2977
        %v2979 = vpop.f32.mrf.mxu0
        %v2980 = vpop.f32.mrf.mxu0
        %v2981 = vadd.f32 0.0, %v2980
        %v2982 = vpop.f32.mrf.mxu0
        %2983 = vdwg.mxu0
        %v2984 = vadd.f32 %v2935, %v2978
        %v2985 = vadd.f32 %v2937, %v2981
        %v2986 = vxor.u32 %v2984, 2147483648
        %v2987 = vxor.u32 %v2985, 2147483648
        %v2988 = vmul.f32 %v2986, 1.442695
        %v2989 = vpow.pop %v2988
        %v2990 = vmul.f32 %v2987, 1.442695
        %v2991 = vpow.pop %v2990
        %v2992 = vadd.f32 %v2989, 1.0
        %v2993 = vadd.f32 %v2991, 1.0
        %v2994 = vrcp.pop %v2992
        %v2995 = vmul.f32 1.0, %v2994
        %v2996 = vrcp.pop %v2993
        %v2997 = vmul.f32 1.0, %v2996
        %3000 = vrot.lane.b32.xlu0 %v2995, 64
        %v3001 = vpop.permute.xlu0 %3000
        %3002 = vrot.lane.b32.xlu0 %v2997, 64
        %v3003 = vpop.permute.xlu0 %3002
        %v3006 = vmul.f32 %v2927, %v3001
        %v3007 = vmul.f32 %v2928, %v3003
        %v3008 = vpack.c.bf16 %v3007, %v3006
        %v3010 = vsel %vm911, %v3008, 0
        %3012 = vmatprep.subr.bf16.mxu0 0
        %3013 = vmatpush1.bf16.msra.mxu0 0
        %3014 = vmatprep.subr.bf16.mxu0 0
        %3015 = vmatpush1.bf16.msra.mxu0 0
        %3016 = vmatprep.subr.bf16.mxu0 0
        %3017 = vmatpush1.bf16.msra.mxu0 0
        %3018 = vmatprep.subr.bf16.mxu0 0
        %3019 = vmatpush1.bf16.msra.mxu0 0
        %3020 = vmatprep.subr.bf16.mxu0 0
        %3021 = vmatpush1.bf16.msra.mxu0 %v1102
        %3022 = vmatprep.subr.bf16.mxu0 0
        %3023 = vmatpush1.bf16.msra.mxu0 %v1101
        %3024 = vmatprep.subr.bf16.mxu0 0
        %3025 = vmatpush1.bf16.msra.mxu0 %v1100
        %3026 = vmatprep.subr.bf16.mxu0 0
        %3027 = vmatpush1.bf16.msra.mxu0 %v1099
        %3028 = vmatprep.subr.bf16.mxu0 0
        %3029 = vmatpush2.bf16.msra.mxu0 0
        %3030 = vmatprep.subr.bf16.mxu0 0
        %3031 = vmatpush2.bf16.msra.mxu0 0
        %3032 = vmatprep.subr.bf16.mxu0 0
        %3033 = vmatpush2.bf16.msra.mxu0 0
        %3034 = vmatprep.subr.bf16.mxu0 0
        %3035 = vmatpush2.bf16.msra.mxu0 0
        %3036 = vmatprep.subr.bf16.mxu0 0
        %3037 = vmatpush2.bf16.msra.mxu0 0
        %3038 = vmatprep.subr.bf16.mxu0 0
        %3039 = vmatpush2.bf16.msra.mxu0 0
        %3040 = vmatprep.subr.bf16.mxu0 0
        %3041 = vmatpush2.bf16.msra.mxu0 0
        %3042 = vmatprep.subr.bf16.mxu0 0
        %3043 = vmatpush2.bf16.msra.mxu0 0
        %3044 = vmatprep.mubr.bf16.mxu0 0
        %3045 = vmatmul.mubr.bf16.gmra.mxu0 %v3010
        %v3046 = vpop.f32.mrf.mxu0
        %v3047 = vadd.f32 0.0, %v3046
        %v3048 = vpop.f32.mrf.mxu0
        %v3049 = vpop.f32.mrf.mxu0
        %v3050 = vadd.f32 0.0, %v3049
        %v3051 = vpop.f32.mrf.mxu0
        %3052 = vdwg.mxu0
        %v3053 = vadd.f32 %v2936, %v3047
        %v3054 = vadd.f32 %v2938, %v3050
        %v3055 = vtanh.pop %v3053
        %v3056 = vtanh.pop %v3054
        %v3057 = vmul.f32 %v2995, %v2927
        %v3058 = vmul.f32 %v2997, %v2928
        %v3059 = vsub.f32 1.0, %v2995
        %v3060 = vsub.f32 1.0, %v2997
        %v3061 = vmul.f32 %v3059, %v3055
        %v3062 = vmul.f32 %v3060, %v3056
        %v3063 = vadd.f32 %v3057, %v3061
        %v3064 = vadd.f32 %v3058, %v3062
        %s3065 = sld [smem:[#allocation3 + $0xe]]
        %v3066 = vstv %s3065
        %v3067 = vmul.f32 %v3066, %v3063
        %v3068 = vmul.f32 %v3066, %v3064
        %v3069 = vadd.f32 %v2933, %v3067
        %v3070 = vadd.f32 %v2934, %v3068
        %v3071 = vld [vmem:[#allocation2 + $0x1e0] sm:$0xff]
        %v3072 = vld [vmem:[#allocation2 + $0x1e8] sm:$0xff]
        %v3073 = vld [vmem:[#allocation2 + $0x1f0] sm:$0xff]
        %v3074 = vld [vmem:[#allocation2 + $0x1f8] sm:$0xff]
        %v3075 = vpack.c.bf16 %v3064, %v3063
        %v3077 = vsel %vm911, %v3075, 0
        %3079 = vmatprep.subr.bf16.mxu0 0
        %3080 = vmatpush1.bf16.msra.mxu0 0
        %3081 = vmatprep.subr.bf16.mxu0 0
        %3082 = vmatpush1.bf16.msra.mxu0 0
        %3083 = vmatprep.subr.bf16.mxu0 0
        %3084 = vmatpush1.bf16.msra.mxu0 0
        %3085 = vmatprep.subr.bf16.mxu0 0
        %3086 = vmatpush1.bf16.msra.mxu0 0
        %3087 = vmatprep.subr.bf16.mxu0 0
        %3088 = vmatpush1.bf16.msra.mxu0 %v1014
        %3089 = vmatprep.subr.bf16.mxu0 0
        %3090 = vmatpush1.bf16.msra.mxu0 %v1013
        %3091 = vmatprep.subr.bf16.mxu0 0
        %3092 = vmatpush1.bf16.msra.mxu0 %v1012
        %3093 = vmatprep.subr.bf16.mxu0 0
        %3094 = vmatpush1.bf16.msra.mxu0 %v1011
        %3095 = vmatprep.subr.bf16.mxu0 0
        %3096 = vmatpush2.bf16.msra.mxu0 0
        %3097 = vmatprep.subr.bf16.mxu0 0
        %3098 = vmatpush2.bf16.msra.mxu0 0
        %3099 = vmatprep.subr.bf16.mxu0 0
        %3100 = vmatpush2.bf16.msra.mxu0 0
        %3101 = vmatprep.subr.bf16.mxu0 0
        %3102 = vmatpush2.bf16.msra.mxu0 0
        %3103 = vmatprep.subr.bf16.mxu0 0
        %3104 = vmatpush2.bf16.msra.mxu0 0
        %3105 = vmatprep.subr.bf16.mxu0 0
        %3106 = vmatpush2.bf16.msra.mxu0 0
        %3107 = vmatprep.subr.bf16.mxu0 0
        %3108 = vmatpush2.bf16.msra.mxu0 0
        %3109 = vmatprep.subr.bf16.mxu0 0
        %3110 = vmatpush2.bf16.msra.mxu0 0
        %3111 = vmatprep.mubr.bf16.mxu0 0
        %3112 = vmatmul.mubr.bf16.gmra.mxu0 %v3077
        %v3113 = vpop.f32.mrf.mxu0
        %v3114 = vadd.f32 0.0, %v3113
        %v3115 = vpop.f32.mrf.mxu0
        %v3116 = vpop.f32.mrf.mxu0
        %v3117 = vadd.f32 0.0, %v3116
        %v3118 = vpop.f32.mrf.mxu0
        %3119 = vdwg.mxu0
        %v3120 = vadd.f32 %v3071, %v3114
        %v3121 = vadd.f32 %v3073, %v3117
        %v3122 = vxor.u32 %v3120, 2147483648
        %v3123 = vxor.u32 %v3121, 2147483648
        %v3124 = vmul.f32 %v3122, 1.442695
        %v3125 = vpow.pop %v3124
        %v3126 = vmul.f32 %v3123, 1.442695
        %v3127 = vpow.pop %v3126
        %v3128 = vadd.f32 %v3125, 1.0
        %v3129 = vadd.f32 %v3127, 1.0
        %v3130 = vrcp.pop %v3128
        %v3131 = vmul.f32 1.0, %v3130
        %v3132 = vrcp.pop %v3129
        %v3133 = vmul.f32 1.0, %v3132
        %3136 = vrot.lane.b32.xlu0 %v3131, 64
        %v3137 = vpop.permute.xlu0 %3136
        %3138 = vrot.lane.b32.xlu0 %v3133, 64
        %v3139 = vpop.permute.xlu0 %3138
        %v3142 = vmul.f32 %v3063, %v3137
        %v3143 = vmul.f32 %v3064, %v3139
        %v3144 = vpack.c.bf16 %v3143, %v3142
        %v3146 = vsel %vm911, %v3144, 0
        %3148 = vmatprep.subr.bf16.mxu0 0
        %3149 = vmatpush1.bf16.msra.mxu0 0
        %3150 = vmatprep.subr.bf16.mxu0 0
        %3151 = vmatpush1.bf16.msra.mxu0 0
        %3152 = vmatprep.subr.bf16.mxu0 0
        %3153 = vmatpush1.bf16.msra.mxu0 0
        %3154 = vmatprep.subr.bf16.mxu0 0
        %3155 = vmatpush1.bf16.msra.mxu0 0
        %3156 = vmatprep.subr.bf16.mxu0 0
        %3157 = vmatpush1.bf16.msra.mxu0 %v1102
        %3158 = vmatprep.subr.bf16.mxu0 0
        %3159 = vmatpush1.bf16.msra.mxu0 %v1101
        %3160 = vmatprep.subr.bf16.mxu0 0
        %3161 = vmatpush1.bf16.msra.mxu0 %v1100
        %3162 = vmatprep.subr.bf16.mxu0 0
        %3163 = vmatpush1.bf16.msra.mxu0 %v1099
        %3164 = vmatprep.subr.bf16.mxu0 0
        %3165 = vmatpush2.bf16.msra.mxu0 0
        %3166 = vmatprep.subr.bf16.mxu0 0
        %3167 = vmatpush2.bf16.msra.mxu0 0
        %3168 = vmatprep.subr.bf16.mxu0 0
        %3169 = vmatpush2.bf16.msra.mxu0 0
        %3170 = vmatprep.subr.bf16.mxu0 0
        %3171 = vmatpush2.bf16.msra.mxu0 0
        %3172 = vmatprep.subr.bf16.mxu0 0
        %3173 = vmatpush2.bf16.msra.mxu0 0
        %3174 = vmatprep.subr.bf16.mxu0 0
        %3175 = vmatpush2.bf16.msra.mxu0 0
        %3176 = vmatprep.subr.bf16.mxu0 0
        %3177 = vmatpush2.bf16.msra.mxu0 0
        %3178 = vmatprep.subr.bf16.mxu0 0
        %3179 = vmatpush2.bf16.msra.mxu0 0
        %3180 = vmatprep.mubr.bf16.mxu0 0
        %3181 = vmatmul.mubr.bf16.gmra.mxu0 %v3146
        %v3182 = vpop.f32.mrf.mxu0
        %v3183 = vadd.f32 0.0, %v3182
        %v3184 = vpop.f32.mrf.mxu0
        %v3185 = vpop.f32.mrf.mxu0
        %v3186 = vadd.f32 0.0, %v3185
        %v3187 = vpop.f32.mrf.mxu0
        %3188 = vdwg.mxu0
        %v3189 = vadd.f32 %v3072, %v3183
        %v3190 = vadd.f32 %v3074, %v3186
        %v3191 = vtanh.pop %v3189
        %v3192 = vtanh.pop %v3190
        %v3193 = vmul.f32 %v3131, %v3063
        %v3194 = vmul.f32 %v3133, %v3064
        %v3195 = vsub.f32 1.0, %v3131
        %v3196 = vsub.f32 1.0, %v3133
        %v3197 = vmul.f32 %v3195, %v3191
        %v3198 = vmul.f32 %v3196, %v3192
        %v3199 = vadd.f32 %v3193, %v3197
        %v3200 = vadd.f32 %v3194, %v3198
        %s3201 = sld [smem:[#allocation3 + $0xf]]
        %v3202 = vstv %s3201
        %v3203 = vmul.f32 %v3202, %v3199
        %v3204 = vmul.f32 %v3202, %v3200
        %v3205 = vadd.f32 %v3069, %v3203
        %v3206 = vadd.f32 %v3070, %v3204
        %v3207 = vpack.c.bf16 %v3206, %v3205
        %v3208 = vld [vmem:[%s6] sm:$0xf]
        %v3209 = vld [vmem:[%s6 + $0x4] sm:$0xf]
        %v3210 = vld [vmem:[%s6 + $0x8] sm:$0xf]
        %v3211 = vld [vmem:[%s6 + $0xc] sm:$0xf]
        %v3212 = vld [vmem:[%s6 + $0x10] sm:$0xf]
        %v3213 = vld [vmem:[%s6 + $0x14] sm:$0xf]
        %v3214 = vld [vmem:[%s6 + $0x18] sm:$0xf]
        %v3215 = vld [vmem:[%s6 + $0x1c] sm:$0xf]
        %v3216 = vld [vmem:[%s7] sm:$0x1]
        %v3218 = vlaneseq
        %v3219 = vshrl.u32 %v3218, 7
        %v3220 = vsub.s32 0, %v3219
        %v3221 = vrot.slane %v3216, %v3220
        %v3231 = vunpack.c.l.b16 %v3208
        %v3232 = vunpack.c.l.b16 %v3209
        %v3233 = vunpack.c.l.b16 %v3210
        %v3234 = vunpack.c.l.b16 %v3211
        %v3235 = vunpack.c.l.b16 %v3212
        %v3236 = vunpack.c.l.b16 %v3213
        %v3237 = vunpack.c.l.b16 %v3214
        %v3238 = vunpack.c.l.b16 %v3215
        %v3239 = vpack.c.b16 %v3232, %v3231
        %v3240 = vpack.c.b16 %v3234, %v3233
        %v3241 = vpack.c.b16 %v3236, %v3235
        %v3242 = vpack.c.b16 %v3238, %v3237
        %v3248 = vsel %vm911, %v3207, 0
        %3250 = vmatprep.subr.bf16.mxu0 0
        %3251 = vmatpush1.bf16.msra.mxu0 0
        %3252 = vmatprep.subr.bf16.mxu0 0
        %3253 = vmatpush1.bf16.msra.mxu0 0
        %3254 = vmatprep.subr.bf16.mxu0 0
        %3255 = vmatpush1.bf16.msra.mxu0 0
        %3256 = vmatprep.subr.bf16.mxu0 0
        %3257 = vmatpush1.bf16.msra.mxu0 0
        %3258 = vmatprep.subr.bf16.mxu0 0
        %3259 = vmatpush1.bf16.msra.mxu0 %v3242
        %3260 = vmatprep.subr.bf16.mxu0 0
        %3261 = vmatpush1.bf16.msra.mxu0 %v3241
        %3262 = vmatprep.subr.bf16.mxu0 0
        %3263 = vmatpush1.bf16.msra.mxu0 %v3240
        %3264 = vmatprep.subr.bf16.mxu0 0
        %3265 = vmatpush1.bf16.msra.mxu0 %v3239
        %3266 = vmatprep.subr.bf16.mxu0 0
        %3267 = vmatpush2.bf16.msra.mxu0 0
        %3268 = vmatprep.subr.bf16.mxu0 0
        %3269 = vmatpush2.bf16.msra.mxu0 0
        %3270 = vmatprep.subr.bf16.mxu0 0
        %3271 = vmatpush2.bf16.msra.mxu0 0
        %3272 = vmatprep.subr.bf16.mxu0 0
        %3273 = vmatpush2.bf16.msra.mxu0 0
        %3274 = vmatprep.subr.bf16.mxu0 0
        %3275 = vmatpush2.bf16.msra.mxu0 0
        %3276 = vmatprep.subr.bf16.mxu0 0
        %3277 = vmatpush2.bf16.msra.mxu0 0
        %3278 = vmatprep.subr.bf16.mxu0 0
        %3279 = vmatpush2.bf16.msra.mxu0 0
        %3280 = vmatprep.subr.bf16.mxu0 0
        %3281 = vmatpush2.bf16.msra.mxu0 0
        %3282 = vmatprep.mubr.bf16.mxu0 0
        %3283 = vmatmul.mubr.bf16.gmra.mxu0 %v3248
        %v3284 = vpop.f32.mrf.mxu0
        %v3285 = vadd.f32 %v3221, %v3284
        %v3286 = vpop.f32.mrf.mxu0
        %v3287 = vpop.f32.mrf.mxu0
        %v3288 = vadd.f32 %v3221, %v3287
        %v3289 = vpop.f32.mrf.mxu0
        %3290 = vdwg.mxu0
        %vm3291 = vcmask 64512
        %3292 = vst.msk [vmem:[%s319] sm:$0xff] %vm3291, %v3285
        %3293 = vst.msk [vmem:[%s319 + $0x8] sm:$0xff] %vm3291, %v3288
        %p3294 = scmp.lt.s32.totalorder %s20, 1
        %s3295 = scalar_select %p3294, %s20, 1
        %s3296 = smul.addr %s3295, 2
        %s3297 = smul.addr %s3296, 8
        %s3298 = scalar_lea.vmem %s8, %s3297
        // Predicated region
        $region57: #{tpu_custom_call.1} parent=51 // pred_check
          %p3299 = pneg %p211
        $region58: #{tpu_custom_call.1} parent=51 // pred_check_branch
          %3301 = sbr.rel (%p3299) target = $region60
        $region59: #{tpu_custom_call.1} parent=51 // pred_region
          _
        $region60: #{tpu_custom_call.1} parent=51 // pred_fallthru
          _
      $region52: #{tpu_custom_call.1} parent=5 // pred_fallthru
        _
      %p3302 = scmp.le.s32.totalorder 2, %s15
      // Predicated region
      $region61: #{tpu_custom_call.1} parent=5 // pred_check
        %p3303 = pneg %p3302
      $region62: #{tpu_custom_call.1} parent=5 // pred_check_branch
        %3305 = sbr.rel (%p3303) target = $region64
      $region63: #{tpu_custom_call.1} parent=5 // pred_region
        %s3306 = ssub.s32 %s15, 2
        // Predicated region
        $region65: #{tpu_custom_call.1} parent=63 // pred_check
          %p3307 = pneg %p217
        $region66: #{tpu_custom_call.1} parent=63 // pred_check_branch
          %3309 = sbr.rel (%p3307) target = $region68
        $region67: #{tpu_custom_call.1} parent=63 // pred_region
          %p3310 = scmp.lt.s32.totalorder %s21, 1
          %s3311 = scalar_select %p3310, %s21, 1
          %s3312 = smul.addr %s3311, 2
          %s3313 = smul.addr %s3312, 8
          %s3314 = scalar_lea.vmem %s8, %s3313
        $region68: #{tpu_custom_call.1} parent=63 // pred_fallthru
          _
      $region64: #{tpu_custom_call.1} parent=5 // pred_fallthru
        _
    $region6: #{tpu_custom_call.1} parent=1 // loop_footer
      %s19 = sadd.s32 1, %s15
    $region7: #{tpu_custom_call.1} parent=1 // loop_footer_branch
      %14 = sbr.rel target = $region3
    $region8: #{tpu_custom_call.1} parent=1 // loop_exit
      _
    %3315 = vsyncpa [#allocation4], 1
    %s3316 = scalar_lea.sflag [#allocation4], 1
    %3317 = vsyncpa %s3316, 1

</llo_original>
